<compile_context>
chip_gen: v7x
topology: tpu7x:2x2x1
jax: 0.10.0
libtpu: 0.0.40
codegen_flags: <defaults>
</compile_context>

<pallas_src>
import functools
import jax
import jax.numpy as jnp
from jax import lax
from jax.experimental import pallas as pl
from jax.experimental.pallas import tpu as pltpu


# ----------------------------- fused Pallas kernel -----------------------------

def _highway_fused_kernel(x_ref, idx_ref,
                          wemb_ref, bemb_ref,
                          wih1_ref, b1_ref,
                          wih2_ref, b2_ref,
                          whhblk_ref,
                          watt_ref, batt_ref,
                          dwih_ref, dwhh_ref, db_ref,
                          wop_ref, bop_ref,
                          fut_ref, alpha_ref,
                          *, T, B, Nn):
    f32 = jnp.float32
    bf16 = jnp.bfloat16
    H = whhblk_ref.shape[0] // 2       # encoder size E
    D = dwhh_ref.shape[0]              # decoder size
    G1 = alpha_ref.shape[1]            # grid cells + 1
    Tout = fut_ref.shape[0]
    TB = T * B

    # ---- 1) shared ip_emb Linear(2->Em) + LeakyReLU(0.1), hist & nbrs in one bf16 matmul ----
    emb = jnp.dot(x_ref[...], wemb_ref[...], preferred_element_type=f32) + bemb_ref[...]
    emb = jnp.where(emb > 0, emb, 0.1 * emb)
    emb_bf = emb.astype(bf16)

    # ---- 2) non-recurrent LSTM input projections, hoisted out of the recurrences ----
    # (i/f/o columns of wih/b were pre-scaled by 0.5 on the host -> single tanh per cell)
    xg1 = jnp.dot(emb_bf[:TB], wih1_ref[...], preferred_element_type=f32) + b1_ref[...]   # (T*B , 4H)
    xg2 = jnp.dot(emb_bf[TB:], wih2_ref[...], preferred_element_type=f32) + b2_ref[...]   # (T*Nn, 4H)

    whh_blk = whhblk_ref[...]          # (2H, 8H) block-diagonal, bf16, pre-scaled
    dwhh = dwhh_ref[...]               # (D, 4D), bf16, pre-scaled

    # gate-column masks, hoisted (JAX does not CSE broadcast_in_dim inside loops)
    def g_mask(rows, hd):
        col = lax.broadcasted_iota(jnp.int32, (rows, 4 * hd), 1)
        return (col >= 2 * hd) & (col < 3 * hd)

    gm1 = g_mask(B, H)
    gm2 = g_mask(Nn, H)
    gmd = g_mask(B, D)

    def gate_act(gates, gm):
        # i/f/o preactivations arrive pre-scaled by 0.5, so sigmoid(x) = 0.5*tanh(x/2)+0.5:
        # one full-width tanh + a VPU select replaces tanh + sigmoid per cell.
        t = jnp.tanh(gates)
        return jnp.where(gm, t, 0.5 * t + 0.5)

    def apply_cell(act, c, hd):
        i_g = act[:, 0:hd]
        f_g = act[:, hd:2 * hd]
        g_g = act[:, 2 * hd:3 * hd]
        o_g = act[:, 3 * hd:4 * hd]
        c = f_g * c + i_g * g_g
        h = o_g * jnp.tanh(c)
        return h, c

    # ---- 3) hist / nbrs encoder recurrences: ONE fused MXU matmul per timestep ----
    # [h1 ; h2] embedded block-diagonally into a (B+Nn, 2H) tile so a single
    # (B+Nn,2H)@(2H,8H) matmul produces both recurrent gate contributions.
    h1 = jnp.zeros((B, H), f32);  c1 = jnp.zeros((B, H), f32)
    h2 = jnp.zeros((Nn, H), f32); c2 = jnp.zeros((Nn, H), f32)
    zB = jnp.zeros((B, H), f32)
    zN = jnp.zeros((Nn, H), f32)
    for t in range(T):
        hpad = jnp.concatenate(
            [jnp.concatenate([h1, zB], axis=1),
             jnp.concatenate([zN, h2], axis=1)], axis=0).astype(bf16)        # (B+Nn, 2H)
        rec = jnp.dot(hpad, whh_blk, preferred_element_type=f32)             # (B+Nn, 8H)
        gates1 = xg1[t * B:(t + 1) * B, :] + rec[:B, :4 * H]
        gates2 = xg2[t * Nn:(t + 1) * Nn, :] + rec[B:, 4 * H:]
        h1, c1 = apply_cell(gate_act(gates1, gm1), c1, H)
        h2, c2 = apply_cell(gate_act(gates2, gm2), c2, H)

    # ---- 4) masked_scatter_ + permutes + concat  ->  one flat one-hot gather matmul ----
    # idx_ref[b, g] = nbrs_enc row feeding grid slot g (or -1 if empty);
    # slot G1-1 is reserved for hist_enc and added below via a lane mask.
    idx3 = idx_ref[...][:, :, None]                                           # (B, G1, 1)
    sel = jnp.where(idx3 == lax.broadcasted_iota(jnp.int32, (B, G1, Nn), 2),
                    1.0, 0.0)                                                 # (B, G1, Nn)
    soc = jnp.dot(sel.reshape(B * G1, Nn), h2,
                  preferred_element_type=f32).reshape(B, G1, H)               # (B, G1, E)
    is_last = lax.broadcasted_iota(jnp.int32, (B, G1, 1), 1) == (G1 - 1)
    hs = soc + jnp.where(is_last, h1[:, None, :], 0.0)                        # new_hs_per

    # ---- 5) attention: pre4att(tanh) -> softmax over grid -> weighted sum -> ReLU ----
    th = jnp.tanh(hs)
    w = jnp.sum(th * watt_ref[...][None, :, :], axis=2) + batt_ref[...]       # (B, G1)
    m = jnp.max(w, axis=1, keepdims=True)
    e = jnp.exp(w - m)
    alpha = e * pl.reciprocal(jnp.sum(e, axis=1, keepdims=True), approx=True)
    enc = jnp.maximum(jnp.sum(hs * alpha[:, :, None], axis=1), 0.0)           # (B, E)
    alpha_ref[...] = alpha

    # ---- 6) decoder LSTM (same enc every step): hoisted input & output projections ----
    xgd = jnp.dot(enc.astype(bf16), dwih_ref[...], preferred_element_type=f32) + db_ref[...]
    hd = jnp.zeros((B, D), f32)
    cd = jnp.zeros((B, D), f32)
    hs_dec = []
    for _ in range(Tout):
        gates = xgd + jnp.dot(hd.astype(bf16), dwhh, preferred_element_type=f32)
        hd, cd = apply_cell(gate_act(gates, gmd), cd, D)
        hs_dec.append(hd)
    hstk = jnp.concatenate(hs_dec, axis=0)                                    # (Tout*B, D)

    raw = jnp.dot(hstk, wop_ref[...],
                  preferred_element_type=f32).reshape(Tout, B, 5) + bop_ref[...]
    # TODO(synk): outputActivation is not defined in the provided reference snippet;
    # using the conv-social-pooling convention (identity muX/muY, exp sigX/sigY, tanh rho).
    ocol = lax.broadcasted_iota(jnp.int32, (Tout, B, 5), 2)
    fut_ref[...] = jnp.where(ocol < 2, raw,
                             jnp.where(ocol < 4, jnp.exp(raw), jnp.tanh(raw)))


# ----------------------------- wrapper / forward pass -----------------------------

def highway_net_forward(params, hist, nbrs, masks, lat_enc, lon_enc, *, out_length):
    """Forward pass of highwayNet (lat_enc / lon_enc accepted but unused, as in the
    reference forward). Weights use (in, out) layout with PyTorch i,f,g,o gate order;
    loading real PyTorch weights requires transposing W_ih/W_hh and summing b_ih+b_hh."""
    del lat_enc, lon_enc
    T, B, _ = hist.shape
    Tn, Nn, _ = nbrs.shape
    assert Tn == T
    E = params['lstm1_whh'].shape[0]
    D = params['dec_whh'].shape[0]
    Em = params['w_emb'].shape[1]
    d1, d2 = masks.shape[1], masks.shape[2]
    G = d1 * d2
    G1 = G + 1

    # --- data-dependent masked_scatter_ -> tiny int32 row-index table (only real glue) ---
    # Row-major rank of each occupied cell == nbrs_enc row that fills it
    # (conv-social-pooling convention: occupied cells have all E mask bits set).
    occ = masks[..., 0].astype(bool)                                  # (B, d1, d2)
    flat = occ.reshape(-1)
    rank = jnp.cumsum(flat.astype(jnp.int32)) - 1
    row_tbl = jnp.where(flat, rank, -1).reshape(B, d1, d2)
    # permute(0,3,2,1) + flatten  ->  grid slot g = j*d1 + i
    grid_tbl = jnp.transpose(row_tbl, (0, 2, 1)).reshape(B, G)
    idx_tbl = jnp.concatenate(
        [grid_tbl, jnp.full((B, 1), -1, jnp.int32)], axis=1).astype(jnp.int32)   # (B, G+1)

    # free layout prep: one (T*(B+Nn), 2) slab feeds a single shared embedding matmul
    x_all = jnp.concatenate([hist.reshape(T * B, 2), nbrs.reshape(T * Nn, 2)],
                            axis=0).astype(jnp.bfloat16)

    # --- weight prep (host side, tiny & jit-fused) ---
    # pre-scale i/f/o gate columns by 0.5: sigmoid(x) = 0.5*tanh(x/2)+0.5 in-kernel
    def prescale_ifo(w4, hd):
        col = jnp.arange(4 * hd)
        scale = jnp.where((col >= 2 * hd) & (col < 3 * hd), 1.0, 0.5).astype(w4.dtype)
        return w4 * scale

    wih1 = prescale_ifo(params['lstm1_wih'], E)
    whh1 = prescale_ifo(params['lstm1_whh'], E)
    b1 = prescale_ifo(params['lstm1_b'], E)
    wih2 = prescale_ifo(params['lstm2_wih'], E)
    whh2 = prescale_ifo(params['lstm2_whh'], E)
    b2 = prescale_ifo(params['lstm2_b'], E)
    dwih = prescale_ifo(params['dec_wih'], D)
    dwhh = prescale_ifo(params['dec_whh'], D)
    db = prescale_ifo(params['dec_b'], D)

    # block-diagonal joint recurrent weight: one MXU push per encoder timestep
    whh_blk = jnp.zeros((2 * E, 8 * E), jnp.float32)
    whh_blk = whh_blk.at[:E, :4 * E].set(whh1).at[E:, 4 * E:].set(whh2)

    bf = lambda a: a.astype(jnp.bfloat16)

    flops = 2 * (T * (B + Nn) * 2 * Em
                 + T * (B + Nn) * Em * 4 * E
                 + T * (B + Nn) * 2 * E * 8 * E
                 + B * G1 * Nn * E
                 + B * E * 4 * D
                 + out_length * B * D * 4 * D
                 + out_length * B * D * 5)
    transcendentals = (T * (B + Nn) * 5 * E
                       + B * G1 * (E + 1)
                       + out_length * B * (5 * D + 3))
    bytes_accessed = (2 * (int(x_all.size) + int(wih1.size) + int(wih2.size)
                           + int(whh_blk.size) + int(dwih.size) + int(dwhh.size) + 2 * Em)
                      + 4 * (int(idx_tbl.size) + Em + 8 * E + E + 1 + 4 * D + 5 * D + 5
                             + out_length * B * 5 + B * G1))

    vmem = lambda: pl.BlockSpec(memory_space=pltpu.MemorySpace.VMEM)
    kernel = functools.partial(_highway_fused_kernel, T=T, B=B, Nn=Nn)

    fut, alpha = pl.pallas_call(
        kernel,
        out_shape=(jax.ShapeDtypeStruct((out_length, B, 5), jnp.float32),
                   jax.ShapeDtypeStruct((B, G1), jnp.float32)),
        in_specs=[vmem() for _ in range(16)],
        out_specs=(vmem(), vmem()),
        compiler_params=pltpu.CompilerParams(vmem_limit_bytes=32 * 1024 * 1024),
        cost_estimate=pl.CostEstimate(flops=flops,
                                      transcendentals=transcendentals,
                                      bytes_accessed=bytes_accessed),
    )(x_all, idx_tbl,
      bf(params['w_emb']), params['b_emb'],
      bf(wih1), b1,
      bf(wih2), b2,
      bf(whh_blk),
      params['w_att'], params['b_att'],
      bf(dwih), bf(dwhh), db,
      params['w_op'], params['b_op'])
    return fut, alpha[:, :, None]


# ----------------------------- params / pure-JAX reference -----------------------------

def _init_params(key, emb_size, enc_size, dec_size):
    def nrm(k, shape, scale=0.1):
        return scale * jax.random.normal(k, shape, dtype=jnp.float32)
    ks = jax.random.split(key, 15)
    return dict(
        w_emb=nrm(ks[0], (2, emb_size)),        b_emb=nrm(ks[1], (1, emb_size)),
        lstm1_wih=nrm(ks[2], (emb_size, 4 * enc_size)),
        lstm1_whh=nrm(ks[3], (enc_size, 4 * enc_size)),
        lstm1_b=nrm(ks[4], (1, 4 * enc_size)),
        lstm2_wih=nrm(ks[5], (emb_size, 4 * enc_size)),
        lstm2_whh=nrm(ks[6], (enc_size, 4 * enc_size)),
        lstm2_b=nrm(ks[7], (1, 4 * enc_size)),
        w_att=nrm(ks[8], (1, enc_size)),        b_att=nrm(ks[9], (1, 1)),
        dec_wih=nrm(ks[10], (enc_size, 4 * dec_size)),
        dec_whh=nrm(ks[11], (dec_size, 4 * dec_size)),
        dec_b=nrm(ks[12], (1, 4 * dec_size)),
        w_op=nrm(ks[13], (dec_size, 5)),        b_op=nrm(ks[14], (1, 5)),
    )


def _reference_forward(params, hist, nbrs, masks, out_length):
    """Plain-JAX reference mirroring the PyTorch forward (for validation only)."""
    E = params['lstm1_whh'].shape[0]
    D = params['dec_whh'].shape[0]
    leaky = lambda x: jnp.where(x > 0, x, 0.1 * x)

    def run_lstm(x_seq, wih, whh, b, hdim):
        n = x_seq.shape[1]
        h = jnp.zeros((n, hdim), jnp.float32)
        c = jnp.zeros((n, hdim), jnp.float32)
        for t in range(x_seq.shape[0]):
            g = x_seq[t] @ wih + h @ whh + b
            i = jax.nn.sigmoid(g[:, :hdim]);        f = jax.nn.sigmoid(g[:, hdim:2 * hdim])
            gg = jnp.tanh(g[:, 2 * hdim:3 * hdim]); o = jax.nn.sigmoid(g[:, 3 * hdim:])
            c = f * c + i * gg
            h = o * jnp.tanh(c)
        return h

    emb_h = leaky(hist @ params['w_emb'] + params['b_emb'])
    emb_n = leaky(nbrs @ params['w_emb'] + params['b_emb'])
    hist_enc = run_lstm(emb_h, params['lstm1_wih'], params['lstm1_whh'], params['lstm1_b'], E)
    nbrs_enc = run_lstm(emb_n, params['lstm2_wih'], params['lstm2_whh'], params['lstm2_b'], E)

    B = hist.shape[1]
    mflat = masks.reshape(-1)
    pos = jnp.cumsum(mflat.astype(jnp.int32)) - 1
    src = nbrs_enc.reshape(-1)
    soc = jnp.where(mflat, src[jnp.clip(pos, 0, src.shape[0] - 1)], 0.0)
    soc = soc.reshape(masks.shape).astype(jnp.float32)
    soc = jnp.transpose(soc, (0, 3, 2, 1)).reshape(B, E, -1)
    new_hs = jnp.concatenate([soc, hist_enc[:, :, None]], axis=2)
    hs = jnp.transpose(new_hs, (0, 2, 1))                                   # (B, G+1, E)

    w = jnp.tanh(hs) @ params['w_att'].T + params['b_att']                  # (B, G+1, 1)
    alpha = jax.nn.softmax(w, axis=1)
    enc = jax.nn.relu(jnp.sum(hs * alpha, axis=1))                          # (B, E)

    xg = enc @ params['dec_wih'] + params['dec_b']
    h = jnp.zeros((B, D), jnp.float32)
    c = jnp.zeros((B, D), jnp.float32)
    outs = []
    for _ in range(out_length):
        g = xg + h @ params['dec_whh']
        i = jax.nn.sigmoid(g[:, :D]);        f = jax.nn.sigmoid(g[:, D:2 * D])
        gg = jnp.tanh(g[:, 2 * D:3 * D]);    o = jax.nn.sigmoid(g[:, 3 * D:])
        c = f * c + i * gg
        h = o * jnp.tanh(c)
        outs.append(h @ params['w_op'] + params['b_op'])
    raw = jnp.stack(outs, axis=0)                                           # (Tout, B, 5)
    fut = jnp.concatenate([raw[..., :2], jnp.exp(raw[..., 2:4]), jnp.tanh(raw[..., 4:5])],
                          axis=-1)
    return fut, alpha


# ----------------------------- demo / self-test -----------------------------

if __name__ == "__main__":
    args = dict(encoder_size=32, decoder_size=64, in_length=8, out_length=5,
                grid_size=(5, 3), input_embedding_size=16,
                use_cuda=False, train_flag=True)
    B, Nn = 2, 3
    E, D = args['encoder_size'], args['decoder_size']
    gh, gw = args['grid_size']

    key = jax.random.PRNGKey(0)
    kp, kh, kn = jax.random.split(key, 3)
    params = _init_params(kp, args['input_embedding_size'], E, D)

    hist = jax.random.normal(kh, (args['in_length'], B, 2), dtype=jnp.float32)
    nbrs = jax.random.normal(kn, (args['in_length'], Nn, 2), dtype=jnp.float32)

    # occupied grid cells: 2 neighbors for batch 0, 1 for batch 1 (total == Nn)
    occ = jnp.zeros((B, gw, gh), dtype=bool)
    occ = occ.at[0, 0, 1].set(True).at[0, 2, 3].set(True).at[1, 1, 2].set(True)
    masks = jnp.tile(occ[:, :, :, None], (1, 1, 1, E))            # (B, gw, gh, E) bool

    lat_enc = jnp.zeros((B, 3), jnp.float32)   # unused by forward
    lon_enc = jnp.zeros((B, 2), jnp.float32)   # unused by forward

    fwd = jax.jit(functools.partial(highway_net_forward, out_length=args['out_length']))
    fut_pred, alpha = fwd(params, hist, nbrs, masks, lat_enc, lon_enc)
    jax.block_until_ready((fut_pred, alpha))

    assert fut_pred.shape == (args['out_length'], B, 5)
    assert alpha.shape == (B, gh * gw + 1, 1)
    assert bool(jnp.all(jnp.isfinite(fut_pred))) and bool(jnp.all(jnp.isfinite(alpha)))

    # pure-JAX f32 reference check (tolerance covers bf16-MXU / approx-recip differences)
    with jax.default_matmul_precision("float32"):
        fut_ref, alpha_ref = _reference_forward(params, hist, nbrs, masks, args['out_length'])
    assert jnp.allclose(fut_pred, fut_ref, rtol=5e-2, atol=5e-2), \
        float(jnp.max(jnp.abs(fut_pred - fut_ref)))
    assert jnp.allclose(alpha, alpha_ref, rtol=5e-2, atol=5e-2), \
        float(jnp.max(jnp.abs(alpha - alpha_ref)))

    print("KERNEL_OK")
</pallas_src>

<mosaic_0001>
module attributes {stable_mosaic.version = 11 : i64} {
  func.func @_highway_fused_kernel(%arg0: memref<40x2xbf16, #tpu.memory_space<vmem>>, %arg1: memref<2x16xi32, #tpu.memory_space<vmem>>, %arg2: memref<2x16xbf16, #tpu.memory_space<vmem>>, %arg3: memref<1x16xf32, #tpu.memory_space<vmem>>, %arg4: memref<16x128xbf16, #tpu.memory_space<vmem>>, %arg5: memref<1x128xf32, #tpu.memory_space<vmem>>, %arg6: memref<16x128xbf16, #tpu.memory_space<vmem>>, %arg7: memref<1x128xf32, #tpu.memory_space<vmem>>, %arg8: memref<64x256xbf16, #tpu.memory_space<vmem>>, %arg9: memref<1x32xf32, #tpu.memory_space<vmem>>, %arg10: memref<1x1xf32, #tpu.memory_space<vmem>>, %arg11: memref<32x256xbf16, #tpu.memory_space<vmem>>, %arg12: memref<64x256xbf16, #tpu.memory_space<vmem>>, %arg13: memref<1x256xf32, #tpu.memory_space<vmem>>, %arg14: memref<64x5xf32, #tpu.memory_space<vmem>>, %arg15: memref<1x5xf32, #tpu.memory_space<vmem>>, %arg16: memref<5x2x5xf32, #tpu.memory_space<vmem>>, %arg17: memref<2x16xf32, #tpu.memory_space<vmem>>) attributes {dimension_semantics = [], scalar_prefetch = 0 : i64, scratch_operands = 0 : i64, tpu.core_type = #tpu.core_type<tc>} {
    %c0 = arith.constant 0 : index
    %c0_0 = arith.constant 0 : index
    %0 = vector.load %arg0[%c0, %c0_0] : memref<40x2xbf16, #tpu.memory_space<vmem>>, vector<40x2xbf16>
    %c0_1 = arith.constant 0 : index
    %c0_2 = arith.constant 0 : index
    %1 = vector.load %arg2[%c0_1, %c0_2] : memref<2x16xbf16, #tpu.memory_space<vmem>>, vector<2x16xbf16>
    %cst = arith.constant dense<0.000000e+00> : vector<40x16xf32>
    %2 = tpu.matmul %0, %1, %cst {dimension_numbers = #tpu.dot_dimension_numbers<[1], [0], [0], [1], [0, 0, 1, 1], [], []>} : vector<40x2xbf16>, vector<2x16xbf16>, vector<40x16xf32> -> vector<40x16xf32>
    %c0_3 = arith.constant 0 : index
    %c0_4 = arith.constant 0 : index
    %3 = vector.load %arg3[%c0_3, %c0_4] : memref<1x16xf32, #tpu.memory_space<vmem>>, vector<1x16xf32>
    %4 = vector.broadcast %3 : vector<1x16xf32> to vector<40x16xf32>
    %5 = arith.addf %2, %4 : vector<40x16xf32>
    %cst_5 = arith.constant 0.000000e+00 : f32
    %6 = vector.broadcast %cst_5 : f32 to vector<40x16xf32>
    %7 = arith.cmpf ogt, %5, %6 : vector<40x16xf32>
    %cst_6 = arith.constant 1.000000e-01 : f32
    %8 = vector.broadcast %cst_6 : f32 to vector<40x16xf32>
    %9 = arith.mulf %8, %5 : vector<40x16xf32>
    %10 = arith.select %7, %5, %9 : vector<40x16xi1>, vector<40x16xf32>
    %11 = arith.truncf %10 : vector<40x16xf32> to vector<40x16xbf16>
    %12 = vector.extract_strided_slice %11 {offsets = [0, 0], sizes = [16, 16], strides = [1, 1]} : vector<40x16xbf16> to vector<16x16xbf16>
    %c0_7 = arith.constant 0 : index
    %c0_8 = arith.constant 0 : index
    %13 = vector.load %arg4[%c0_7, %c0_8] : memref<16x128xbf16, #tpu.memory_space<vmem>>, vector<16x128xbf16>
    %cst_9 = arith.constant dense<0.000000e+00> : vector<16x128xf32>
    %14 = tpu.matmul %12, %13, %cst_9 {dimension_numbers = #tpu.dot_dimension_numbers<[1], [0], [0], [1], [0, 0, 1, 1], [], []>} : vector<16x16xbf16>, vector<16x128xbf16>, vector<16x128xf32> -> vector<16x128xf32>
    %c0_10 = arith.constant 0 : index
    %c0_11 = arith.constant 0 : index
    %15 = vector.load %arg5[%c0_10, %c0_11] : memref<1x128xf32, #tpu.memory_space<vmem>>, vector<1x128xf32>
    %16 = vector.broadcast %15 : vector<1x128xf32> to vector<16x128xf32>
    %17 = arith.addf %14, %16 : vector<16x128xf32>
    %18 = vector.extract_strided_slice %11 {offsets = [16, 0], sizes = [24, 16], strides = [1, 1]} : vector<40x16xbf16> to vector<24x16xbf16>
    %c0_12 = arith.constant 0 : index
    %c0_13 = arith.constant 0 : index
    %19 = vector.load %arg6[%c0_12, %c0_13] : memref<16x128xbf16, #tpu.memory_space<vmem>>, vector<16x128xbf16>
    %cst_14 = arith.constant dense<0.000000e+00> : vector<24x128xf32>
    %20 = tpu.matmul %18, %19, %cst_14 {dimension_numbers = #tpu.dot_dimension_numbers<[1], [0], [0], [1], [0, 0, 1, 1], [], []>} : vector<24x16xbf16>, vector<16x128xbf16>, vector<24x128xf32> -> vector<24x128xf32>
    %c0_15 = arith.constant 0 : index
    %c0_16 = arith.constant 0 : index
    %21 = vector.load %arg7[%c0_15, %c0_16] : memref<1x128xf32, #tpu.memory_space<vmem>>, vector<1x128xf32>
    %22 = vector.broadcast %21 : vector<1x128xf32> to vector<24x128xf32>
    %23 = arith.addf %20, %22 : vector<24x128xf32>
    %c0_17 = arith.constant 0 : index
    %c0_18 = arith.constant 0 : index
    %24 = vector.load %arg8[%c0_17, %c0_18] : memref<64x256xbf16, #tpu.memory_space<vmem>>, vector<64x256xbf16>
    %c0_19 = arith.constant 0 : index
    %c0_20 = arith.constant 0 : index
    %25 = vector.load %arg12[%c0_19, %c0_20] : memref<64x256xbf16, #tpu.memory_space<vmem>>, vector<64x256xbf16>
    %26 = tpu.iota {dimensions = array<i32: 1>} : vector<2x128xi32>
    %c64_i32 = arith.constant 64 : i32
    %27 = vector.broadcast %c64_i32 : i32 to vector<2x128xi32>
    %28 = arith.cmpi sge, %26, %27 : vector<2x128xi32>
    %c96_i32 = arith.constant 96 : i32
    %29 = vector.broadcast %c96_i32 : i32 to vector<2x128xi32>
    %30 = arith.cmpi slt, %26, %29 : vector<2x128xi32>
    %31 = arith.andi %28, %30 : vector<2x128xi1>
    %32 = tpu.iota {dimensions = array<i32: 1>} : vector<3x128xi32>
    %c64_i32_21 = arith.constant 64 : i32
    %33 = vector.broadcast %c64_i32_21 : i32 to vector<3x128xi32>
    %34 = arith.cmpi sge, %32, %33 : vector<3x128xi32>
    %c96_i32_22 = arith.constant 96 : i32
    %35 = vector.broadcast %c96_i32_22 : i32 to vector<3x128xi32>
    %36 = arith.cmpi slt, %32, %35 : vector<3x128xi32>
    %37 = arith.andi %34, %36 : vector<3x128xi1>
    %38 = tpu.iota {dimensions = array<i32: 1>} : vector<2x256xi32>
    %c128_i32 = arith.constant 128 : i32
    %39 = vector.broadcast %c128_i32 : i32 to vector<2x256xi32>
    %40 = arith.cmpi sge, %38, %39 : vector<2x256xi32>
    %c192_i32 = arith.constant 192 : i32
    %41 = vector.broadcast %c192_i32 : i32 to vector<2x256xi32>
    %42 = arith.cmpi slt, %38, %41 : vector<2x256xi32>
    %43 = arith.andi %40, %42 : vector<2x256xi1>
    %cst_23 = arith.constant 0.000000e+00 : f32
    %44 = vector.broadcast %cst_23 : f32 to vector<2x32xf32>
    %cst_24 = arith.constant 0.000000e+00 : f32
    %45 = vector.broadcast %cst_24 : f32 to vector<2x32xf32>
    %cst_25 = arith.constant 0.000000e+00 : f32
    %46 = vector.broadcast %cst_25 : f32 to vector<3x32xf32>
    %cst_26 = arith.constant 0.000000e+00 : f32
    %47 = vector.broadcast %cst_26 : f32 to vector<3x32xf32>
    %cst_27 = arith.constant 0.000000e+00 : f32
    %48 = vector.broadcast %cst_27 : f32 to vector<2x32xf32>
    %cst_28 = arith.constant 0.000000e+00 : f32
    %49 = vector.broadcast %cst_28 : f32 to vector<3x32xf32>
    %50 = tpu.concatenate %44, %48 in 1 : vector<2x32xf32>, vector<2x32xf32> -> vector<2x64xf32>
    %51 = tpu.concatenate %49, %46 in 1 : vector<3x32xf32>, vector<3x32xf32> -> vector<3x64xf32>
    %52 = tpu.concatenate %50, %51 in 0 : vector<2x64xf32>, vector<3x64xf32> -> vector<5x64xf32>
    %53 = arith.truncf %52 : vector<5x64xf32> to vector<5x64xbf16>
    %cst_29 = arith.constant dense<0.000000e+00> : vector<5x256xf32>
    %54 = tpu.matmul %53, %24, %cst_29 {dimension_numbers = #tpu.dot_dimension_numbers<[1], [0], [0], [1], [0, 0, 1, 1], [], []>} : vector<5x64xbf16>, vector<64x256xbf16>, vector<5x256xf32> -> vector<5x256xf32>
    %55 = vector.extract_strided_slice %17 {offsets = [0, 0], sizes = [2, 128], strides = [1, 1]} : vector<16x128xf32> to vector<2x128xf32>
    %56 = vector.extract_strided_slice %54 {offsets = [0, 0], sizes = [2, 128], strides = [1, 1]} : vector<5x256xf32> to vector<2x128xf32>
    %57 = arith.addf %55, %56 : vector<2x128xf32>
    %58 = vector.extract_strided_slice %23 {offsets = [0, 0], sizes = [3, 128], strides = [1, 1]} : vector<24x128xf32> to vector<3x128xf32>
    %59 = vector.extract_strided_slice %54 {offsets = [2, 128], sizes = [3, 128], strides = [1, 1]} : vector<5x256xf32> to vector<3x128xf32>
    %60 = arith.addf %58, %59 : vector<3x128xf32>
    %61 = math.tanh %57 : vector<2x128xf32>
    %cst_30 = arith.constant 5.000000e-01 : f32
    %62 = vector.broadcast %cst_30 : f32 to vector<2x128xf32>
    %63 = arith.mulf %62, %61 : vector<2x128xf32>
    %cst_31 = arith.constant 5.000000e-01 : f32
    %64 = vector.broadcast %cst_31 : f32 to vector<2x128xf32>
    %65 = arith.addf %63, %64 : vector<2x128xf32>
    %66 = arith.select %31, %61, %65 : vector<2x128xi1>, vector<2x128xf32>
    %67 = vector.extract_strided_slice %66 {offsets = [0, 0], sizes = [2, 32], strides = [1, 1]} : vector<2x128xf32> to vector<2x32xf32>
    %68 = vector.extract_strided_slice %66 {offsets = [0, 32], sizes = [2, 32], strides = [1, 1]} : vector<2x128xf32> to vector<2x32xf32>
    %69 = vector.extract_strided_slice %66 {offsets = [0, 64], sizes = [2, 32], strides = [1, 1]} : vector<2x128xf32> to vector<2x32xf32>
    %70 = vector.extract_strided_slice %66 {offsets = [0, 96], sizes = [2, 32], strides = [1, 1]} : vector<2x128xf32> to vector<2x32xf32>
    %71 = arith.mulf %68, %45 : vector<2x32xf32>
    %72 = arith.mulf %67, %69 : vector<2x32xf32>
    %73 = arith.addf %71, %72 : vector<2x32xf32>
    %74 = math.tanh %73 : vector<2x32xf32>
    %75 = arith.mulf %70, %74 : vector<2x32xf32>
    %76 = math.tanh %60 : vector<3x128xf32>
    %cst_32 = arith.constant 5.000000e-01 : f32
    %77 = vector.broadcast %cst_32 : f32 to vector<3x128xf32>
    %78 = arith.mulf %77, %76 : vector<3x128xf32>
    %cst_33 = arith.constant 5.000000e-01 : f32
    %79 = vector.broadcast %cst_33 : f32 to vector<3x128xf32>
    %80 = arith.addf %78, %79 : vector<3x128xf32>
    %81 = arith.select %37, %76, %80 : vector<3x128xi1>, vector<3x128xf32>
    %82 = vector.extract_strided_slice %81 {offsets = [0, 0], sizes = [3, 32], strides = [1, 1]} : vector<3x128xf32> to vector<3x32xf32>
    %83 = vector.extract_strided_slice %81 {offsets = [0, 32], sizes = [3, 32], strides = [1, 1]} : vector<3x128xf32> to vector<3x32xf32>
    %84 = vector.extract_strided_slice %81 {offsets = [0, 64], sizes = [3, 32], strides = [1, 1]} : vector<3x128xf32> to vector<3x32xf32>
    %85 = vector.extract_strided_slice %81 {offsets = [0, 96], sizes = [3, 32], strides = [1, 1]} : vector<3x128xf32> to vector<3x32xf32>
    %86 = arith.mulf %83, %47 : vector<3x32xf32>
    %87 = arith.mulf %82, %84 : vector<3x32xf32>
    %88 = arith.addf %86, %87 : vector<3x32xf32>
    %89 = math.tanh %88 : vector<3x32xf32>
    %90 = arith.mulf %85, %89 : vector<3x32xf32>
    %91 = tpu.concatenate %75, %48 in 1 : vector<2x32xf32>, vector<2x32xf32> -> vector<2x64xf32>
    %92 = tpu.concatenate %49, %90 in 1 : vector<3x32xf32>, vector<3x32xf32> -> vector<3x64xf32>
    %93 = tpu.concatenate %91, %92 in 0 : vector<2x64xf32>, vector<3x64xf32> -> vector<5x64xf32>
    %94 = arith.truncf %93 : vector<5x64xf32> to vector<5x64xbf16>
    %cst_34 = arith.constant dense<0.000000e+00> : vector<5x256xf32>
    %95 = tpu.matmul %94, %24, %cst_34 {dimension_numbers = #tpu.dot_dimension_numbers<[1], [0], [0], [1], [0, 0, 1, 1], [], []>} : vector<5x64xbf16>, vector<64x256xbf16>, vector<5x256xf32> -> vector<5x256xf32>
    %96 = vector.extract_strided_slice %17 {offsets = [2, 0], sizes = [2, 128], strides = [1, 1]} : vector<16x128xf32> to vector<2x128xf32>
    %97 = vector.extract_strided_slice %95 {offsets = [0, 0], sizes = [2, 128], strides = [1, 1]} : vector<5x256xf32> to vector<2x128xf32>
    %98 = arith.addf %96, %97 : vector<2x128xf32>
    %99 = vector.extract_strided_slice %23 {offsets = [3, 0], sizes = [3, 128], strides = [1, 1]} : vector<24x128xf32> to vector<3x128xf32>
    %100 = vector.extract_strided_slice %95 {offsets = [2, 128], sizes = [3, 128], strides = [1, 1]} : vector<5x256xf32> to vector<3x128xf32>
    %101 = arith.addf %99, %100 : vector<3x128xf32>
    %102 = math.tanh %98 : vector<2x128xf32>
    %cst_35 = arith.constant 5.000000e-01 : f32
    %103 = vector.broadcast %cst_35 : f32 to vector<2x128xf32>
    %104 = arith.mulf %103, %102 : vector<2x128xf32>
    %cst_36 = arith.constant 5.000000e-01 : f32
    %105 = vector.broadcast %cst_36 : f32 to vector<2x128xf32>
    %106 = arith.addf %104, %105 : vector<2x128xf32>
    %107 = arith.select %31, %102, %106 : vector<2x128xi1>, vector<2x128xf32>
    %108 = vector.extract_strided_slice %107 {offsets = [0, 0], sizes = [2, 32], strides = [1, 1]} : vector<2x128xf32> to vector<2x32xf32>
    %109 = vector.extract_strided_slice %107 {offsets = [0, 32], sizes = [2, 32], strides = [1, 1]} : vector<2x128xf32> to vector<2x32xf32>
    %110 = vector.extract_strided_slice %107 {offsets = [0, 64], sizes = [2, 32], strides = [1, 1]} : vector<2x128xf32> to vector<2x32xf32>
    %111 = vector.extract_strided_slice %107 {offsets = [0, 96], sizes = [2, 32], strides = [1, 1]} : vector<2x128xf32> to vector<2x32xf32>
    %112 = arith.mulf %109, %73 : vector<2x32xf32>
    %113 = arith.mulf %108, %110 : vector<2x32xf32>
    %114 = arith.addf %112, %113 : vector<2x32xf32>
    %115 = math.tanh %114 : vector<2x32xf32>
    %116 = arith.mulf %111, %115 : vector<2x32xf32>
    %117 = math.tanh %101 : vector<3x128xf32>
    %cst_37 = arith.constant 5.000000e-01 : f32
    %118 = vector.broadcast %cst_37 : f32 to vector<3x128xf32>
    %119 = arith.mulf %118, %117 : vector<3x128xf32>
    %cst_38 = arith.constant 5.000000e-01 : f32
    %120 = vector.broadcast %cst_38 : f32 to vector<3x128xf32>
    %121 = arith.addf %119, %120 : vector<3x128xf32>
    %122 = arith.select %37, %117, %121 : vector<3x128xi1>, vector<3x128xf32>
    %123 = vector.extract_strided_slice %122 {offsets = [0, 0], sizes = [3, 32], strides = [1, 1]} : vector<3x128xf32> to vector<3x32xf32>
    %124 = vector.extract_strided_slice %122 {offsets = [0, 32], sizes = [3, 32], strides = [1, 1]} : vector<3x128xf32> to vector<3x32xf32>
    %125 = vector.extract_strided_slice %122 {offsets = [0, 64], sizes = [3, 32], strides = [1, 1]} : vector<3x128xf32> to vector<3x32xf32>
    %126 = vector.extract_strided_slice %122 {offsets = [0, 96], sizes = [3, 32], strides = [1, 1]} : vector<3x128xf32> to vector<3x32xf32>
    %127 = arith.mulf %124, %88 : vector<3x32xf32>
    %128 = arith.mulf %123, %125 : vector<3x32xf32>
    %129 = arith.addf %127, %128 : vector<3x32xf32>
    %130 = math.tanh %129 : vector<3x32xf32>
    %131 = arith.mulf %126, %130 : vector<3x32xf32>
    %132 = tpu.concatenate %116, %48 in 1 : vector<2x32xf32>, vector<2x32xf32> -> vector<2x64xf32>
    %133 = tpu.concatenate %49, %131 in 1 : vector<3x32xf32>, vector<3x32xf32> -> vector<3x64xf32>
    %134 = tpu.concatenate %132, %133 in 0 : vector<2x64xf32>, vector<3x64xf32> -> vector<5x64xf32>
    %135 = arith.truncf %134 : vector<5x64xf32> to vector<5x64xbf16>
    %cst_39 = arith.constant dense<0.000000e+00> : vector<5x256xf32>
    %136 = tpu.matmul %135, %24, %cst_39 {dimension_numbers = #tpu.dot_dimension_numbers<[1], [0], [0], [1], [0, 0, 1, 1], [], []>} : vector<5x64xbf16>, vector<64x256xbf16>, vector<5x256xf32> -> vector<5x256xf32>
    %137 = vector.extract_strided_slice %17 {offsets = [4, 0], sizes = [2, 128], strides = [1, 1]} : vector<16x128xf32> to vector<2x128xf32>
    %138 = vector.extract_strided_slice %136 {offsets = [0, 0], sizes = [2, 128], strides = [1, 1]} : vector<5x256xf32> to vector<2x128xf32>
    %139 = arith.addf %137, %138 : vector<2x128xf32>
    %140 = vector.extract_strided_slice %23 {offsets = [6, 0], sizes = [3, 128], strides = [1, 1]} : vector<24x128xf32> to vector<3x128xf32>
    %141 = vector.extract_strided_slice %136 {offsets = [2, 128], sizes = [3, 128], strides = [1, 1]} : vector<5x256xf32> to vector<3x128xf32>
    %142 = arith.addf %140, %141 : vector<3x128xf32>
    %143 = math.tanh %139 : vector<2x128xf32>
    %cst_40 = arith.constant 5.000000e-01 : f32
    %144 = vector.broadcast %cst_40 : f32 to vector<2x128xf32>
    %145 = arith.mulf %144, %143 : vector<2x128xf32>
    %cst_41 = arith.constant 5.000000e-01 : f32
    %146 = vector.broadcast %cst_41 : f32 to vector<2x128xf32>
    %147 = arith.addf %145, %146 : vector<2x128xf32>
    %148 = arith.select %31, %143, %147 : vector<2x128xi1>, vector<2x128xf32>
    %149 = vector.extract_strided_slice %148 {offsets = [0, 0], sizes = [2, 32], strides = [1, 1]} : vector<2x128xf32> to vector<2x32xf32>
    %150 = vector.extract_strided_slice %148 {offsets = [0, 32], sizes = [2, 32], strides = [1, 1]} : vector<2x128xf32> to vector<2x32xf32>
    %151 = vector.extract_strided_slice %148 {offsets = [0, 64], sizes = [2, 32], strides = [1, 1]} : vector<2x128xf32> to vector<2x32xf32>
    %152 = vector.extract_strided_slice %148 {offsets = [0, 96], sizes = [2, 32], strides = [1, 1]} : vector<2x128xf32> to vector<2x32xf32>
    %153 = arith.mulf %150, %114 : vector<2x32xf32>
    %154 = arith.mulf %149, %151 : vector<2x32xf32>
    %155 = arith.addf %153, %154 : vector<2x32xf32>
    %156 = math.tanh %155 : vector<2x32xf32>
    %157 = arith.mulf %152, %156 : vector<2x32xf32>
    %158 = math.tanh %142 : vector<3x128xf32>
    %cst_42 = arith.constant 5.000000e-01 : f32
    %159 = vector.broadcast %cst_42 : f32 to vector<3x128xf32>
    %160 = arith.mulf %159, %158 : vector<3x128xf32>
    %cst_43 = arith.constant 5.000000e-01 : f32
    %161 = vector.broadcast %cst_43 : f32 to vector<3x128xf32>
    %162 = arith.addf %160, %161 : vector<3x128xf32>
    %163 = arith.select %37, %158, %162 : vector<3x128xi1>, vector<3x128xf32>
    %164 = vector.extract_strided_slice %163 {offsets = [0, 0], sizes = [3, 32], strides = [1, 1]} : vector<3x128xf32> to vector<3x32xf32>
    %165 = vector.extract_strided_slice %163 {offsets = [0, 32], sizes = [3, 32], strides = [1, 1]} : vector<3x128xf32> to vector<3x32xf32>
    %166 = vector.extract_strided_slice %163 {offsets = [0, 64], sizes = [3, 32], strides = [1, 1]} : vector<3x128xf32> to vector<3x32xf32>
    %167 = vector.extract_strided_slice %163 {offsets = [0, 96], sizes = [3, 32], strides = [1, 1]} : vector<3x128xf32> to vector<3x32xf32>
    %168 = arith.mulf %165, %129 : vector<3x32xf32>
    %169 = arith.mulf %164, %166 : vector<3x32xf32>
    %170 = arith.addf %168, %169 : vector<3x32xf32>
    %171 = math.tanh %170 : vector<3x32xf32>
    %172 = arith.mulf %167, %171 : vector<3x32xf32>
    %173 = tpu.concatenate %157, %48 in 1 : vector<2x32xf32>, vector<2x32xf32> -> vector<2x64xf32>
    %174 = tpu.concatenate %49, %172 in 1 : vector<3x32xf32>, vector<3x32xf32> -> vector<3x64xf32>
    %175 = tpu.concatenate %173, %174 in 0 : vector<2x64xf32>, vector<3x64xf32> -> vector<5x64xf32>
    %176 = arith.truncf %175 : vector<5x64xf32> to vector<5x64xbf16>
    %cst_44 = arith.constant dense<0.000000e+00> : vector<5x256xf32>
    %177 = tpu.matmul %176, %24, %cst_44 {dimension_numbers = #tpu.dot_dimension_numbers<[1], [0], [0], [1], [0, 0, 1, 1], [], []>} : vector<5x64xbf16>, vector<64x256xbf16>, vector<5x256xf32> -> vector<5x256xf32>
    %178 = vector.extract_strided_slice %17 {offsets = [6, 0], sizes = [2, 128], strides = [1, 1]} : vector<16x128xf32> to vector<2x128xf32>
    %179 = vector.extract_strided_slice %177 {offsets = [0, 0], sizes = [2, 128], strides = [1, 1]} : vector<5x256xf32> to vector<2x128xf32>
    %180 = arith.addf %178, %179 : vector<2x128xf32>
    %181 = vector.extract_strided_slice %23 {offsets = [9, 0], sizes = [3, 128], strides = [1, 1]} : vector<24x128xf32> to vector<3x128xf32>
    %182 = vector.extract_strided_slice %177 {offsets = [2, 128], sizes = [3, 128], strides = [1, 1]} : vector<5x256xf32> to vector<3x128xf32>
    %183 = arith.addf %181, %182 : vector<3x128xf32>
    %184 = math.tanh %180 : vector<2x128xf32>
    %cst_45 = arith.constant 5.000000e-01 : f32
    %185 = vector.broadcast %cst_45 : f32 to vector<2x128xf32>
    %186 = arith.mulf %185, %184 : vector<2x128xf32>
    %cst_46 = arith.constant 5.000000e-01 : f32
    %187 = vector.broadcast %cst_46 : f32 to vector<2x128xf32>
    %188 = arith.addf %186, %187 : vector<2x128xf32>
    %189 = arith.select %31, %184, %188 : vector<2x128xi1>, vector<2x128xf32>
    %190 = vector.extract_strided_slice %189 {offsets = [0, 0], sizes = [2, 32], strides = [1, 1]} : vector<2x128xf32> to vector<2x32xf32>
    %191 = vector.extract_strided_slice %189 {offsets = [0, 32], sizes = [2, 32], strides = [1, 1]} : vector<2x128xf32> to vector<2x32xf32>
    %192 = vector.extract_strided_slice %189 {offsets = [0, 64], sizes = [2, 32], strides = [1, 1]} : vector<2x128xf32> to vector<2x32xf32>
    %193 = vector.extract_strided_slice %189 {offsets = [0, 96], sizes = [2, 32], strides = [1, 1]} : vector<2x128xf32> to vector<2x32xf32>
    %194 = arith.mulf %191, %155 : vector<2x32xf32>
    %195 = arith.mulf %190, %192 : vector<2x32xf32>
    %196 = arith.addf %194, %195 : vector<2x32xf32>
    %197 = math.tanh %196 : vector<2x32xf32>
    %198 = arith.mulf %193, %197 : vector<2x32xf32>
    %199 = math.tanh %183 : vector<3x128xf32>
    %cst_47 = arith.constant 5.000000e-01 : f32
    %200 = vector.broadcast %cst_47 : f32 to vector<3x128xf32>
    %201 = arith.mulf %200, %199 : vector<3x128xf32>
    %cst_48 = arith.constant 5.000000e-01 : f32
    %202 = vector.broadcast %cst_48 : f32 to vector<3x128xf32>
    %203 = arith.addf %201, %202 : vector<3x128xf32>
    %204 = arith.select %37, %199, %203 : vector<3x128xi1>, vector<3x128xf32>
    %205 = vector.extract_strided_slice %204 {offsets = [0, 0], sizes = [3, 32], strides = [1, 1]} : vector<3x128xf32> to vector<3x32xf32>
    %206 = vector.extract_strided_slice %204 {offsets = [0, 32], sizes = [3, 32], strides = [1, 1]} : vector<3x128xf32> to vector<3x32xf32>
    %207 = vector.extract_strided_slice %204 {offsets = [0, 64], sizes = [3, 32], strides = [1, 1]} : vector<3x128xf32> to vector<3x32xf32>
    %208 = vector.extract_strided_slice %204 {offsets = [0, 96], sizes = [3, 32], strides = [1, 1]} : vector<3x128xf32> to vector<3x32xf32>
    %209 = arith.mulf %206, %170 : vector<3x32xf32>
    %210 = arith.mulf %205, %207 : vector<3x32xf32>
    %211 = arith.addf %209, %210 : vector<3x32xf32>
    %212 = math.tanh %211 : vector<3x32xf32>
    %213 = arith.mulf %208, %212 : vector<3x32xf32>
    %214 = tpu.concatenate %198, %48 in 1 : vector<2x32xf32>, vector<2x32xf32> -> vector<2x64xf32>
    %215 = tpu.concatenate %49, %213 in 1 : vector<3x32xf32>, vector<3x32xf32> -> vector<3x64xf32>
    %216 = tpu.concatenate %214, %215 in 0 : vector<2x64xf32>, vector<3x64xf32> -> vector<5x64xf32>
    %217 = arith.truncf %216 : vector<5x64xf32> to vector<5x64xbf16>
    %cst_49 = arith.constant dense<0.000000e+00> : vector<5x256xf32>
    %218 = tpu.matmul %217, %24, %cst_49 {dimension_numbers = #tpu.dot_dimension_numbers<[1], [0], [0], [1], [0, 0, 1, 1], [], []>} : vector<5x64xbf16>, vector<64x256xbf16>, vector<5x256xf32> -> vector<5x256xf32>
    %219 = vector.extract_strided_slice %17 {offsets = [8, 0], sizes = [2, 128], strides = [1, 1]} : vector<16x128xf32> to vector<2x128xf32>
    %220 = vector.extract_strided_slice %218 {offsets = [0, 0], sizes = [2, 128], strides = [1, 1]} : vector<5x256xf32> to vector<2x128xf32>
    %221 = arith.addf %219, %220 : vector<2x128xf32>
    %222 = vector.extract_strided_slice %23 {offsets = [12, 0], sizes = [3, 128], strides = [1, 1]} : vector<24x128xf32> to vector<3x128xf32>
    %223 = vector.extract_strided_slice %218 {offsets = [2, 128], sizes = [3, 128], strides = [1, 1]} : vector<5x256xf32> to vector<3x128xf32>
    %224 = arith.addf %222, %223 : vector<3x128xf32>
    %225 = math.tanh %221 : vector<2x128xf32>
    %cst_50 = arith.constant 5.000000e-01 : f32
    %226 = vector.broadcast %cst_50 : f32 to vector<2x128xf32>
    %227 = arith.mulf %226, %225 : vector<2x128xf32>
    %cst_51 = arith.constant 5.000000e-01 : f32
    %228 = vector.broadcast %cst_51 : f32 to vector<2x128xf32>
    %229 = arith.addf %227, %228 : vector<2x128xf32>
    %230 = arith.select %31, %225, %229 : vector<2x128xi1>, vector<2x128xf32>
    %231 = vector.extract_strided_slice %230 {offsets = [0, 0], sizes = [2, 32], strides = [1, 1]} : vector<2x128xf32> to vector<2x32xf32>
    %232 = vector.extract_strided_slice %230 {offsets = [0, 32], sizes = [2, 32], strides = [1, 1]} : vector<2x128xf32> to vector<2x32xf32>
    %233 = vector.extract_strided_slice %230 {offsets = [0, 64], sizes = [2, 32], strides = [1, 1]} : vector<2x128xf32> to vector<2x32xf32>
    %234 = vector.extract_strided_slice %230 {offsets = [0, 96], sizes = [2, 32], strides = [1, 1]} : vector<2x128xf32> to vector<2x32xf32>
    %235 = arith.mulf %232, %196 : vector<2x32xf32>
    %236 = arith.mulf %231, %233 : vector<2x32xf32>
    %237 = arith.addf %235, %236 : vector<2x32xf32>
    %238 = math.tanh %237 : vector<2x32xf32>
    %239 = arith.mulf %234, %238 : vector<2x32xf32>
    %240 = math.tanh %224 : vector<3x128xf32>
    %cst_52 = arith.constant 5.000000e-01 : f32
    %241 = vector.broadcast %cst_52 : f32 to vector<3x128xf32>
    %242 = arith.mulf %241, %240 : vector<3x128xf32>
    %cst_53 = arith.constant 5.000000e-01 : f32
    %243 = vector.broadcast %cst_53 : f32 to vector<3x128xf32>
    %244 = arith.addf %242, %243 : vector<3x128xf32>
    %245 = arith.select %37, %240, %244 : vector<3x128xi1>, vector<3x128xf32>
    %246 = vector.extract_strided_slice %245 {offsets = [0, 0], sizes = [3, 32], strides = [1, 1]} : vector<3x128xf32> to vector<3x32xf32>
    %247 = vector.extract_strided_slice %245 {offsets = [0, 32], sizes = [3, 32], strides = [1, 1]} : vector<3x128xf32> to vector<3x32xf32>
    %248 = vector.extract_strided_slice %245 {offsets = [0, 64], sizes = [3, 32], strides = [1, 1]} : vector<3x128xf32> to vector<3x32xf32>
    %249 = vector.extract_strided_slice %245 {offsets = [0, 96], sizes = [3, 32], strides = [1, 1]} : vector<3x128xf32> to vector<3x32xf32>
    %250 = arith.mulf %247, %211 : vector<3x32xf32>
    %251 = arith.mulf %246, %248 : vector<3x32xf32>
    %252 = arith.addf %250, %251 : vector<3x32xf32>
    %253 = math.tanh %252 : vector<3x32xf32>
    %254 = arith.mulf %249, %253 : vector<3x32xf32>
    %255 = tpu.concatenate %239, %48 in 1 : vector<2x32xf32>, vector<2x32xf32> -> vector<2x64xf32>
    %256 = tpu.concatenate %49, %254 in 1 : vector<3x32xf32>, vector<3x32xf32> -> vector<3x64xf32>
    %257 = tpu.concatenate %255, %256 in 0 : vector<2x64xf32>, vector<3x64xf32> -> vector<5x64xf32>
    %258 = arith.truncf %257 : vector<5x64xf32> to vector<5x64xbf16>
    %cst_54 = arith.constant dense<0.000000e+00> : vector<5x256xf32>
    %259 = tpu.matmul %258, %24, %cst_54 {dimension_numbers = #tpu.dot_dimension_numbers<[1], [0], [0], [1], [0, 0, 1, 1], [], []>} : vector<5x64xbf16>, vector<64x256xbf16>, vector<5x256xf32> -> vector<5x256xf32>
    %260 = vector.extract_strided_slice %17 {offsets = [10, 0], sizes = [2, 128], strides = [1, 1]} : vector<16x128xf32> to vector<2x128xf32>
    %261 = vector.extract_strided_slice %259 {offsets = [0, 0], sizes = [2, 128], strides = [1, 1]} : vector<5x256xf32> to vector<2x128xf32>
    %262 = arith.addf %260, %261 : vector<2x128xf32>
    %263 = vector.extract_strided_slice %23 {offsets = [15, 0], sizes = [3, 128], strides = [1, 1]} : vector<24x128xf32> to vector<3x128xf32>
    %264 = vector.extract_strided_slice %259 {offsets = [2, 128], sizes = [3, 128], strides = [1, 1]} : vector<5x256xf32> to vector<3x128xf32>
    %265 = arith.addf %263, %264 : vector<3x128xf32>
    %266 = math.tanh %262 : vector<2x128xf32>
    %cst_55 = arith.constant 5.000000e-01 : f32
    %267 = vector.broadcast %cst_55 : f32 to vector<2x128xf32>
    %268 = arith.mulf %267, %266 : vector<2x128xf32>
    %cst_56 = arith.constant 5.000000e-01 : f32
    %269 = vector.broadcast %cst_56 : f32 to vector<2x128xf32>
    %270 = arith.addf %268, %269 : vector<2x128xf32>
    %271 = arith.select %31, %266, %270 : vector<2x128xi1>, vector<2x128xf32>
    %272 = vector.extract_strided_slice %271 {offsets = [0, 0], sizes = [2, 32], strides = [1, 1]} : vector<2x128xf32> to vector<2x32xf32>
    %273 = vector.extract_strided_slice %271 {offsets = [0, 32], sizes = [2, 32], strides = [1, 1]} : vector<2x128xf32> to vector<2x32xf32>
    %274 = vector.extract_strided_slice %271 {offsets = [0, 64], sizes = [2, 32], strides = [1, 1]} : vector<2x128xf32> to vector<2x32xf32>
    %275 = vector.extract_strided_slice %271 {offsets = [0, 96], sizes = [2, 32], strides = [1, 1]} : vector<2x128xf32> to vector<2x32xf32>
    %276 = arith.mulf %273, %237 : vector<2x32xf32>
    %277 = arith.mulf %272, %274 : vector<2x32xf32>
    %278 = arith.addf %276, %277 : vector<2x32xf32>
    %279 = math.tanh %278 : vector<2x32xf32>
    %280 = arith.mulf %275, %279 : vector<2x32xf32>
    %281 = math.tanh %265 : vector<3x128xf32>
    %cst_57 = arith.constant 5.000000e-01 : f32
    %282 = vector.broadcast %cst_57 : f32 to vector<3x128xf32>
    %283 = arith.mulf %282, %281 : vector<3x128xf32>
    %cst_58 = arith.constant 5.000000e-01 : f32
    %284 = vector.broadcast %cst_58 : f32 to vector<3x128xf32>
    %285 = arith.addf %283, %284 : vector<3x128xf32>
    %286 = arith.select %37, %281, %285 : vector<3x128xi1>, vector<3x128xf32>
    %287 = vector.extract_strided_slice %286 {offsets = [0, 0], sizes = [3, 32], strides = [1, 1]} : vector<3x128xf32> to vector<3x32xf32>
    %288 = vector.extract_strided_slice %286 {offsets = [0, 32], sizes = [3, 32], strides = [1, 1]} : vector<3x128xf32> to vector<3x32xf32>
    %289 = vector.extract_strided_slice %286 {offsets = [0, 64], sizes = [3, 32], strides = [1, 1]} : vector<3x128xf32> to vector<3x32xf32>
    %290 = vector.extract_strided_slice %286 {offsets = [0, 96], sizes = [3, 32], strides = [1, 1]} : vector<3x128xf32> to vector<3x32xf32>
    %291 = arith.mulf %288, %252 : vector<3x32xf32>
    %292 = arith.mulf %287, %289 : vector<3x32xf32>
    %293 = arith.addf %291, %292 : vector<3x32xf32>
    %294 = math.tanh %293 : vector<3x32xf32>
    %295 = arith.mulf %290, %294 : vector<3x32xf32>
    %296 = tpu.concatenate %280, %48 in 1 : vector<2x32xf32>, vector<2x32xf32> -> vector<2x64xf32>
    %297 = tpu.concatenate %49, %295 in 1 : vector<3x32xf32>, vector<3x32xf32> -> vector<3x64xf32>
    %298 = tpu.concatenate %296, %297 in 0 : vector<2x64xf32>, vector<3x64xf32> -> vector<5x64xf32>
    %299 = arith.truncf %298 : vector<5x64xf32> to vector<5x64xbf16>
    %cst_59 = arith.constant dense<0.000000e+00> : vector<5x256xf32>
    %300 = tpu.matmul %299, %24, %cst_59 {dimension_numbers = #tpu.dot_dimension_numbers<[1], [0], [0], [1], [0, 0, 1, 1], [], []>} : vector<5x64xbf16>, vector<64x256xbf16>, vector<5x256xf32> -> vector<5x256xf32>
    %301 = vector.extract_strided_slice %17 {offsets = [12, 0], sizes = [2, 128], strides = [1, 1]} : vector<16x128xf32> to vector<2x128xf32>
    %302 = vector.extract_strided_slice %300 {offsets = [0, 0], sizes = [2, 128], strides = [1, 1]} : vector<5x256xf32> to vector<2x128xf32>
    %303 = arith.addf %301, %302 : vector<2x128xf32>
    %304 = vector.extract_strided_slice %23 {offsets = [18, 0], sizes = [3, 128], strides = [1, 1]} : vector<24x128xf32> to vector<3x128xf32>
    %305 = vector.extract_strided_slice %300 {offsets = [2, 128], sizes = [3, 128], strides = [1, 1]} : vector<5x256xf32> to vector<3x128xf32>
    %306 = arith.addf %304, %305 : vector<3x128xf32>
    %307 = math.tanh %303 : vector<2x128xf32>
    %cst_60 = arith.constant 5.000000e-01 : f32
    %308 = vector.broadcast %cst_60 : f32 to vector<2x128xf32>
    %309 = arith.mulf %308, %307 : vector<2x128xf32>
    %cst_61 = arith.constant 5.000000e-01 : f32
    %310 = vector.broadcast %cst_61 : f32 to vector<2x128xf32>
    %311 = arith.addf %309, %310 : vector<2x128xf32>
    %312 = arith.select %31, %307, %311 : vector<2x128xi1>, vector<2x128xf32>
    %313 = vector.extract_strided_slice %312 {offsets = [0, 0], sizes = [2, 32], strides = [1, 1]} : vector<2x128xf32> to vector<2x32xf32>
    %314 = vector.extract_strided_slice %312 {offsets = [0, 32], sizes = [2, 32], strides = [1, 1]} : vector<2x128xf32> to vector<2x32xf32>
    %315 = vector.extract_strided_slice %312 {offsets = [0, 64], sizes = [2, 32], strides = [1, 1]} : vector<2x128xf32> to vector<2x32xf32>
    %316 = vector.extract_strided_slice %312 {offsets = [0, 96], sizes = [2, 32], strides = [1, 1]} : vector<2x128xf32> to vector<2x32xf32>
    %317 = arith.mulf %314, %278 : vector<2x32xf32>
    %318 = arith.mulf %313, %315 : vector<2x32xf32>
    %319 = arith.addf %317, %318 : vector<2x32xf32>
    %320 = math.tanh %319 : vector<2x32xf32>
    %321 = arith.mulf %316, %320 : vector<2x32xf32>
    %322 = math.tanh %306 : vector<3x128xf32>
    %cst_62 = arith.constant 5.000000e-01 : f32
    %323 = vector.broadcast %cst_62 : f32 to vector<3x128xf32>
    %324 = arith.mulf %323, %322 : vector<3x128xf32>
    %cst_63 = arith.constant 5.000000e-01 : f32
    %325 = vector.broadcast %cst_63 : f32 to vector<3x128xf32>
    %326 = arith.addf %324, %325 : vector<3x128xf32>
    %327 = arith.select %37, %322, %326 : vector<3x128xi1>, vector<3x128xf32>
    %328 = vector.extract_strided_slice %327 {offsets = [0, 0], sizes = [3, 32], strides = [1, 1]} : vector<3x128xf32> to vector<3x32xf32>
    %329 = vector.extract_strided_slice %327 {offsets = [0, 32], sizes = [3, 32], strides = [1, 1]} : vector<3x128xf32> to vector<3x32xf32>
    %330 = vector.extract_strided_slice %327 {offsets = [0, 64], sizes = [3, 32], strides = [1, 1]} : vector<3x128xf32> to vector<3x32xf32>
    %331 = vector.extract_strided_slice %327 {offsets = [0, 96], sizes = [3, 32], strides = [1, 1]} : vector<3x128xf32> to vector<3x32xf32>
    %332 = arith.mulf %329, %293 : vector<3x32xf32>
    %333 = arith.mulf %328, %330 : vector<3x32xf32>
    %334 = arith.addf %332, %333 : vector<3x32xf32>
    %335 = math.tanh %334 : vector<3x32xf32>
    %336 = arith.mulf %331, %335 : vector<3x32xf32>
    %337 = tpu.concatenate %321, %48 in 1 : vector<2x32xf32>, vector<2x32xf32> -> vector<2x64xf32>
    %338 = tpu.concatenate %49, %336 in 1 : vector<3x32xf32>, vector<3x32xf32> -> vector<3x64xf32>
    %339 = tpu.concatenate %337, %338 in 0 : vector<2x64xf32>, vector<3x64xf32> -> vector<5x64xf32>
    %340 = arith.truncf %339 : vector<5x64xf32> to vector<5x64xbf16>
    %cst_64 = arith.constant dense<0.000000e+00> : vector<5x256xf32>
    %341 = tpu.matmul %340, %24, %cst_64 {dimension_numbers = #tpu.dot_dimension_numbers<[1], [0], [0], [1], [0, 0, 1, 1], [], []>} : vector<5x64xbf16>, vector<64x256xbf16>, vector<5x256xf32> -> vector<5x256xf32>
    %342 = vector.extract_strided_slice %17 {offsets = [14, 0], sizes = [2, 128], strides = [1, 1]} : vector<16x128xf32> to vector<2x128xf32>
    %343 = vector.extract_strided_slice %341 {offsets = [0, 0], sizes = [2, 128], strides = [1, 1]} : vector<5x256xf32> to vector<2x128xf32>
    %344 = arith.addf %342, %343 : vector<2x128xf32>
    %345 = vector.extract_strided_slice %23 {offsets = [21, 0], sizes = [3, 128], strides = [1, 1]} : vector<24x128xf32> to vector<3x128xf32>
    %346 = vector.extract_strided_slice %341 {offsets = [2, 128], sizes = [3, 128], strides = [1, 1]} : vector<5x256xf32> to vector<3x128xf32>
    %347 = arith.addf %345, %346 : vector<3x128xf32>
    %348 = math.tanh %344 : vector<2x128xf32>
    %cst_65 = arith.constant 5.000000e-01 : f32
    %349 = vector.broadcast %cst_65 : f32 to vector<2x128xf32>
    %350 = arith.mulf %349, %348 : vector<2x128xf32>
    %cst_66 = arith.constant 5.000000e-01 : f32
    %351 = vector.broadcast %cst_66 : f32 to vector<2x128xf32>
    %352 = arith.addf %350, %351 : vector<2x128xf32>
    %353 = arith.select %31, %348, %352 : vector<2x128xi1>, vector<2x128xf32>
    %354 = vector.extract_strided_slice %353 {offsets = [0, 0], sizes = [2, 32], strides = [1, 1]} : vector<2x128xf32> to vector<2x32xf32>
    %355 = vector.extract_strided_slice %353 {offsets = [0, 32], sizes = [2, 32], strides = [1, 1]} : vector<2x128xf32> to vector<2x32xf32>
    %356 = vector.extract_strided_slice %353 {offsets = [0, 64], sizes = [2, 32], strides = [1, 1]} : vector<2x128xf32> to vector<2x32xf32>
    %357 = vector.extract_strided_slice %353 {offsets = [0, 96], sizes = [2, 32], strides = [1, 1]} : vector<2x128xf32> to vector<2x32xf32>
    %358 = arith.mulf %355, %319 : vector<2x32xf32>
    %359 = arith.mulf %354, %356 : vector<2x32xf32>
    %360 = arith.addf %358, %359 : vector<2x32xf32>
    %361 = math.tanh %360 : vector<2x32xf32>
    %362 = arith.mulf %357, %361 : vector<2x32xf32>
    %363 = math.tanh %347 : vector<3x128xf32>
    %cst_67 = arith.constant 5.000000e-01 : f32
    %364 = vector.broadcast %cst_67 : f32 to vector<3x128xf32>
    %365 = arith.mulf %364, %363 : vector<3x128xf32>
    %cst_68 = arith.constant 5.000000e-01 : f32
    %366 = vector.broadcast %cst_68 : f32 to vector<3x128xf32>
    %367 = arith.addf %365, %366 : vector<3x128xf32>
    %368 = arith.select %37, %363, %367 : vector<3x128xi1>, vector<3x128xf32>
    %369 = vector.extract_strided_slice %368 {offsets = [0, 0], sizes = [3, 32], strides = [1, 1]} : vector<3x128xf32> to vector<3x32xf32>
    %370 = vector.extract_strided_slice %368 {offsets = [0, 32], sizes = [3, 32], strides = [1, 1]} : vector<3x128xf32> to vector<3x32xf32>
    %371 = vector.extract_strided_slice %368 {offsets = [0, 64], sizes = [3, 32], strides = [1, 1]} : vector<3x128xf32> to vector<3x32xf32>
    %372 = vector.extract_strided_slice %368 {offsets = [0, 96], sizes = [3, 32], strides = [1, 1]} : vector<3x128xf32> to vector<3x32xf32>
    %373 = arith.mulf %370, %334 : vector<3x32xf32>
    %374 = arith.mulf %369, %371 : vector<3x32xf32>
    %375 = arith.addf %373, %374 : vector<3x32xf32>
    %376 = math.tanh %375 : vector<3x32xf32>
    %377 = arith.mulf %372, %376 : vector<3x32xf32>
    %c0_69 = arith.constant 0 : index
    %c0_70 = arith.constant 0 : index
    %378 = vector.load %arg1[%c0_69, %c0_70] : memref<2x16xi32, #tpu.memory_space<vmem>>, vector<2x16xi32>
    %379 = vector.shape_cast %378 : vector<2x16xi32> to vector<2x16x1xi32>
    %380 = tpu.iota {dimensions = array<i32: 2>} : vector<2x16x3xi32>
    %381 = vector.broadcast %379 : vector<2x16x1xi32> to vector<2x16x3xi32>
    %382 = arith.cmpi eq, %381, %380 : vector<2x16x3xi32>
    %cst_71 = arith.constant 1.000000e+00 : f32
    %cst_72 = arith.constant 0.000000e+00 : f32
    %383 = vector.broadcast %cst_71 : f32 to vector<2x16x3xf32>
    %384 = vector.broadcast %cst_72 : f32 to vector<2x16x3xf32>
    %385 = arith.select %382, %383, %384 : vector<2x16x3xi1>, vector<2x16x3xf32>
    %386 = vector.shape_cast %385 : vector<2x16x3xf32> to vector<32x3xf32>
    %cst_73 = arith.constant dense<0.000000e+00> : vector<32x32xf32>
    %387 = tpu.matmul %386, %377, %cst_73 {dimension_numbers = #tpu.dot_dimension_numbers<[1], [0], [0], [1], [0, 0, 1, 1], [], []>} : vector<32x3xf32>, vector<3x32xf32>, vector<32x32xf32> -> vector<32x32xf32>
    %388 = vector.shape_cast %387 : vector<32x32xf32> to vector<2x16x32xf32>
    %389 = tpu.iota {dimensions = array<i32: 1>} : vector<2x16x1xi32>
    %c15_i32 = arith.constant 15 : i32
    %390 = vector.broadcast %c15_i32 : i32 to vector<2x16x1xi32>
    %391 = arith.cmpi eq, %389, %390 : vector<2x16x1xi32>
    %392 = vector.shape_cast %362 : vector<2x32xf32> to vector<2x1x32xf32>
    %cst_74 = arith.constant 0.000000e+00 : f32
    %393 = vector.shape_cast %391 : vector<2x16x1xi1> to vector<2x16x1xi1>
    %394 = vector.broadcast %393 : vector<2x16x1xi1> to vector<2x16x32xi1>
    %395 = vector.shape_cast %392 : vector<2x1x32xf32> to vector<2x1x32xf32>
    %396 = vector.broadcast %395 : vector<2x1x32xf32> to vector<2x16x32xf32>
    %397 = vector.broadcast %cst_74 : f32 to vector<2x16x32xf32>
    %398 = arith.select %394, %396, %397 : vector<2x16x32xi1>, vector<2x16x32xf32>
    %399 = arith.addf %388, %398 : vector<2x16x32xf32>
    %400 = math.tanh %399 : vector<2x16x32xf32>
    %c0_75 = arith.constant 0 : index
    %c0_76 = arith.constant 0 : index
    %401 = vector.load %arg9[%c0_75, %c0_76] : memref<1x32xf32, #tpu.memory_space<vmem>>, vector<1x32xf32>
    %402 = vector.shape_cast %401 : vector<1x32xf32> to vector<1x1x32xf32>
    %403 = vector.broadcast %402 : vector<1x1x32xf32> to vector<2x16x32xf32>
    %404 = arith.mulf %400, %403 : vector<2x16x32xf32>
    %cst_77 = arith.constant dense<0.000000e+00> : vector<2x16xf32>
    %405 = vector.multi_reduction <add>, %404, %cst_77 [2] : vector<2x16x32xf32> to vector<2x16xf32>
    %c0_78 = arith.constant 0 : index
    %c0_79 = arith.constant 0 : index
    %406 = vector.load %arg10[%c0_78, %c0_79] : memref<1x1xf32, #tpu.memory_space<vmem>>, vector<1x1xf32>
    %407 = vector.broadcast %406 : vector<1x1xf32> to vector<2x16xf32>
    %408 = arith.addf %405, %407 : vector<2x16xf32>
    %cst_80 = arith.constant dense<0xFF800000> : vector<2xf32>
    %409 = vector.multi_reduction <maximumf>, %408, %cst_80 [1] : vector<2x16xf32> to vector<2xf32>
    %410 = vector.shape_cast %409 : vector<2xf32> to vector<2x1xf32>
    %411 = vector.broadcast %410 : vector<2x1xf32> to vector<2x16xf32>
    %412 = arith.subf %408, %411 : vector<2x16xf32>
    %413 = math.exp %412 : vector<2x16xf32>
    %cst_81 = arith.constant dense<0.000000e+00> : vector<2xf32>
    %414 = vector.multi_reduction <add>, %413, %cst_81 [1] : vector<2x16xf32> to vector<2xf32>
    %415 = vector.shape_cast %414 : vector<2xf32> to vector<2x1xf32>
    %416 = tpu.reciprocal %415 {approx = true} : vector<2x1xf32> -> vector<2x1xf32>
    %417 = vector.broadcast %416 : vector<2x1xf32> to vector<2x16xf32>
    %418 = arith.mulf %413, %417 : vector<2x16xf32>
    %419 = vector.shape_cast %418 : vector<2x16xf32> to vector<2x16x1xf32>
    %420 = vector.broadcast %419 : vector<2x16x1xf32> to vector<2x16x32xf32>
    %421 = arith.mulf %399, %420 : vector<2x16x32xf32>
    %cst_82 = arith.constant dense<0.000000e+00> : vector<2x32xf32>
    %422 = vector.multi_reduction <add>, %421, %cst_82 [1] : vector<2x16x32xf32> to vector<2x32xf32>
    %cst_83 = arith.constant 0.000000e+00 : f32
    %423 = vector.broadcast %cst_83 : f32 to vector<2x32xf32>
    %424 = arith.maximumf %422, %423 : vector<2x32xf32>
    %c0_84 = arith.constant 0 : index
    %c0_85 = arith.constant 0 : index
    %425 = vector.load %arg17[%c0_84, %c0_85] : memref<2x16xf32, #tpu.memory_space<vmem>>, vector<2x16xf32>
    tpu.vector_store %arg17[%c0_84, %c0_85], %418 {strides = array<i32>} : memref<2x16xf32, #tpu.memory_space<vmem>>, vector<2x16xf32>,
    %426 = arith.truncf %424 : vector<2x32xf32> to vector<2x32xbf16>
    %c0_86 = arith.constant 0 : index
    %c0_87 = arith.constant 0 : index
    %427 = vector.load %arg11[%c0_86, %c0_87] : memref<32x256xbf16, #tpu.memory_space<vmem>>, vector<32x256xbf16>
    %cst_88 = arith.constant dense<0.000000e+00> : vector<2x256xf32>
    %428 = tpu.matmul %426, %427, %cst_88 {dimension_numbers = #tpu.dot_dimension_numbers<[1], [0], [0], [1], [0, 0, 1, 1], [], []>} : vector<2x32xbf16>, vector<32x256xbf16>, vector<2x256xf32> -> vector<2x256xf32>
    %c0_89 = arith.constant 0 : index
    %c0_90 = arith.constant 0 : index
    %429 = vector.load %arg13[%c0_89, %c0_90] : memref<1x256xf32, #tpu.memory_space<vmem>>, vector<1x256xf32>
    %430 = vector.broadcast %429 : vector<1x256xf32> to vector<2x256xf32>
    %431 = arith.addf %428, %430 : vector<2x256xf32>
    %cst_91 = arith.constant 0.000000e+00 : f32
    %432 = vector.broadcast %cst_91 : f32 to vector<2x64xf32>
    %cst_92 = arith.constant 0.000000e+00 : f32
    %433 = vector.broadcast %cst_92 : f32 to vector<2x64xf32>
    %434 = arith.truncf %432 : vector<2x64xf32> to vector<2x64xbf16>
    %cst_93 = arith.constant dense<0.000000e+00> : vector<2x256xf32>
    %435 = tpu.matmul %434, %25, %cst_93 {dimension_numbers = #tpu.dot_dimension_numbers<[1], [0], [0], [1], [0, 0, 1, 1], [], []>} : vector<2x64xbf16>, vector<64x256xbf16>, vector<2x256xf32> -> vector<2x256xf32>
    %436 = arith.addf %431, %435 : vector<2x256xf32>
    %437 = math.tanh %436 : vector<2x256xf32>
    %cst_94 = arith.constant 5.000000e-01 : f32
    %438 = vector.broadcast %cst_94 : f32 to vector<2x256xf32>
    %439 = arith.mulf %438, %437 : vector<2x256xf32>
    %cst_95 = arith.constant 5.000000e-01 : f32
    %440 = vector.broadcast %cst_95 : f32 to vector<2x256xf32>
    %441 = arith.addf %439, %440 : vector<2x256xf32>
    %442 = arith.select %43, %437, %441 : vector<2x256xi1>, vector<2x256xf32>
    %443 = vector.extract_strided_slice %442 {offsets = [0, 0], sizes = [2, 64], strides = [1, 1]} : vector<2x256xf32> to vector<2x64xf32>
    %444 = vector.extract_strided_slice %442 {offsets = [0, 64], sizes = [2, 64], strides = [1, 1]} : vector<2x256xf32> to vector<2x64xf32>
    %445 = vector.extract_strided_slice %442 {offsets = [0, 128], sizes = [2, 64], strides = [1, 1]} : vector<2x256xf32> to vector<2x64xf32>
    %446 = vector.extract_strided_slice %442 {offsets = [0, 192], sizes = [2, 64], strides = [1, 1]} : vector<2x256xf32> to vector<2x64xf32>
    %447 = arith.mulf %444, %433 : vector<2x64xf32>
    %448 = arith.mulf %443, %445 : vector<2x64xf32>
    %449 = arith.addf %447, %448 : vector<2x64xf32>
    %450 = math.tanh %449 : vector<2x64xf32>
    %451 = arith.mulf %446, %450 : vector<2x64xf32>
    %452 = arith.truncf %451 : vector<2x64xf32> to vector<2x64xbf16>
    %cst_96 = arith.constant dense<0.000000e+00> : vector<2x256xf32>
    %453 = tpu.matmul %452, %25, %cst_96 {dimension_numbers = #tpu.dot_dimension_numbers<[1], [0], [0], [1], [0, 0, 1, 1], [], []>} : vector<2x64xbf16>, vector<64x256xbf16>, vector<2x256xf32> -> vector<2x256xf32>
    %454 = arith.addf %431, %453 : vector<2x256xf32>
    %455 = math.tanh %454 : vector<2x256xf32>
    %cst_97 = arith.constant 5.000000e-01 : f32
    %456 = vector.broadcast %cst_97 : f32 to vector<2x256xf32>
    %457 = arith.mulf %456, %455 : vector<2x256xf32>
    %cst_98 = arith.constant 5.000000e-01 : f32
    %458 = vector.broadcast %cst_98 : f32 to vector<2x256xf32>
    %459 = arith.addf %457, %458 : vector<2x256xf32>
    %460 = arith.select %43, %455, %459 : vector<2x256xi1>, vector<2x256xf32>
    %461 = vector.extract_strided_slice %460 {offsets = [0, 0], sizes = [2, 64], strides = [1, 1]} : vector<2x256xf32> to vector<2x64xf32>
    %462 = vector.extract_strided_slice %460 {offsets = [0, 64], sizes = [2, 64], strides = [1, 1]} : vector<2x256xf32> to vector<2x64xf32>
    %463 = vector.extract_strided_slice %460 {offsets = [0, 128], sizes = [2, 64], strides = [1, 1]} : vector<2x256xf32> to vector<2x64xf32>
    %464 = vector.extract_strided_slice %460 {offsets = [0, 192], sizes = [2, 64], strides = [1, 1]} : vector<2x256xf32> to vector<2x64xf32>
    %465 = arith.mulf %462, %449 : vector<2x64xf32>
    %466 = arith.mulf %461, %463 : vector<2x64xf32>
    %467 = arith.addf %465, %466 : vector<2x64xf32>
    %468 = math.tanh %467 : vector<2x64xf32>
    %469 = arith.mulf %464, %468 : vector<2x64xf32>
    %470 = arith.truncf %469 : vector<2x64xf32> to vector<2x64xbf16>
    %cst_99 = arith.constant dense<0.000000e+00> : vector<2x256xf32>
    %471 = tpu.matmul %470, %25, %cst_99 {dimension_numbers = #tpu.dot_dimension_numbers<[1], [0], [0], [1], [0, 0, 1, 1], [], []>} : vector<2x64xbf16>, vector<64x256xbf16>, vector<2x256xf32> -> vector<2x256xf32>
    %472 = arith.addf %431, %471 : vector<2x256xf32>
    %473 = math.tanh %472 : vector<2x256xf32>
    %cst_100 = arith.constant 5.000000e-01 : f32
    %474 = vector.broadcast %cst_100 : f32 to vector<2x256xf32>
    %475 = arith.mulf %474, %473 : vector<2x256xf32>
    %cst_101 = arith.constant 5.000000e-01 : f32
    %476 = vector.broadcast %cst_101 : f32 to vector<2x256xf32>
    %477 = arith.addf %475, %476 : vector<2x256xf32>
    %478 = arith.select %43, %473, %477 : vector<2x256xi1>, vector<2x256xf32>
    %479 = vector.extract_strided_slice %478 {offsets = [0, 0], sizes = [2, 64], strides = [1, 1]} : vector<2x256xf32> to vector<2x64xf32>
    %480 = vector.extract_strided_slice %478 {offsets = [0, 64], sizes = [2, 64], strides = [1, 1]} : vector<2x256xf32> to vector<2x64xf32>
    %481 = vector.extract_strided_slice %478 {offsets = [0, 128], sizes = [2, 64], strides = [1, 1]} : vector<2x256xf32> to vector<2x64xf32>
    %482 = vector.extract_strided_slice %478 {offsets = [0, 192], sizes = [2, 64], strides = [1, 1]} : vector<2x256xf32> to vector<2x64xf32>
    %483 = arith.mulf %480, %467 : vector<2x64xf32>
    %484 = arith.mulf %479, %481 : vector<2x64xf32>
    %485 = arith.addf %483, %484 : vector<2x64xf32>
    %486 = math.tanh %485 : vector<2x64xf32>
    %487 = arith.mulf %482, %486 : vector<2x64xf32>
    %488 = arith.truncf %487 : vector<2x64xf32> to vector<2x64xbf16>
    %cst_102 = arith.constant dense<0.000000e+00> : vector<2x256xf32>
    %489 = tpu.matmul %488, %25, %cst_102 {dimension_numbers = #tpu.dot_dimension_numbers<[1], [0], [0], [1], [0, 0, 1, 1], [], []>} : vector<2x64xbf16>, vector<64x256xbf16>, vector<2x256xf32> -> vector<2x256xf32>
    %490 = arith.addf %431, %489 : vector<2x256xf32>
    %491 = math.tanh %490 : vector<2x256xf32>
    %cst_103 = arith.constant 5.000000e-01 : f32
    %492 = vector.broadcast %cst_103 : f32 to vector<2x256xf32>
    %493 = arith.mulf %492, %491 : vector<2x256xf32>
    %cst_104 = arith.constant 5.000000e-01 : f32
    %494 = vector.broadcast %cst_104 : f32 to vector<2x256xf32>
    %495 = arith.addf %493, %494 : vector<2x256xf32>
    %496 = arith.select %43, %491, %495 : vector<2x256xi1>, vector<2x256xf32>
    %497 = vector.extract_strided_slice %496 {offsets = [0, 0], sizes = [2, 64], strides = [1, 1]} : vector<2x256xf32> to vector<2x64xf32>
    %498 = vector.extract_strided_slice %496 {offsets = [0, 64], sizes = [2, 64], strides = [1, 1]} : vector<2x256xf32> to vector<2x64xf32>
    %499 = vector.extract_strided_slice %496 {offsets = [0, 128], sizes = [2, 64], strides = [1, 1]} : vector<2x256xf32> to vector<2x64xf32>
    %500 = vector.extract_strided_slice %496 {offsets = [0, 192], sizes = [2, 64], strides = [1, 1]} : vector<2x256xf32> to vector<2x64xf32>
    %501 = arith.mulf %498, %485 : vector<2x64xf32>
    %502 = arith.mulf %497, %499 : vector<2x64xf32>
    %503 = arith.addf %501, %502 : vector<2x64xf32>
    %504 = math.tanh %503 : vector<2x64xf32>
    %505 = arith.mulf %500, %504 : vector<2x64xf32>
    %506 = arith.truncf %505 : vector<2x64xf32> to vector<2x64xbf16>
    %cst_105 = arith.constant dense<0.000000e+00> : vector<2x256xf32>
    %507 = tpu.matmul %506, %25, %cst_105 {dimension_numbers = #tpu.dot_dimension_numbers<[1], [0], [0], [1], [0, 0, 1, 1], [], []>} : vector<2x64xbf16>, vector<64x256xbf16>, vector<2x256xf32> -> vector<2x256xf32>
    %508 = arith.addf %431, %507 : vector<2x256xf32>
    %509 = math.tanh %508 : vector<2x256xf32>
    %cst_106 = arith.constant 5.000000e-01 : f32
    %510 = vector.broadcast %cst_106 : f32 to vector<2x256xf32>
    %511 = arith.mulf %510, %509 : vector<2x256xf32>
    %cst_107 = arith.constant 5.000000e-01 : f32
    %512 = vector.broadcast %cst_107 : f32 to vector<2x256xf32>
    %513 = arith.addf %511, %512 : vector<2x256xf32>
    %514 = arith.select %43, %509, %513 : vector<2x256xi1>, vector<2x256xf32>
    %515 = vector.extract_strided_slice %514 {offsets = [0, 0], sizes = [2, 64], strides = [1, 1]} : vector<2x256xf32> to vector<2x64xf32>
    %516 = vector.extract_strided_slice %514 {offsets = [0, 64], sizes = [2, 64], strides = [1, 1]} : vector<2x256xf32> to vector<2x64xf32>
    %517 = vector.extract_strided_slice %514 {offsets = [0, 128], sizes = [2, 64], strides = [1, 1]} : vector<2x256xf32> to vector<2x64xf32>
    %518 = vector.extract_strided_slice %514 {offsets = [0, 192], sizes = [2, 64], strides = [1, 1]} : vector<2x256xf32> to vector<2x64xf32>
    %519 = arith.mulf %516, %503 : vector<2x64xf32>
    %520 = arith.mulf %515, %517 : vector<2x64xf32>
    %521 = arith.addf %519, %520 : vector<2x64xf32>
    %522 = math.tanh %521 : vector<2x64xf32>
    %523 = arith.mulf %518, %522 : vector<2x64xf32>
    %524 = tpu.concatenate %451, %469, %487, %505, %523 in 0 : vector<2x64xf32>, vector<2x64xf32>, vector<2x64xf32>, vector<2x64xf32>, vector<2x64xf32> -> vector<10x64xf32>
    %c0_108 = arith.constant 0 : index
    %c0_109 = arith.constant 0 : index
    %525 = vector.load %arg14[%c0_108, %c0_109] : memref<64x5xf32, #tpu.memory_space<vmem>>, vector<64x5xf32>
    %cst_110 = arith.constant dense<0.000000e+00> : vector<10x5xf32>
    %526 = tpu.matmul %524, %525, %cst_110 {dimension_numbers = #tpu.dot_dimension_numbers<[1], [0], [0], [1], [0, 0, 1, 1], [], []>} : vector<10x64xf32>, vector<64x5xf32>, vector<10x5xf32> -> vector<10x5xf32>
    %527 = vector.shape_cast %526 : vector<10x5xf32> to vector<5x2x5xf32>
    %c0_111 = arith.constant 0 : index
    %c0_112 = arith.constant 0 : index
    %528 = vector.load %arg15[%c0_111, %c0_112] : memref<1x5xf32, #tpu.memory_space<vmem>>, vector<1x5xf32>
    %529 = vector.shape_cast %528 : vector<1x5xf32> to vector<1x1x5xf32>
    %530 = vector.broadcast %529 : vector<1x1x5xf32> to vector<5x2x5xf32>
    %531 = arith.addf %527, %530 : vector<5x2x5xf32>
    %532 = tpu.iota {dimensions = array<i32: 2>} : vector<5x2x5xi32>
    %c2_i32 = arith.constant 2 : i32
    %533 = vector.broadcast %c2_i32 : i32 to vector<5x2x5xi32>
    %534 = arith.cmpi slt, %532, %533 : vector<5x2x5xi32>
    %c4_i32 = arith.constant 4 : i32
    %535 = vector.broadcast %c4_i32 : i32 to vector<5x2x5xi32>
    %536 = arith.cmpi slt, %532, %535 : vector<5x2x5xi32>
    %537 = math.exp %531 : vector<5x2x5xf32>
    %538 = math.tanh %531 : vector<5x2x5xf32>
    %539 = arith.select %536, %537, %538 : vector<5x2x5xi1>, vector<5x2x5xf32>
    %540 = arith.select %534, %531, %539 : vector<5x2x5xi1>, vector<5x2x5xf32>
    %c0_113 = arith.constant 0 : index
    %c0_114 = arith.constant 0 : index
    %c0_115 = arith.constant 0 : index
    %541 = vector.load %arg16[%c0_113, %c0_114, %c0_115] : memref<5x2x5xf32, #tpu.memory_space<vmem>>, vector<5x2x5xf32>
    tpu.vector_store %arg16[%c0_113, %c0_114, %c0_115], %540 {strides = array<i32>} : memref<5x2x5xf32, #tpu.memory_space<vmem>>, vector<5x2x5xf32>,
    return
  }
}

</mosaic_0001>

<llo_original>
// kernel: highway_net_forward.1
$region0: #{highway_net_forward.1}
  #allocation0 [shape = 'u32[]', space=smem, size = 0x4, offset = 0x4, fixed_abs, tag = 'smem constant byte address 0x4 - core index']
  #allocation1 [shape = 'u32[144,128]{1,0:T(1,128)}', space=vmem, size = 0x12000, scoped, tag = 'internal scratch']
  #allocation2 [shape = 'f32[1,1]{1,0:T(1,128)S(1)}', space=vmem, size = 0x200, scoped, tag = 'scoped memory for highway_net_forward.1']
  %s0 = inlined_call_operand.vmem [shape: bf16[40,2], index: 0, kind: input, shape index: {}]
  %s1 = inlined_call_operand.vmem [shape: s32[2,16], index: 1, kind: input, shape index: {}]
  %s2 = inlined_call_operand.vmem [shape: bf16[2,16], index: 2, kind: input, shape index: {}]
  %s3 = inlined_call_operand.vmem [shape: f32[1,16], index: 3, kind: input, shape index: {}]
  %s4 = inlined_call_operand.vmem [shape: bf16[16,128], index: 4, kind: input, shape index: {}]
  %s5 = inlined_call_operand.vmem [shape: f32[1,128], index: 5, kind: input, shape index: {}]
  %s6 = inlined_call_operand.vmem [shape: bf16[16,128], index: 6, kind: input, shape index: {}]
  %s7 = inlined_call_operand.vmem [shape: f32[1,128], index: 7, kind: input, shape index: {}]
  %s8 = inlined_call_operand.vmem [shape: bf16[64,256], index: 8, kind: input, shape index: {}]
  %s9 = inlined_call_operand.vmem [shape: f32[1,32], index: 9, kind: input, shape index: {}]
  %s10 = inlined_call_operand.<no memory space> [shape: f32[1,1], index: 10, kind: input, shape index: {}]
  %s11 = inlined_call_operand.vmem [shape: bf16[32,256], index: 11, kind: input, shape index: {}]
  %s12 = inlined_call_operand.vmem [shape: bf16[64,256], index: 12, kind: input, shape index: {}]
  %s13 = inlined_call_operand.vmem [shape: f32[1,256], index: 13, kind: input, shape index: {}]
  %s14 = inlined_call_operand.vmem [shape: f32[64,5], index: 14, kind: input, shape index: {}]
  %s15 = inlined_call_operand.vmem [shape: f32[1,5], index: 15, kind: input, shape index: {}]
  %s16 = inlined_call_operand.hbm [shape: f32[5,2,5], index: 16, kind: output, shape index: {0}]
  %s17 = inlined_call_operand.hbm [shape: f32[2,16], index: 17, kind: output, shape index: {1}]
  %18 = xla_tuple %s16, %s17
  %s19 = sld [smem:[#allocation0]]
  $region82: #{highway_net_forward.1} parent=0
    _
  %s21 = ssub.s32 1, %s19
  %s22 = scalar_select 0, %s21, %s19
  %v23 = vstv %s10
  %24 = vst [vmem:[#allocation2] sm:$0x1] %v23
  $region1: #{highway_net_forward.1} parent=0
    #allocation3 [shape = 'u8[5120]{0}', space=vmem, size = 0x1400, scoped, tag = 'output window, operand 0, single buffered']
    #allocation4 [shape = 's32[1]{0}', space=sflag, size = 0x4, scoped, tag = 'scoped memory for highway_net_forward.1']
    #allocation5 [shape = 'u8[1024]{0}', space=vmem, size = 0x400, scoped, tag = 'output window, operand 1, single buffered']
    #allocation6 [shape = 's32[1]{0}', space=sflag, size = 0x4, scoped, tag = 'scoped memory for highway_net_forward.1']
    %25 = vsyncpa [#allocation4], 0
    %26 = vsyncpa [#allocation6], 0
    // Predicated region
    $region2: #{highway_net_forward.1} parent=1 // pred_check
      _
    $region3: #{highway_net_forward.1} parent=1 // pred_check_branch
      %28 = sbr.rel (0) target = $region5
    $region4: #{highway_net_forward.1} parent=1 // pred_region
      _
    $region5: #{highway_net_forward.1} parent=1 // pred_fallthru
      _
    // Predicated region
    $region6: #{highway_net_forward.1} parent=1 // pred_check
      _
    $region7: #{highway_net_forward.1} parent=1 // pred_check_branch
      %30 = sbr.rel (0) target = $region9
    $region8: #{highway_net_forward.1} parent=1 // pred_region
      _
    $region9: #{highway_net_forward.1} parent=1 // pred_fallthru
      _
    // Predicated region
    $region10: #{highway_net_forward.1} parent=1 // pred_check
      _
    $region11: #{highway_net_forward.1} parent=1 // pred_check_branch
      %32 = sbr.rel (0) target = $region13
    $region12: #{highway_net_forward.1} parent=1 // pred_region
      _
    $region13: #{highway_net_forward.1} parent=1 // pred_fallthru
      _
    // Predicated region
    $region14: #{highway_net_forward.1} parent=1 // pred_check
      _
    $region15: #{highway_net_forward.1} parent=1 // pred_check_branch
      %34 = sbr.rel (0) target = $region17
    $region16: #{highway_net_forward.1} parent=1 // pred_region
      _
    $region17: #{highway_net_forward.1} parent=1 // pred_fallthru
      _
    // Predicated region
    $region18: #{highway_net_forward.1} parent=1 // pred_check
      _
    $region19: #{highway_net_forward.1} parent=1 // pred_check_branch
      %36 = sbr.rel (0) target = $region21
    $region20: #{highway_net_forward.1} parent=1 // pred_region
      _
    $region21: #{highway_net_forward.1} parent=1 // pred_fallthru
      _
    // Predicated region
    $region22: #{highway_net_forward.1} parent=1 // pred_check
      _
    $region23: #{highway_net_forward.1} parent=1 // pred_check_branch
      %38 = sbr.rel (0) target = $region25
    $region24: #{highway_net_forward.1} parent=1 // pred_region
      _
    $region25: #{highway_net_forward.1} parent=1 // pred_fallthru
      _
    // Predicated region
    $region26: #{highway_net_forward.1} parent=1 // pred_check
      _
    $region27: #{highway_net_forward.1} parent=1 // pred_check_branch
      %40 = sbr.rel (0) target = $region29
    $region28: #{highway_net_forward.1} parent=1 // pred_region
      _
    $region29: #{highway_net_forward.1} parent=1 // pred_fallthru
      _
    // Predicated region
    $region30: #{highway_net_forward.1} parent=1 // pred_check
      _
    $region31: #{highway_net_forward.1} parent=1 // pred_check_branch
      %42 = sbr.rel (0) target = $region33
    $region32: #{highway_net_forward.1} parent=1 // pred_region
      _
    $region33: #{highway_net_forward.1} parent=1 // pred_fallthru
      _
    // Predicated region
    $region34: #{highway_net_forward.1} parent=1 // pred_check
      _
    $region35: #{highway_net_forward.1} parent=1 // pred_check_branch
      %44 = sbr.rel (0) target = $region37
    $region36: #{highway_net_forward.1} parent=1 // pred_region
      _
    $region37: #{highway_net_forward.1} parent=1 // pred_fallthru
      _
    // Predicated region
    $region38: #{highway_net_forward.1} parent=1 // pred_check
      _
    $region39: #{highway_net_forward.1} parent=1 // pred_check_branch
      %46 = sbr.rel (0) target = $region41
    $region40: #{highway_net_forward.1} parent=1 // pred_region
      _
    $region41: #{highway_net_forward.1} parent=1 // pred_fallthru
      _
    // Predicated region
    $region42: #{highway_net_forward.1} parent=1 // pred_check
      _
    $region43: #{highway_net_forward.1} parent=1 // pred_check_branch
      %48 = sbr.rel (0) target = $region45
    $region44: #{highway_net_forward.1} parent=1 // pred_region
      _
    $region45: #{highway_net_forward.1} parent=1 // pred_fallthru
      _
    // Predicated region
    $region46: #{highway_net_forward.1} parent=1 // pred_check
      _
    $region47: #{highway_net_forward.1} parent=1 // pred_check_branch
      %50 = sbr.rel (0) target = $region49
    $region48: #{highway_net_forward.1} parent=1 // pred_region
      _
    $region49: #{highway_net_forward.1} parent=1 // pred_fallthru
      _
    // Predicated region
    $region50: #{highway_net_forward.1} parent=1 // pred_check
      _
    $region51: #{highway_net_forward.1} parent=1 // pred_check_branch
      %52 = sbr.rel (0) target = $region53
    $region52: #{highway_net_forward.1} parent=1 // pred_region
      _
    $region53: #{highway_net_forward.1} parent=1 // pred_fallthru
      _
    // Predicated region
    $region54: #{highway_net_forward.1} parent=1 // pred_check
      _
    $region55: #{highway_net_forward.1} parent=1 // pred_check_branch
      %54 = sbr.rel (0) target = $region57
    $region56: #{highway_net_forward.1} parent=1 // pred_region
      _
    $region57: #{highway_net_forward.1} parent=1 // pred_fallthru
      _
    // Predicated region
    $region58: #{highway_net_forward.1} parent=1 // pred_check
      _
    $region59: #{highway_net_forward.1} parent=1 // pred_check_branch
      %56 = sbr.rel (0) target = $region61
    $region60: #{highway_net_forward.1} parent=1 // pred_region
      _
    $region61: #{highway_net_forward.1} parent=1 // pred_fallthru
      _
    // Predicated region
    $region62: #{highway_net_forward.1} parent=1 // pred_check
      _
    $region63: #{highway_net_forward.1} parent=1 // pred_check_branch
      %58 = sbr.rel (0) target = $region65
    $region64: #{highway_net_forward.1} parent=1 // pred_region
      _
    $region65: #{highway_net_forward.1} parent=1 // pred_fallthru
      _
    %v60 = vld [vmem:[%s0] sm:$0xf]
    %v61 = vld [vmem:[%s0 + $0x4] sm:$0xf]
    %v62 = vld [vmem:[%s0 + $0x8] sm:$0xf]
    %v63 = vld [vmem:[%s0 + $0xc] sm:$0xf]
    %v64 = vld [vmem:[%s0 + $0x10] sm:$0xf]
    %v65 = vld [vmem:[%s2] sm:$0x1]
    %v66 = vld [vmem:[%s3] sm:$0x1]
    %v68 = vlaneseq
    %v69 = vshrl.u32 %v68, 7
    %v70 = vsub.s32 0, %v69
    %v71 = vrot.slane %v66, %v70
    %v78 = vunpack.c.l.b16 %v60
    %v79 = vunpack.c.l.b16 %v61
    %v80 = vunpack.c.l.b16 %v62
    %v81 = vunpack.c.l.b16 %v63
    %v82 = vunpack.c.l.b16 %v64
    %v83 = vpack.c.b16 %v79, %v78
    %v84 = vpack.c.b16 %v81, %v80
    %v85 = vpack.c.b16 %v82, %v82
    %vm86 = vcmask 15360
    %v88 = vsel %vm86, %v83, 0
    %v91 = vsel %vm86, %v84, 0
    %v94 = vsel %vm86, %v85, 0
    %vm96 = vcmask 1040384
    %v98 = vsel %vm96, %v65, 0
    %100 = vmatprep.subr.bf16.mxu0 0
    %101 = vmatpush1.bf16.msra.mxu0 %v98
    %102 = vmatprep.subr.bf16.mxu0 0
    %103 = vmatpush1.bf16.msra.mxu0 0
    %104 = vmatprep.subr.bf16.mxu0 0
    %105 = vmatpush1.bf16.msra.mxu0 0
    %106 = vmatprep.subr.bf16.mxu0 0
    %107 = vmatpush1.bf16.msra.mxu0 0
    %108 = vmatprep.subr.bf16.mxu0 0
    %109 = vmatpush1.bf16.msra.mxu0 0
    %110 = vmatprep.subr.bf16.mxu0 0
    %111 = vmatpush1.bf16.msra.mxu0 0
    %112 = vmatprep.subr.bf16.mxu0 0
    %113 = vmatpush1.bf16.msra.mxu0 0
    %114 = vmatprep.subr.bf16.mxu0 0
    %115 = vmatpush1.bf16.msra.mxu0 0
    %116 = vmatprep.subr.bf16.mxu0 0
    %117 = vmatpush1.bf16.msra.mxu0 0
    %118 = vmatprep.subr.bf16.mxu0 0
    %119 = vmatpush1.bf16.msra.mxu0 0
    %120 = vmatprep.subr.bf16.mxu0 0
    %121 = vmatpush1.bf16.msra.mxu0 0
    %122 = vmatprep.subr.bf16.mxu0 0
    %123 = vmatpush1.bf16.msra.mxu0 0
    %124 = vmatprep.subr.bf16.mxu0 0
    %125 = vmatpush1.bf16.msra.mxu0 0
    %126 = vmatprep.subr.bf16.mxu0 0
    %127 = vmatpush1.bf16.msra.mxu0 0
    %128 = vmatprep.subr.bf16.mxu0 0
    %129 = vmatpush1.bf16.msra.mxu0 0
    %130 = vmatprep.subr.bf16.mxu0 0
    %131 = vmatpush1.bf16.msra.mxu0 0
    %132 = vmatprep.mubr.bf16.mxu0 0
    %133 = vmatmul.mubr.bf16.gmra.mrb[0].mxu0 %v88
    %v134 = vpop.f32.mrb[0].mxu0
    %v135 = vadd.f32 %v71, %v134
    %v136 = vpop.f32.mrb[0].mxu0
    %v137 = vpop.f32.mrb[0].mxu0
    %v138 = vadd.f32 %v71, %v137
    %v139 = vpop.f32.mrb[0].mxu0
    %140 = vmatprep.mubr.bf16.mxu0 0
    %141 = vmatmul.mubr.bf16.gmra.mrb[0].mxu0 %v91
    %v142 = vpop.f32.mrb[0].mxu0
    %v143 = vadd.f32 %v71, %v142
    %v144 = vpop.f32.mrb[0].mxu0
    %v145 = vpop.f32.mrb[0].mxu0
    %v146 = vadd.f32 %v71, %v145
    %v147 = vpop.f32.mrb[0].mxu0
    %148 = vmatprep.mubr.bf16.mxu0 0
    %149 = vmatmul.mubr.bf16.gmra.mrb[0].mxu0 %v94
    %v150 = vpop.f32.mrb[0].mxu0
    %v151 = vadd.f32 %v71, %v150
    %v152 = vpop.f32.mrb[0].mxu0
    %v153 = vpop.f32.mrb[0].mxu0
    %v154 = vpop.f32.mrb[0].mxu0
    %155 = vdwg.mxu0
    %vm156 = vcmp.gt.f32.partialorder %v135, 0.0
    %vm157 = vcmp.gt.f32.partialorder %v138, 0.0
    %vm158 = vcmp.gt.f32.partialorder %v143, 0.0
    %vm159 = vcmp.gt.f32.partialorder %v146, 0.0
    %vm160 = vcmp.gt.f32.partialorder %v151, 0.0
    %v161 = vmul.f32 %v135, 0.1
    %v162 = vmul.f32 %v138, 0.1
    %v163 = vmul.f32 %v143, 0.1
    %v164 = vmul.f32 %v146, 0.1
    %v165 = vmul.f32 %v151, 0.1
    %v166 = vsel %vm156, %v135, %v161
    %v167 = vsel %vm157, %v138, %v162
    %v168 = vsel %vm158, %v143, %v163
    %v169 = vsel %vm159, %v146, %v164
    %v170 = vsel %vm160, %v151, %v165
    %v171 = vpack.c.bf16 %v167, %v166
    %v172 = vpack.c.bf16 %v169, %v168
    %v173 = vpack.c.bf16 %v170, %v170
    %v174 = vld [vmem:[%s4] sm:$0xf]
    %v175 = vld [vmem:[%s4 + $0x4] sm:$0xf]
    %v176 = vld [vmem:[%s5] sm:$0x1]
    %v178 = vlaneseq
    %v179 = vshrl.u32 %v178, 7
    %v180 = vsub.s32 0, %v179
    %v181 = vrot.slane %v176, %v180
    %v185 = vunpack.c.l.b16 %v174
    %v186 = vunpack.c.l.b16 %v175
    %v187 = vpack.c.b16 %v186, %v185
    %vm189 = vcmask 130048
    %v191 = vsel %vm189, %v171, 0
    %193 = vmatprep.subr.bf16.mxu0 0
    %194 = vmatpush1.bf16.msra.mxu0 %v187
    %195 = vmatprep.subr.bf16.mxu0 0
    %196 = vmatpush1.bf16.msra.mxu0 0
    %197 = vmatprep.subr.bf16.mxu0 0
    %198 = vmatpush1.bf16.msra.mxu0 0
    %199 = vmatprep.subr.bf16.mxu0 0
    %200 = vmatpush1.bf16.msra.mxu0 0
    %201 = vmatprep.subr.bf16.mxu0 0
    %202 = vmatpush1.bf16.msra.mxu0 0
    %203 = vmatprep.subr.bf16.mxu0 0
    %204 = vmatpush1.bf16.msra.mxu0 0
    %205 = vmatprep.subr.bf16.mxu0 0
    %206 = vmatpush1.bf16.msra.mxu0 0
    %207 = vmatprep.subr.bf16.mxu0 0
    %208 = vmatpush1.bf16.msra.mxu0 0
    %209 = vmatprep.subr.bf16.mxu0 0
    %210 = vmatpush1.bf16.msra.mxu0 0
    %211 = vmatprep.subr.bf16.mxu0 0
    %212 = vmatpush1.bf16.msra.mxu0 0
    %213 = vmatprep.subr.bf16.mxu0 0
    %214 = vmatpush1.bf16.msra.mxu0 0
    %215 = vmatprep.subr.bf16.mxu0 0
    %216 = vmatpush1.bf16.msra.mxu0 0
    %217 = vmatprep.subr.bf16.mxu0 0
    %218 = vmatpush1.bf16.msra.mxu0 0
    %219 = vmatprep.subr.bf16.mxu0 0
    %220 = vmatpush1.bf16.msra.mxu0 0
    %221 = vmatprep.subr.bf16.mxu0 0
    %222 = vmatpush1.bf16.msra.mxu0 0
    %223 = vmatprep.subr.bf16.mxu0 0
    %224 = vmatpush1.bf16.msra.mxu0 0
    %225 = vmatprep.mubr.bf16.mxu0 0
    %226 = vmatmul.mubr.bf16.gmra.mrb[0].mxu0 %v191
    %v227 = vpop.f32.mrb[0].mxu0
    %v228 = vadd.f32 %v181, %v227
    %v229 = vpop.f32.mrb[0].mxu0
    %v230 = vpop.f32.mrb[0].mxu0
    %v231 = vadd.f32 %v181, %v230
    %v232 = vpop.f32.mrb[0].mxu0
    %233 = vdwg.mxu0
    %v234 = vld [vmem:[%s6] sm:$0xf]
    %v235 = vld [vmem:[%s6 + $0x4] sm:$0xf]
    %v236 = vld [vmem:[%s7] sm:$0x1]
    %v238 = vlaneseq
    %v239 = vshrl.u32 %v238, 7
    %v240 = vsub.s32 0, %v239
    %v241 = vrot.slane %v236, %v240
    %v245 = vunpack.c.l.b16 %v234
    %v246 = vunpack.c.l.b16 %v235
    %v247 = vpack.c.b16 %v246, %v245
    %v250 = vsel %vm189, %v172, 0
    %v253 = vsel %vm189, %v173, 0
    %255 = vmatprep.subr.bf16.mxu0 0
    %256 = vmatpush1.bf16.msra.mxu0 %v247
    %257 = vmatprep.subr.bf16.mxu0 0
    %258 = vmatpush1.bf16.msra.mxu0 0
    %259 = vmatprep.subr.bf16.mxu0 0
    %260 = vmatpush1.bf16.msra.mxu0 0
    %261 = vmatprep.subr.bf16.mxu0 0
    %262 = vmatpush1.bf16.msra.mxu0 0
    %263 = vmatprep.subr.bf16.mxu0 0
    %264 = vmatpush1.bf16.msra.mxu0 0
    %265 = vmatprep.subr.bf16.mxu0 0
    %266 = vmatpush1.bf16.msra.mxu0 0
    %267 = vmatprep.subr.bf16.mxu0 0
    %268 = vmatpush1.bf16.msra.mxu0 0
    %269 = vmatprep.subr.bf16.mxu0 0
    %270 = vmatpush1.bf16.msra.mxu0 0
    %271 = vmatprep.subr.bf16.mxu0 0
    %272 = vmatpush1.bf16.msra.mxu0 0
    %273 = vmatprep.subr.bf16.mxu0 0
    %274 = vmatpush1.bf16.msra.mxu0 0
    %275 = vmatprep.subr.bf16.mxu0 0
    %276 = vmatpush1.bf16.msra.mxu0 0
    %277 = vmatprep.subr.bf16.mxu0 0
    %278 = vmatpush1.bf16.msra.mxu0 0
    %279 = vmatprep.subr.bf16.mxu0 0
    %280 = vmatpush1.bf16.msra.mxu0 0
    %281 = vmatprep.subr.bf16.mxu0 0
    %282 = vmatpush1.bf16.msra.mxu0 0
    %283 = vmatprep.subr.bf16.mxu0 0
    %284 = vmatpush1.bf16.msra.mxu0 0
    %285 = vmatprep.subr.bf16.mxu0 0
    %286 = vmatpush1.bf16.msra.mxu0 0
    %287 = vmatprep.mubr.bf16.mxu0 0
    %288 = vmatmul.mubr.bf16.gmra.mrb[0].mxu0 %v250
    %v289 = vpop.f32.mrb[0].mxu0
    %v290 = vadd.f32 %v241, %v289
    %v291 = vpop.f32.mrb[0].mxu0
    %v292 = vpop.f32.mrb[0].mxu0
    %v293 = vadd.f32 %v241, %v292
    %v294 = vpop.f32.mrb[0].mxu0
    %295 = vmatprep.mubr.bf16.mxu0 0
    %296 = vmatmul.mubr.bf16.gmra.mrb[0].mxu0 %v253
    %v297 = vpop.f32.mrb[0].mxu0
    %v298 = vadd.f32 %v241, %v297
    %v299 = vpop.f32.mrb[0].mxu0
    %v300 = vpop.f32.mrb[0].mxu0
    %v301 = vpop.f32.mrb[0].mxu0
    %302 = vdwg.mxu0
    %v303 = vld [vmem:[%s8] sm:$0xff]
    %v304 = vld [vmem:[%s8 + $0x8] sm:$0xff]
    %v305 = vld [vmem:[%s8 + $0x10] sm:$0xff]
    %v306 = vld [vmem:[%s8 + $0x18] sm:$0xff]
    %v307 = vld [vmem:[%s8 + $0x20] sm:$0xff]
    %v308 = vld [vmem:[%s8 + $0x28] sm:$0xff]
    %v309 = vld [vmem:[%s8 + $0x30] sm:$0xff]
    %v310 = vld [vmem:[%s8 + $0x38] sm:$0xff]
    %v311 = vld [vmem:[%s12] sm:$0xff]
    %v312 = vld [vmem:[%s12 + $0x8] sm:$0xff]
    %v313 = vld [vmem:[%s12 + $0x10] sm:$0xff]
    %v314 = vld [vmem:[%s12 + $0x18] sm:$0xff]
    %v315 = vld [vmem:[%s12 + $0x20] sm:$0xff]
    %v316 = vld [vmem:[%s12 + $0x28] sm:$0xff]
    %v317 = vld [vmem:[%s12 + $0x30] sm:$0xff]
    %v318 = vld [vmem:[%s12 + $0x38] sm:$0xff]
    %v319 = vlaneseq
    %v320 = vand.u32 %v319, 127
    %vm321 = vcmp.ge.s32.totalorder %v320, 64
    %vm322 = vcmp.lt.s32.totalorder %v320, 96
    %vm323 = vmand %vm321, %vm322
    %v324 = vadd.s32 %v320, 128
    %vm325 = vcmp.ge.s32.totalorder %v320, 128
    %vm326 = vcmp.ge.s32.totalorder %v324, 128
    %vm327 = vcmp.lt.s32.totalorder %v320, 192
    %vm328 = vcmp.lt.s32.totalorder %v324, 192
    %vm329 = vmand %vm325, %vm327
    %vm330 = vmand %vm326, %vm328
    %v332 = vrot.slane 0.0, 6
    %vm334 = vcmask 1041408
    %v335 = vsel %vm334, 0.0, %v332
    %v336 = vpack.c.bf16 %v335, %v335
    %v345 = vunpack.c.l.b16 %v303
    %v346 = vunpack.c.h.b16 %v303
    %v347 = vunpack.c.l.b16 %v304
    %v348 = vunpack.c.h.b16 %v304
    %v349 = vunpack.c.l.b16 %v305
    %v350 = vunpack.c.h.b16 %v305
    %v351 = vunpack.c.l.b16 %v306
    %v352 = vunpack.c.h.b16 %v306
    %v353 = vunpack.c.l.b16 %v307
    %v354 = vunpack.c.h.b16 %v307
    %v355 = vunpack.c.l.b16 %v308
    %v356 = vunpack.c.h.b16 %v308
    %v357 = vunpack.c.l.b16 %v309
    %v358 = vunpack.c.h.b16 %v309
    %v359 = vunpack.c.l.b16 %v310
    %v360 = vunpack.c.h.b16 %v310
    %v361 = vpack.c.b16 %v347, %v345
    %v362 = vpack.c.b16 %v348, %v346
    %v363 = vpack.c.b16 %v351, %v349
    %v364 = vpack.c.b16 %v352, %v350
    %v365 = vpack.c.b16 %v355, %v353
    %v366 = vpack.c.b16 %v356, %v354
    %v367 = vpack.c.b16 %v359, %v357
    %v368 = vpack.c.b16 %v360, %v358
    %vm377 = vcmask 523264
    %v379 = vsel %vm377, %v336, 0
    %381 = vmatprep.subr.bf16.mxu0 %v362
    %382 = vmatpush1.bf16.msra.mxu0 %v361
    %383 = vmatprep.subr.bf16.mxu0 %v364
    %384 = vmatpush1.bf16.msra.mxu0 %v363
    %385 = vmatprep.subr.bf16.mxu0 %v366
    %386 = vmatpush1.bf16.msra.mxu0 %v365
    %387 = vmatprep.subr.bf16.mxu0 %v368
    %388 = vmatpush1.bf16.msra.mxu0 %v367
    %389 = vmatprep.subr.bf16.mxu0 0
    %390 = vmatpush1.bf16.msra.mxu0 0
    %391 = vmatprep.subr.bf16.mxu0 0
    %392 = vmatpush1.bf16.msra.mxu0 0
    %393 = vmatprep.subr.bf16.mxu0 0
    %394 = vmatpush1.bf16.msra.mxu0 0
    %395 = vmatprep.subr.bf16.mxu0 0
    %396 = vmatpush1.bf16.msra.mxu0 0
    %397 = vmatprep.subr.bf16.mxu0 0
    %398 = vmatpush1.bf16.msra.mxu0 0
    %399 = vmatprep.subr.bf16.mxu0 0
    %400 = vmatpush1.bf16.msra.mxu0 0
    %401 = vmatprep.subr.bf16.mxu0 0
    %402 = vmatpush1.bf16.msra.mxu0 0
    %403 = vmatprep.subr.bf16.mxu0 0
    %404 = vmatpush1.bf16.msra.mxu0 0
    %405 = vmatprep.subr.bf16.mxu0 0
    %406 = vmatpush1.bf16.msra.mxu0 0
    %407 = vmatprep.subr.bf16.mxu0 0
    %408 = vmatpush1.bf16.msra.mxu0 0
    %409 = vmatprep.subr.bf16.mxu0 0
    %410 = vmatpush1.bf16.msra.mxu0 0
    %411 = vmatprep.subr.bf16.mxu0 0
    %412 = vmatpush1.bf16.msra.mxu0 0
    %413 = vmatprep.mubr.bf16.mxu0 0
    %414 = vmatmul.mubr.bf16.gmra.mrb[0].mxu0 %v379
    %v415 = vpop.f32.mrb[0].mxu0
    %v416 = vadd.f32 0.0, %v415
    %v417 = vpop.f32.mrb[0].mxu0
    %v418 = vadd.f32 0.0, %v417
    %v419 = vpop.f32.mrb[0].mxu0
    %v420 = vpop.f32.mrb[0].mxu0
    %421 = vdwg.mxu0
    %v422 = vadd.f32 %v228, %v416
    %v424 = vrot.slane %v418, 2
    %v426 = vadd.f32 %v290, %v424
    %v427 = vtanh.pop %v422
    %v428 = vmul.f32 %v427, 0.5
    %v429 = vadd.f32 %v428, 0.5
    %v430 = vsel %vm323, %v427, %v429
    %v431 = vmul.f32 %v430, 0.0
    %433 = vrot.lane.b32.xlu0 %v430, 64
    %v434 = vpop.permute.xlu0 %433
    %v436 = vmul.f32 %v430, %v434
    %438 = vrot.lane.b32.xlu0 %v436, 32
    %v439 = vpop.permute.xlu0 %438
    %v441 = vadd.f32 %v431, %v439
    %v442 = vtanh.pop %v441
    %444 = vrot.lane.b32.xlu0 %v442, 64
    %v445 = vpop.permute.xlu0 %444
    %v447 = vmul.f32 %v430, %v445
    %v448 = vtanh.pop %v426
    %v449 = vmul.f32 %v448, 0.5
    %v450 = vadd.f32 %v449, 0.5
    %v451 = vsel %vm323, %v448, %v450
    %v452 = vmul.f32 %v451, 0.0
    %454 = vrot.lane.b32.xlu0 %v451, 64
    %v455 = vpop.permute.xlu0 %454
    %v457 = vmul.f32 %v451, %v455
    %459 = vrot.lane.b32.xlu0 %v457, 32
    %v460 = vpop.permute.xlu0 %459
    %v462 = vadd.f32 %v452, %v460
    %v463 = vtanh.pop %v462
    %465 = vrot.lane.b32.xlu0 %v463, 64
    %v466 = vpop.permute.xlu0 %465
    %v468 = vmul.f32 %v451, %v466
    %470 = vrot.lane.b32.xlu0 %v447, 32
    %v471 = vpop.permute.xlu0 %470
    %vm473 = vcmask 261120
    %v474 = vsel %vm473, %v471, 0.0
    %476 = vrot.lane.b32.xlu0 %v468, 64
    %v477 = vpop.permute.xlu0 %476
    %v479 = vsel %vm473, 0.0, %v477
    %v481 = vrot.slane %v479, 6
    %v483 = vsel %vm334, %v474, %v481
    %v484 = vpack.c.bf16 %v483, %v483
    %v486 = vsel %vm377, %v484, 0
    %488 = vmatprep.subr.bf16.mxu0 %v362
    %489 = vmatpush1.bf16.msra.mxu0 %v361
    %490 = vmatprep.subr.bf16.mxu0 %v364
    %491 = vmatpush1.bf16.msra.mxu0 %v363
    %492 = vmatprep.subr.bf16.mxu0 %v366
    %493 = vmatpush1.bf16.msra.mxu0 %v365
    %494 = vmatprep.subr.bf16.mxu0 %v368
    %495 = vmatpush1.bf16.msra.mxu0 %v367
    %496 = vmatprep.subr.bf16.mxu0 0
    %497 = vmatpush1.bf16.msra.mxu0 0
    %498 = vmatprep.subr.bf16.mxu0 0
    %499 = vmatpush1.bf16.msra.mxu0 0
    %500 = vmatprep.subr.bf16.mxu0 0
    %501 = vmatpush1.bf16.msra.mxu0 0
    %502 = vmatprep.subr.bf16.mxu0 0
    %503 = vmatpush1.bf16.msra.mxu0 0
    %504 = vmatprep.subr.bf16.mxu0 0
    %505 = vmatpush1.bf16.msra.mxu0 0
    %506 = vmatprep.subr.bf16.mxu0 0
    %507 = vmatpush1.bf16.msra.mxu0 0
    %508 = vmatprep.subr.bf16.mxu0 0
    %509 = vmatpush1.bf16.msra.mxu0 0
    %510 = vmatprep.subr.bf16.mxu0 0
    %511 = vmatpush1.bf16.msra.mxu0 0
    %512 = vmatprep.subr.bf16.mxu0 0
    %513 = vmatpush1.bf16.msra.mxu0 0
    %514 = vmatprep.subr.bf16.mxu0 0
    %515 = vmatpush1.bf16.msra.mxu0 0
    %516 = vmatprep.subr.bf16.mxu0 0
    %517 = vmatpush1.bf16.msra.mxu0 0
    %518 = vmatprep.subr.bf16.mxu0 0
    %519 = vmatpush1.bf16.msra.mxu0 0
    %520 = vmatprep.mubr.bf16.mxu0 0
    %521 = vmatmul.mubr.bf16.gmra.mrb[0].mxu0 %v486
    %v522 = vpop.f32.mrb[0].mxu0
    %v523 = vadd.f32 0.0, %v522
    %v524 = vpop.f32.mrb[0].mxu0
    %v525 = vadd.f32 0.0, %v524
    %v526 = vpop.f32.mrb[0].mxu0
    %v527 = vpop.f32.mrb[0].mxu0
    %528 = vdwg.mxu0
    %v530 = vrot.slane %v523, 6
    %v532 = vadd.f32 %v228, %v530
    %v534 = vrot.slane %v525, 7
    %v536 = vadd.f32 %v290, %v534
    %v537 = vtanh.pop %v532
    %v538 = vmul.f32 %v537, 0.5
    %v539 = vadd.f32 %v538, 0.5
    %v540 = vsel %vm323, %v537, %v539
    %v542 = vrot.slane %v441, 6
    %v544 = vmul.f32 %v540, %v542
    %546 = vrot.lane.b32.xlu0 %v540, 64
    %v547 = vpop.permute.xlu0 %546
    %v549 = vmul.f32 %v540, %v547
    %551 = vrot.lane.b32.xlu0 %v549, 32
    %v552 = vpop.permute.xlu0 %551
    %v554 = vadd.f32 %v544, %v552
    %v555 = vtanh.pop %v554
    %557 = vrot.lane.b32.xlu0 %v555, 64
    %v558 = vpop.permute.xlu0 %557
    %v560 = vmul.f32 %v540, %v558
    %v561 = vtanh.pop %v536
    %v562 = vmul.f32 %v561, 0.5
    %v563 = vadd.f32 %v562, 0.5
    %v564 = vsel %vm323, %v561, %v563
    %v566 = vrot.slane %v462, 5
    %v568 = vmul.f32 %v564, %v566
    %570 = vrot.lane.b32.xlu0 %v564, 64
    %v571 = vpop.permute.xlu0 %570
    %v573 = vmul.f32 %v564, %v571
    %575 = vrot.lane.b32.xlu0 %v573, 32
    %v576 = vpop.permute.xlu0 %575
    %v578 = vadd.f32 %v568, %v576
    %v579 = vtanh.pop %v578
    %581 = vrot.lane.b32.xlu0 %v579, 64
    %v582 = vpop.permute.xlu0 %581
    %v584 = vmul.f32 %v564, %v582
    %586 = vrot.lane.b32.xlu0 %v560, 32
    %v587 = vpop.permute.xlu0 %586
    %v589 = vsel %vm473, %v587, 0.0
    %v591 = vrot.slane %v584, 3
    %592 = vrot.lane.b32.xlu0 %v591, 64
    %v593 = vpop.permute.xlu0 %592
    %v595 = vsel %vm473, 0.0, %v593
    %v597 = vrot.slane %v589, 2
    %v600 = vrot.slane %v595, 6
    %v602 = vsel %vm334, %v597, %v600
    %v603 = vpack.c.bf16 %v602, %v602
    %v605 = vsel %vm377, %v603, 0
    %607 = vmatprep.subr.bf16.mxu0 %v362
    %608 = vmatpush1.bf16.msra.mxu0 %v361
    %609 = vmatprep.subr.bf16.mxu0 %v364
    %610 = vmatpush1.bf16.msra.mxu0 %v363
    %611 = vmatprep.subr.bf16.mxu0 %v366
    %612 = vmatpush1.bf16.msra.mxu0 %v365
    %613 = vmatprep.subr.bf16.mxu0 %v368
    %614 = vmatpush1.bf16.msra.mxu0 %v367
    %615 = vmatprep.subr.bf16.mxu0 0
    %616 = vmatpush1.bf16.msra.mxu0 0
    %617 = vmatprep.subr.bf16.mxu0 0
    %618 = vmatpush1.bf16.msra.mxu0 0
    %619 = vmatprep.subr.bf16.mxu0 0
    %620 = vmatpush1.bf16.msra.mxu0 0
    %621 = vmatprep.subr.bf16.mxu0 0
    %622 = vmatpush1.bf16.msra.mxu0 0
    %623 = vmatprep.subr.bf16.mxu0 0
    %624 = vmatpush1.bf16.msra.mxu0 0
    %625 = vmatprep.subr.bf16.mxu0 0
    %626 = vmatpush1.bf16.msra.mxu0 0
    %627 = vmatprep.subr.bf16.mxu0 0
    %628 = vmatpush1.bf16.msra.mxu0 0
    %629 = vmatprep.subr.bf16.mxu0 0
    %630 = vmatpush1.bf16.msra.mxu0 0
    %631 = vmatprep.subr.bf16.mxu0 0
    %632 = vmatpush1.bf16.msra.mxu0 0
    %633 = vmatprep.subr.bf16.mxu0 0
    %634 = vmatpush1.bf16.msra.mxu0 0
    %635 = vmatprep.subr.bf16.mxu0 0
    %636 = vmatpush1.bf16.msra.mxu0 0
    %637 = vmatprep.subr.bf16.mxu0 0
    %638 = vmatpush1.bf16.msra.mxu0 0
    %639 = vmatprep.mubr.bf16.mxu0 0
    %640 = vmatmul.mubr.bf16.gmra.mrb[0].mxu0 %v605
    %v641 = vpop.f32.mrb[0].mxu0
    %v642 = vadd.f32 0.0, %v641
    %v643 = vpop.f32.mrb[0].mxu0
    %v644 = vadd.f32 0.0, %v643
    %v645 = vpop.f32.mrb[0].mxu0
    %v646 = vpop.f32.mrb[0].mxu0
    %647 = vdwg.mxu0
    %v649 = vrot.slane %v642, 4
    %v651 = vadd.f32 %v228, %v649
    %v653 = vrot.slane %v644, 4
    %v655 = vadd.f32 %v290, %v653
    %v656 = vadd.f32 %v293, %v653
    %v657 = vtanh.pop %v651
    %v658 = vmul.f32 %v657, 0.5
    %v659 = vadd.f32 %v658, 0.5
    %v660 = vsel %vm323, %v657, %v659
    %v662 = vrot.slane %v554, 6
    %v664 = vmul.f32 %v660, %v662
    %666 = vrot.lane.b32.xlu0 %v660, 64
    %v667 = vpop.permute.xlu0 %666
    %v669 = vmul.f32 %v660, %v667
    %671 = vrot.lane.b32.xlu0 %v669, 32
    %v672 = vpop.permute.xlu0 %671
    %v674 = vadd.f32 %v664, %v672
    %v675 = vtanh.pop %v674
    %677 = vrot.lane.b32.xlu0 %v675, 64
    %v678 = vpop.permute.xlu0 %677
    %v680 = vmul.f32 %v660, %v678
    %v681 = vtanh.pop %v655
    %v682 = vtanh.pop %v656
    %v683 = vmul.f32 %v681, 0.5
    %v684 = vmul.f32 %v682, 0.5
    %v685 = vadd.f32 %v683, 0.5
    %v686 = vadd.f32 %v684, 0.5
    %v687 = vsel %vm323, %v681, %v685
    %v688 = vsel %vm323, %v682, %v686
    %v690 = vrot.slane %v578, 5
    %v692 = vmul.f32 %v687, %v690
    %v693 = vmul.f32 %v688, %v690
    %696 = vrot.lane.b32.xlu0 %v687, 64
    %v697 = vpop.permute.xlu0 %696
    %698 = vrot.lane.b32.xlu0 %v688, 64
    %v699 = vpop.permute.xlu0 %698
    %v702 = vmul.f32 %v687, %v697
    %v703 = vmul.f32 %v688, %v699
    %706 = vrot.lane.b32.xlu0 %v702, 32
    %v707 = vpop.permute.xlu0 %706
    %708 = vrot.lane.b32.xlu0 %v703, 32
    %v709 = vpop.permute.xlu0 %708
    %v712 = vadd.f32 %v692, %v707
    %v713 = vadd.f32 %v693, %v709
    %v714 = vtanh.pop %v712
    %v715 = vtanh.pop %v713
    %718 = vrot.lane.b32.xlu0 %v714, 64
    %v719 = vpop.permute.xlu0 %718
    %720 = vrot.lane.b32.xlu0 %v715, 64
    %v721 = vpop.permute.xlu0 %720
    %v724 = vmul.f32 %v687, %v719
    %v725 = vmul.f32 %v688, %v721
    %727 = vrot.lane.b32.xlu0 %v680, 32
    %v728 = vpop.permute.xlu0 %727
    %v730 = vsel %vm473, %v728, 0.0
    %v733 = vrot.slane %v724, 6
    %v734 = vrot.slane %v725, 6
    %v735 = vsel %vm334, %v733, %v734
    %736 = vrot.lane.b32.xlu0 %v735, 64
    %v737 = vpop.permute.xlu0 %736
    %v739 = vsel %vm473, 0.0, %v737
    %v741 = vrot.slane %v730, 4
    %v744 = vrot.slane %v739, 6
    %v746 = vsel %vm334, %v741, %v744
    %v747 = vpack.c.bf16 %v746, %v746
    %v749 = vsel %vm377, %v747, 0
    %751 = vmatprep.subr.bf16.mxu0 %v362
    %752 = vmatpush1.bf16.msra.mxu0 %v361
    %753 = vmatprep.subr.bf16.mxu0 %v364
    %754 = vmatpush1.bf16.msra.mxu0 %v363
    %755 = vmatprep.subr.bf16.mxu0 %v366
    %756 = vmatpush1.bf16.msra.mxu0 %v365
    %757 = vmatprep.subr.bf16.mxu0 %v368
    %758 = vmatpush1.bf16.msra.mxu0 %v367
    %759 = vmatprep.subr.bf16.mxu0 0
    %760 = vmatpush1.bf16.msra.mxu0 0
    %761 = vmatprep.subr.bf16.mxu0 0
    %762 = vmatpush1.bf16.msra.mxu0 0
    %763 = vmatprep.subr.bf16.mxu0 0
    %764 = vmatpush1.bf16.msra.mxu0 0
    %765 = vmatprep.subr.bf16.mxu0 0
    %766 = vmatpush1.bf16.msra.mxu0 0
    %767 = vmatprep.subr.bf16.mxu0 0
    %768 = vmatpush1.bf16.msra.mxu0 0
    %769 = vmatprep.subr.bf16.mxu0 0
    %770 = vmatpush1.bf16.msra.mxu0 0
    %771 = vmatprep.subr.bf16.mxu0 0
    %772 = vmatpush1.bf16.msra.mxu0 0
    %773 = vmatprep.subr.bf16.mxu0 0
    %774 = vmatpush1.bf16.msra.mxu0 0
    %775 = vmatprep.subr.bf16.mxu0 0
    %776 = vmatpush1.bf16.msra.mxu0 0
    %777 = vmatprep.subr.bf16.mxu0 0
    %778 = vmatpush1.bf16.msra.mxu0 0
    %779 = vmatprep.subr.bf16.mxu0 0
    %780 = vmatpush1.bf16.msra.mxu0 0
    %781 = vmatprep.subr.bf16.mxu0 0
    %782 = vmatpush1.bf16.msra.mxu0 0
    %783 = vmatprep.mubr.bf16.mxu0 0
    %784 = vmatmul.mubr.bf16.gmra.mrb[0].mxu0 %v749
    %v785 = vpop.f32.mrb[0].mxu0
    %v786 = vadd.f32 0.0, %v785
    %v787 = vpop.f32.mrb[0].mxu0
    %v788 = vadd.f32 0.0, %v787
    %v789 = vpop.f32.mrb[0].mxu0
    %v790 = vpop.f32.mrb[0].mxu0
    %791 = vdwg.mxu0
    %v793 = vrot.slane %v786, 2
    %v795 = vadd.f32 %v228, %v793
    %v797 = vrot.slane %v788, 1
    %v799 = vadd.f32 %v293, %v797
    %v800 = vtanh.pop %v795
    %v801 = vmul.f32 %v800, 0.5
    %v802 = vadd.f32 %v801, 0.5
    %v803 = vsel %vm323, %v800, %v802
    %v805 = vrot.slane %v674, 6
    %v807 = vmul.f32 %v803, %v805
    %809 = vrot.lane.b32.xlu0 %v803, 64
    %v810 = vpop.permute.xlu0 %809
    %v812 = vmul.f32 %v803, %v810
    %814 = vrot.lane.b32.xlu0 %v812, 32
    %v815 = vpop.permute.xlu0 %814
    %v817 = vadd.f32 %v807, %v815
    %v818 = vtanh.pop %v817
    %820 = vrot.lane.b32.xlu0 %v818, 64
    %v821 = vpop.permute.xlu0 %820
    %v823 = vmul.f32 %v803, %v821
    %v824 = vtanh.pop %v799
    %v825 = vmul.f32 %v824, 0.5
    %v826 = vadd.f32 %v825, 0.5
    %v827 = vsel %vm323, %v824, %v826
    %vm830 = vcmask 1042432
    %v831 = vrot.slane %v712, 5
    %v832 = vrot.slane %v713, 5
    %v833 = vsel %vm830, %v831, %v832
    %v835 = vmul.f32 %v827, %v833
    %837 = vrot.lane.b32.xlu0 %v827, 64
    %v838 = vpop.permute.xlu0 %837
    %v840 = vmul.f32 %v827, %v838
    %842 = vrot.lane.b32.xlu0 %v840, 32
    %v843 = vpop.permute.xlu0 %842
    %v845 = vadd.f32 %v835, %v843
    %v846 = vtanh.pop %v845
    %848 = vrot.lane.b32.xlu0 %v846, 64
    %v849 = vpop.permute.xlu0 %848
    %v851 = vmul.f32 %v827, %v849
    %853 = vrot.lane.b32.xlu0 %v823, 32
    %v854 = vpop.permute.xlu0 %853
    %v856 = vsel %vm473, %v854, 0.0
    %v858 = vrot.slane %v851, 1
    %859 = vrot.lane.b32.xlu0 %v858, 64
    %v860 = vpop.permute.xlu0 %859
    %v862 = vsel %vm473, 0.0, %v860
    %v864 = vrot.slane %v856, 6
    %v867 = vrot.slane %v862, 6
    %v869 = vsel %vm334, %v864, %v867
    %v870 = vpack.c.bf16 %v869, %v869
    %v872 = vsel %vm377, %v870, 0
    %874 = vmatprep.subr.bf16.mxu0 %v362
    %875 = vmatpush1.bf16.msra.mxu0 %v361
    %876 = vmatprep.subr.bf16.mxu0 %v364
    %877 = vmatpush1.bf16.msra.mxu0 %v363
    %878 = vmatprep.subr.bf16.mxu0 %v366
    %879 = vmatpush1.bf16.msra.mxu0 %v365
    %880 = vmatprep.subr.bf16.mxu0 %v368
    %881 = vmatpush1.bf16.msra.mxu0 %v367
    %882 = vmatprep.subr.bf16.mxu0 0
    %883 = vmatpush1.bf16.msra.mxu0 0
    %884 = vmatprep.subr.bf16.mxu0 0
    %885 = vmatpush1.bf16.msra.mxu0 0
    %886 = vmatprep.subr.bf16.mxu0 0
    %887 = vmatpush1.bf16.msra.mxu0 0
    %888 = vmatprep.subr.bf16.mxu0 0
    %889 = vmatpush1.bf16.msra.mxu0 0
    %890 = vmatprep.subr.bf16.mxu0 0
    %891 = vmatpush1.bf16.msra.mxu0 0
    %892 = vmatprep.subr.bf16.mxu0 0
    %893 = vmatpush1.bf16.msra.mxu0 0
    %894 = vmatprep.subr.bf16.mxu0 0
    %895 = vmatpush1.bf16.msra.mxu0 0
    %896 = vmatprep.subr.bf16.mxu0 0
    %897 = vmatpush1.bf16.msra.mxu0 0
    %898 = vmatprep.subr.bf16.mxu0 0
    %899 = vmatpush1.bf16.msra.mxu0 0
    %900 = vmatprep.subr.bf16.mxu0 0
    %901 = vmatpush1.bf16.msra.mxu0 0
    %902 = vmatprep.subr.bf16.mxu0 0
    %903 = vmatpush1.bf16.msra.mxu0 0
    %904 = vmatprep.subr.bf16.mxu0 0
    %905 = vmatpush1.bf16.msra.mxu0 0
    %906 = vmatprep.mubr.bf16.mxu0 0
    %907 = vmatmul.mubr.bf16.gmra.mrb[0].mxu0 %v872
    %v908 = vpop.f32.mrb[0].mxu0
    %v909 = vadd.f32 0.0, %v908
    %v910 = vpop.f32.mrb[0].mxu0
    %v911 = vadd.f32 0.0, %v910
    %v912 = vpop.f32.mrb[0].mxu0
    %v913 = vpop.f32.mrb[0].mxu0
    %914 = vdwg.mxu0
    %v915 = vadd.f32 %v231, %v909
    %v917 = vrot.slane %v911, 6
    %v919 = vadd.f32 %v293, %v917
    %v920 = vtanh.pop %v915
    %v921 = vmul.f32 %v920, 0.5
    %v922 = vadd.f32 %v921, 0.5
    %v923 = vsel %vm323, %v920, %v922
    %v925 = vrot.slane %v817, 6
    %v927 = vmul.f32 %v923, %v925
    %929 = vrot.lane.b32.xlu0 %v923, 64
    %v930 = vpop.permute.xlu0 %929
    %v932 = vmul.f32 %v923, %v930
    %934 = vrot.lane.b32.xlu0 %v932, 32
    %v935 = vpop.permute.xlu0 %934
    %v937 = vadd.f32 %v927, %v935
    %v938 = vtanh.pop %v937
    %940 = vrot.lane.b32.xlu0 %v938, 64
    %v941 = vpop.permute.xlu0 %940
    %v943 = vmul.f32 %v923, %v941
    %v944 = vtanh.pop %v919
    %v945 = vmul.f32 %v944, 0.5
    %v946 = vadd.f32 %v945, 0.5
    %v947 = vsel %vm323, %v944, %v946
    %v949 = vrot.slane %v845, 5
    %v951 = vmul.f32 %v947, %v949
    %953 = vrot.lane.b32.xlu0 %v947, 64
    %v954 = vpop.permute.xlu0 %953
    %v956 = vmul.f32 %v947, %v954
    %958 = vrot.lane.b32.xlu0 %v956, 32
    %v959 = vpop.permute.xlu0 %958
    %v961 = vadd.f32 %v951, %v959
    %v962 = vtanh.pop %v961
    %964 = vrot.lane.b32.xlu0 %v962, 64
    %v965 = vpop.permute.xlu0 %964
    %v967 = vmul.f32 %v947, %v965
    %969 = vrot.lane.b32.xlu0 %v943, 32
    %v970 = vpop.permute.xlu0 %969
    %v972 = vsel %vm473, %v970, 0.0
    %v974 = vrot.slane %v967, 4
    %975 = vrot.lane.b32.xlu0 %v974, 64
    %v976 = vpop.permute.xlu0 %975
    %v978 = vsel %vm473, 0.0, %v976
    %v980 = vrot.slane %v978, 6
    %v982 = vsel %vm334, %v972, %v980
    %v983 = vpack.c.bf16 %v982, %v982
    %v985 = vsel %vm377, %v983, 0
    %987 = vmatprep.subr.bf16.mxu0 %v362
    %988 = vmatpush1.bf16.msra.mxu0 %v361
    %989 = vmatprep.subr.bf16.mxu0 %v364
    %990 = vmatpush1.bf16.msra.mxu0 %v363
    %991 = vmatprep.subr.bf16.mxu0 %v366
    %992 = vmatpush1.bf16.msra.mxu0 %v365
    %993 = vmatprep.subr.bf16.mxu0 %v368
    %994 = vmatpush1.bf16.msra.mxu0 %v367
    %995 = vmatprep.subr.bf16.mxu0 0
    %996 = vmatpush1.bf16.msra.mxu0 0
    %997 = vmatprep.subr.bf16.mxu0 0
    %998 = vmatpush1.bf16.msra.mxu0 0
    %999 = vmatprep.subr.bf16.mxu0 0
    %1000 = vmatpush1.bf16.msra.mxu0 0
    %1001 = vmatprep.subr.bf16.mxu0 0
    %1002 = vmatpush1.bf16.msra.mxu0 0
    %1003 = vmatprep.subr.bf16.mxu0 0
    %1004 = vmatpush1.bf16.msra.mxu0 0
    %1005 = vmatprep.subr.bf16.mxu0 0
    %1006 = vmatpush1.bf16.msra.mxu0 0
    %1007 = vmatprep.subr.bf16.mxu0 0
    %1008 = vmatpush1.bf16.msra.mxu0 0
    %1009 = vmatprep.subr.bf16.mxu0 0
    %1010 = vmatpush1.bf16.msra.mxu0 0
    %1011 = vmatprep.subr.bf16.mxu0 0
    %1012 = vmatpush1.bf16.msra.mxu0 0
    %1013 = vmatprep.subr.bf16.mxu0 0
    %1014 = vmatpush1.bf16.msra.mxu0 0
    %1015 = vmatprep.subr.bf16.mxu0 0
    %1016 = vmatpush1.bf16.msra.mxu0 0
    %1017 = vmatprep.subr.bf16.mxu0 0
    %1018 = vmatpush1.bf16.msra.mxu0 0
    %1019 = vmatprep.mubr.bf16.mxu0 0
    %1020 = vmatmul.mubr.bf16.gmra.mrb[0].mxu0 %v985
    %v1021 = vpop.f32.mrb[0].mxu0
    %v1022 = vadd.f32 0.0, %v1021
    %v1023 = vpop.f32.mrb[0].mxu0
    %v1024 = vadd.f32 0.0, %v1023
    %v1025 = vpop.f32.mrb[0].mxu0
    %v1026 = vpop.f32.mrb[0].mxu0
    %1027 = vdwg.mxu0
    %v1029 = vrot.slane %v1022, 6
    %v1031 = vadd.f32 %v231, %v1029
    %v1033 = vrot.slane %v1024, 3
    %v1035 = vadd.f32 %v293, %v1033
    %v1036 = vadd.f32 %v298, %v1033
    %v1037 = vtanh.pop %v1031
    %v1038 = vmul.f32 %v1037, 0.5
    %v1039 = vadd.f32 %v1038, 0.5
    %v1040 = vsel %vm323, %v1037, %v1039
    %v1042 = vrot.slane %v937, 6
    %v1044 = vmul.f32 %v1040, %v1042
    %1046 = vrot.lane.b32.xlu0 %v1040, 64
    %v1047 = vpop.permute.xlu0 %1046
    %v1049 = vmul.f32 %v1040, %v1047
    %1051 = vrot.lane.b32.xlu0 %v1049, 32
    %v1052 = vpop.permute.xlu0 %1051
    %v1054 = vadd.f32 %v1044, %v1052
    %v1055 = vtanh.pop %v1054
    %1057 = vrot.lane.b32.xlu0 %v1055, 64
    %v1058 = vpop.permute.xlu0 %1057
    %v1060 = vmul.f32 %v1040, %v1058
    %v1061 = vtanh.pop %v1035
    %v1062 = vtanh.pop %v1036
    %v1063 = vmul.f32 %v1061, 0.5
    %v1064 = vmul.f32 %v1062, 0.5
    %v1065 = vadd.f32 %v1063, 0.5
    %v1066 = vadd.f32 %v1064, 0.5
    %v1067 = vsel %vm323, %v1061, %v1065
    %v1068 = vsel %vm323, %v1062, %v1066
    %v1070 = vrot.slane %v961, 5
    %v1072 = vmul.f32 %v1067, %v1070
    %v1073 = vmul.f32 %v1068, %v1070
    %1076 = vrot.lane.b32.xlu0 %v1067, 64
    %v1077 = vpop.permute.xlu0 %1076
    %1078 = vrot.lane.b32.xlu0 %v1068, 64
    %v1079 = vpop.permute.xlu0 %1078
    %v1082 = vmul.f32 %v1067, %v1077
    %v1083 = vmul.f32 %v1068, %v1079
    %1086 = vrot.lane.b32.xlu0 %v1082, 32
    %v1087 = vpop.permute.xlu0 %1086
    %1088 = vrot.lane.b32.xlu0 %v1083, 32
    %v1089 = vpop.permute.xlu0 %1088
    %v1092 = vadd.f32 %v1072, %v1087
    %v1093 = vadd.f32 %v1073, %v1089
    %v1094 = vtanh.pop %v1092
    %v1095 = vtanh.pop %v1093
    %1098 = vrot.lane.b32.xlu0 %v1094, 64
    %v1099 = vpop.permute.xlu0 %1098
    %1100 = vrot.lane.b32.xlu0 %v1095, 64
    %v1101 = vpop.permute.xlu0 %1100
    %v1104 = vmul.f32 %v1067, %v1099
    %v1105 = vmul.f32 %v1068, %v1101
    %1107 = vrot.lane.b32.xlu0 %v1060, 32
    %v1108 = vpop.permute.xlu0 %1107
    %v1110 = vsel %vm473, %v1108, 0.0
    %v1113 = vrot.slane %v1104, 7
    %v1114 = vrot.slane %v1105, 7
    %v1115 = vsel %vm96, %v1113, %v1114
    %1116 = vrot.lane.b32.xlu0 %v1115, 64
    %v1117 = vpop.permute.xlu0 %1116
    %v1119 = vsel %vm473, 0.0, %v1117
    %v1121 = vrot.slane %v1110, 2
    %v1124 = vrot.slane %v1119, 6
    %v1126 = vsel %vm334, %v1121, %v1124
    %v1127 = vpack.c.bf16 %v1126, %v1126
    %v1129 = vsel %vm377, %v1127, 0
    %1131 = vmatprep.subr.bf16.mxu0 %v362
    %1132 = vmatpush1.bf16.msra.mxu0 %v361
    %1133 = vmatprep.subr.bf16.mxu0 %v364
    %1134 = vmatpush1.bf16.msra.mxu0 %v363
    %1135 = vmatprep.subr.bf16.mxu0 %v366
    %1136 = vmatpush1.bf16.msra.mxu0 %v365
    %1137 = vmatprep.subr.bf16.mxu0 %v368
    %1138 = vmatpush1.bf16.msra.mxu0 %v367
    %1139 = vmatprep.subr.bf16.mxu0 0
    %1140 = vmatpush1.bf16.msra.mxu0 0
    %1141 = vmatprep.subr.bf16.mxu0 0
    %1142 = vmatpush1.bf16.msra.mxu0 0
    %1143 = vmatprep.subr.bf16.mxu0 0
    %1144 = vmatpush1.bf16.msra.mxu0 0
    %1145 = vmatprep.subr.bf16.mxu0 0
    %1146 = vmatpush1.bf16.msra.mxu0 0
    %1147 = vmatprep.subr.bf16.mxu0 0
    %1148 = vmatpush1.bf16.msra.mxu0 0
    %1149 = vmatprep.subr.bf16.mxu0 0
    %1150 = vmatpush1.bf16.msra.mxu0 0
    %1151 = vmatprep.subr.bf16.mxu0 0
    %1152 = vmatpush1.bf16.msra.mxu0 0
    %1153 = vmatprep.subr.bf16.mxu0 0
    %1154 = vmatpush1.bf16.msra.mxu0 0
    %1155 = vmatprep.subr.bf16.mxu0 0
    %1156 = vmatpush1.bf16.msra.mxu0 0
    %1157 = vmatprep.subr.bf16.mxu0 0
    %1158 = vmatpush1.bf16.msra.mxu0 0
    %1159 = vmatprep.subr.bf16.mxu0 0
    %1160 = vmatpush1.bf16.msra.mxu0 0
    %1161 = vmatprep.subr.bf16.mxu0 0
    %1162 = vmatpush1.bf16.msra.mxu0 0
    %1163 = vmatprep.mubr.bf16.mxu0 0
    %1164 = vmatmul.mubr.bf16.gmra.mrb[0].mxu0 %v1129
    %v1165 = vpop.f32.mrb[0].mxu0
    %v1166 = vadd.f32 0.0, %v1165
    %v1167 = vpop.f32.mrb[0].mxu0
    %v1168 = vadd.f32 0.0, %v1167
    %v1169 = vpop.f32.mrb[0].mxu0
    %v1170 = vpop.f32.mrb[0].mxu0
    %1171 = vdwg.mxu0
    %v1173 = vrot.slane %v1166, 4
    %v1175 = vadd.f32 %v231, %v1173
    %v1176 = vadd.f32 %v298, %v1168
    %v1177 = vtanh.pop %v1175
    %v1178 = vmul.f32 %v1177, 0.5
    %v1179 = vadd.f32 %v1178, 0.5
    %v1180 = vsel %vm323, %v1177, %v1179
    %v1182 = vrot.slane %v1054, 6
    %v1184 = vmul.f32 %v1180, %v1182
    %1186 = vrot.lane.b32.xlu0 %v1180, 64
    %v1187 = vpop.permute.xlu0 %1186
    %v1189 = vmul.f32 %v1180, %v1187
    %1191 = vrot.lane.b32.xlu0 %v1189, 32
    %v1192 = vpop.permute.xlu0 %1191
    %v1194 = vadd.f32 %v1184, %v1192
    %v1195 = vtanh.pop %v1194
    %1197 = vrot.lane.b32.xlu0 %v1195, 64
    %v1198 = vpop.permute.xlu0 %1197
    %v1200 = vmul.f32 %v1180, %v1198
    %v1201 = vtanh.pop %v1176
    %v1202 = vmul.f32 %v1201, 0.5
    %v1203 = vadd.f32 %v1202, 0.5
    %v1204 = vsel %vm323, %v1201, %v1203
    %v1207 = vrot.slane %v1092, 5
    %v1208 = vrot.slane %v1093, 5
    %v1209 = vsel %vm830, %v1207, %v1208
    %v1211 = vmul.f32 %v1204, %v1209
    %1213 = vrot.lane.b32.xlu0 %v1204, 64
    %v1214 = vpop.permute.xlu0 %1213
    %v1216 = vmul.f32 %v1204, %v1214
    %1218 = vrot.lane.b32.xlu0 %v1216, 32
    %v1219 = vpop.permute.xlu0 %1218
    %v1221 = vadd.f32 %v1211, %v1219
    %v1222 = vtanh.pop %v1221
    %1224 = vrot.lane.b32.xlu0 %v1222, 64
    %v1225 = vpop.permute.xlu0 %1224
    %v1227 = vmul.f32 %v1204, %v1225
    %1229 = vrot.lane.b32.xlu0 %v1200, 32
    %v1230 = vpop.permute.xlu0 %1229
    %v1232 = vsel %vm473, %v1230, 0.0
    %v1234 = vrot.slane %v1227, 2
    %1235 = vrot.lane.b32.xlu0 %v1234, 64
    %v1236 = vpop.permute.xlu0 %1235
    %v1238 = vsel %vm473, 0.0, %v1236
    %v1240 = vrot.slane %v1232, 4
    %v1243 = vrot.slane %v1238, 6
    %v1245 = vsel %vm334, %v1240, %v1243
    %v1246 = vpack.c.bf16 %v1245, %v1245
    %v1248 = vsel %vm377, %v1246, 0
    %1250 = vmatprep.subr.bf16.mxu0 %v362
    %1251 = vmatpush1.bf16.msra.mxu0 %v361
    %1252 = vmatprep.subr.bf16.mxu0 %v364
    %1253 = vmatpush1.bf16.msra.mxu0 %v363
    %1254 = vmatprep.subr.bf16.mxu0 %v366
    %1255 = vmatpush1.bf16.msra.mxu0 %v365
    %1256 = vmatprep.subr.bf16.mxu0 %v368
    %1257 = vmatpush1.bf16.msra.mxu0 %v367
    %1258 = vmatprep.subr.bf16.mxu0 0
    %1259 = vmatpush1.bf16.msra.mxu0 0
    %1260 = vmatprep.subr.bf16.mxu0 0
    %1261 = vmatpush1.bf16.msra.mxu0 0
    %1262 = vmatprep.subr.bf16.mxu0 0
    %1263 = vmatpush1.bf16.msra.mxu0 0
    %1264 = vmatprep.subr.bf16.mxu0 0
    %1265 = vmatpush1.bf16.msra.mxu0 0
    %1266 = vmatprep.subr.bf16.mxu0 0
    %1267 = vmatpush1.bf16.msra.mxu0 0
    %1268 = vmatprep.subr.bf16.mxu0 0
    %1269 = vmatpush1.bf16.msra.mxu0 0
    %1270 = vmatprep.subr.bf16.mxu0 0
    %1271 = vmatpush1.bf16.msra.mxu0 0
    %1272 = vmatprep.subr.bf16.mxu0 0
    %1273 = vmatpush1.bf16.msra.mxu0 0
    %1274 = vmatprep.subr.bf16.mxu0 0
    %1275 = vmatpush1.bf16.msra.mxu0 0
    %1276 = vmatprep.subr.bf16.mxu0 0
    %1277 = vmatpush1.bf16.msra.mxu0 0
    %1278 = vmatprep.subr.bf16.mxu0 0
    %1279 = vmatpush1.bf16.msra.mxu0 0
    %1280 = vmatprep.subr.bf16.mxu0 0
    %1281 = vmatpush1.bf16.msra.mxu0 0
    %1282 = vmatprep.mubr.bf16.mxu0 0
    %1283 = vmatmul.mubr.bf16.gmra.mrb[0].mxu0 %v1248
    %v1284 = vpop.f32.mrb[0].mxu0
    %v1285 = vadd.f32 0.0, %v1284
    %v1286 = vpop.f32.mrb[0].mxu0
    %v1287 = vadd.f32 0.0, %v1286
    %v1288 = vpop.f32.mrb[0].mxu0
    %v1289 = vpop.f32.mrb[0].mxu0
    %1290 = vdwg.mxu0
    %v1292 = vrot.slane %v1285, 2
    %v1294 = vadd.f32 %v231, %v1292
    %v1296 = vrot.slane %v1287, 5
    %v1298 = vadd.f32 %v298, %v1296
    %v1299 = vtanh.pop %v1294
    %v1300 = vmul.f32 %v1299, 0.5
    %v1301 = vadd.f32 %v1300, 0.5
    %v1302 = vsel %vm323, %v1299, %v1301
    %v1304 = vrot.slane %v1194, 6
    %v1306 = vmul.f32 %v1302, %v1304
    %1308 = vrot.lane.b32.xlu0 %v1302, 64
    %v1309 = vpop.permute.xlu0 %1308
    %v1311 = vmul.f32 %v1302, %v1309
    %1313 = vrot.lane.b32.xlu0 %v1311, 32
    %v1314 = vpop.permute.xlu0 %1313
    %v1316 = vadd.f32 %v1306, %v1314
    %v1317 = vtanh.pop %v1316
    %1319 = vrot.lane.b32.xlu0 %v1317, 64
    %v1320 = vpop.permute.xlu0 %1319
    %v1322 = vmul.f32 %v1302, %v1320
    %v1323 = vtanh.pop %v1298
    %v1324 = vmul.f32 %v1323, 0.5
    %v1325 = vadd.f32 %v1324, 0.5
    %v1326 = vsel %vm323, %v1323, %v1325
    %v1328 = vrot.slane %v1221, 5
    %v1330 = vmul.f32 %v1326, %v1328
    %1332 = vrot.lane.b32.xlu0 %v1326, 64
    %v1333 = vpop.permute.xlu0 %1332
    %v1335 = vmul.f32 %v1326, %v1333
    %1337 = vrot.lane.b32.xlu0 %v1335, 32
    %v1338 = vpop.permute.xlu0 %1337
    %v1340 = vadd.f32 %v1330, %v1338
    %v1341 = vtanh.pop %v1340
    %1343 = vrot.lane.b32.xlu0 %v1341, 64
    %v1344 = vpop.permute.xlu0 %1343
    %v1346 = vmul.f32 %v1326, %v1344
    %v1347 = vld [vmem:[%s1] sm:$0x3]
    %v1348 = vlaneseq
    %v1349 = vshrl.u32 %v1348, 7
    %v1350 = vsub.s32 0, %v1349
    %v1351 = vrot.slane %v1347, %v1350
    %1353 = vbcast.lane.b32.xlu0 %v1351, 256
    %v1354 = vpop.permute.xlu0 %1353
    %s1356 = sor.u32 256, 8
    %1357 = vbcast.lane.b32.xlu0 %v1351, %s1356
    %v1358 = vpop.permute.xlu0 %1357
    %v1359 = vlaneseq
    %v1360 = vshrl.u32 %v1359, 7
    %v1361 = vsub.s32 1, %v1360
    %v1362 = vrot.slane %v1347, %v1361
    %1364 = vbcast.lane.b32.xlu0 %v1362, 256
    %v1365 = vpop.permute.xlu0 %1364
    %s1367 = sor.u32 256, 8
    %1368 = vbcast.lane.b32.xlu0 %v1362, %s1367
    %v1369 = vpop.permute.xlu0 %1368
    %vm1370 = vcmp.eq.s32.totalorder %v1354, %v320
    %vm1371 = vcmp.eq.s32.totalorder %v1358, %v320
    %vm1372 = vcmp.eq.s32.totalorder %v1365, %v320
    %vm1373 = vcmp.eq.s32.totalorder %v1369, %v320
    %v1374 = vsel %vm1370, 1.0, 0.0
    %v1375 = vsel %vm1371, 1.0, 0.0
    %v1376 = vsel %vm1372, 1.0, 0.0
    %v1377 = vsel %vm1373, 1.0, 0.0
    %v1379 = vrot.slane %v1346, 5
    %1380 = vrot.lane.b32.xlu0 %v1379, 32
    %v1381 = vpop.permute.xlu0 %1380
    %vm1382 = vcmask 23552
    %v1384 = vsel %vm1382, %v1374, 0
    %v1387 = vsel %vm1382, %v1375, 0
    %v1390 = vsel %vm1382, %v1376, 0
    %v1393 = vsel %vm1382, %v1377, 0
    %v1395 = vsel %vm830, %v1381, 0
    %1397 = vmatprep.subr.mxu0 0.0
    %1398 = vmatpush1.msra.mxu0 %v1395
    %1399 = vmatprep.subr.mxu0 0.0
    %1400 = vmatpush1.msra.mxu0 0.0
    %1401 = vmatprep.subr.mxu0 0.0
    %1402 = vmatpush1.msra.mxu0 0.0
    %1403 = vmatprep.subr.mxu0 0.0
    %1404 = vmatpush1.msra.mxu0 0.0
    %1405 = vmatprep.subr.mxu0 0.0
    %1406 = vmatpush1.msra.mxu0 0.0
    %1407 = vmatprep.subr.mxu0 0.0
    %1408 = vmatpush1.msra.mxu0 0.0
    %1409 = vmatprep.subr.mxu0 0.0
    %1410 = vmatpush1.msra.mxu0 0.0
    %1411 = vmatprep.subr.mxu0 0.0
    %1412 = vmatpush1.msra.mxu0 0.0
    %1413 = vmatprep.subr.mxu0 0.0
    %1414 = vmatpush1.msra.mxu0 0.0
    %1415 = vmatprep.subr.mxu0 0.0
    %1416 = vmatpush1.msra.mxu0 0.0
    %1417 = vmatprep.subr.mxu0 0.0
    %1418 = vmatpush1.msra.mxu0 0.0
    %1419 = vmatprep.subr.mxu0 0.0
    %1420 = vmatpush1.msra.mxu0 0.0
    %1421 = vmatprep.subr.mxu0 0.0
    %1422 = vmatpush1.msra.mxu0 0.0
    %1423 = vmatprep.subr.mxu0 0.0
    %1424 = vmatpush1.msra.mxu0 0.0
    %1425 = vmatprep.subr.mxu0 0.0
    %1426 = vmatpush1.msra.mxu0 0.0
    %1427 = vmatprep.subr.mxu0 0.0
    %1428 = vmatpush1.msra.mxu0 0.0
    %1429 = vmatprep.subr.mxu0 0.0
    %1430 = vmatpush1.msra.mxu0 0.0
    %1431 = vmatprep.subr.mxu0 0.0
    %1432 = vmatpush1.msra.mxu0 0.0
    %1433 = vmatprep.subr.mxu0 0.0
    %1434 = vmatpush1.msra.mxu0 0.0
    %1435 = vmatprep.subr.mxu0 0.0
    %1436 = vmatpush1.msra.mxu0 0.0
    %1437 = vmatprep.subr.mxu0 0.0
    %1438 = vmatpush1.msra.mxu0 0.0
    %1439 = vmatprep.subr.mxu0 0.0
    %1440 = vmatpush1.msra.mxu0 0.0
    %1441 = vmatprep.subr.mxu0 0.0
    %1442 = vmatpush1.msra.mxu0 0.0
    %1443 = vmatprep.subr.mxu0 0.0
    %1444 = vmatpush1.msra.mxu0 0.0
    %1445 = vmatprep.subr.mxu0 0.0
    %1446 = vmatpush1.msra.mxu0 0.0
    %1447 = vmatprep.subr.mxu0 0.0
    %1448 = vmatpush1.msra.mxu0 0.0
    %1449 = vmatprep.subr.mxu0 0.0
    %1450 = vmatpush1.msra.mxu0 0.0
    %1451 = vmatprep.subr.mxu0 0.0
    %1452 = vmatpush1.msra.mxu0 0.0
    %1453 = vmatprep.subr.mxu0 0.0
    %1454 = vmatpush1.msra.mxu0 0.0
    %1455 = vmatprep.subr.mxu0 0.0
    %1456 = vmatpush1.msra.mxu0 0.0
    %1457 = vmatprep.subr.mxu0 0.0
    %1458 = vmatpush1.msra.mxu0 0.0
    %1459 = vmatprep.subr.mxu0 0.0
    %1460 = vmatpush1.msra.mxu0 0.0
    %1461 = vmatprep.mubr.f32.mxu0 0.0
    %1462 = vmatmul.mubr.f32.gmra.mrb[0].mxu0 %v1384
    %v1463 = vpop.f32.mrb[0].mxu0
    %v1464 = vadd.f32 0.0, %v1463
    %v1465 = vpop.f32.mrb[0].mxu0
    %1466 = vmatprep.mubr.f32.mxu0 0.0
    %1467 = vmatmul.mubr.f32.gmra.mrb[0].mxu0 %v1387
    %v1468 = vpop.f32.mrb[0].mxu0
    %v1469 = vadd.f32 0.0, %v1468
    %v1470 = vpop.f32.mrb[0].mxu0
    %1471 = vmatprep.mubr.f32.mxu0 0.0
    %1472 = vmatmul.mubr.f32.gmra.mrb[0].mxu0 %v1390
    %v1473 = vpop.f32.mrb[0].mxu0
    %v1474 = vadd.f32 0.0, %v1473
    %v1475 = vpop.f32.mrb[0].mxu0
    %1476 = vmatprep.mubr.f32.mxu0 0.0
    %1477 = vmatmul.mubr.f32.gmra.mrb[0].mxu0 %v1393
    %v1478 = vpop.f32.mrb[0].mxu0
    %v1479 = vadd.f32 0.0, %v1478
    %v1480 = vpop.f32.mrb[0].mxu0
    %1481 = vdwg.mxu0
    %v1482 = vlaneseq
    %v1483 = vshrl.u32 %v1482, 7
    %v1484 = vadd.s32 %v1483, 8
    %vm1485 = vcmp.eq.s32.totalorder %v1483, 15
    %vm1486 = vcmp.eq.s32.totalorder %v1484, 15
    %v1488 = vcombine.high %v1322, %v1322
    %v1490 = vunpack.c.l.s4 1966171168
    %v1491 = vunpack.c.0.s8 %v1490
    %v1492 = vlaneseq
    %v1493 = vshrl.u32 %v1492, 7
    %v1494 = vsub.s32 %v1491, %v1493
    %v1495 = vrot.slane %v1488, %v1494
    %v1496 = vcombine.high %v1495, %v1495
    %v1498 = vunpack.c.l.s4 1966171168
    %v1499 = vunpack.c.0.s8 %v1498
    %v1500 = vlaneseq
    %v1501 = vshrl.u32 %v1500, 7
    %v1502 = vsub.s32 %v1499, %v1501
    %v1503 = vrot.slane %v1495, %v1502
    %v1505 = vunpack.c.l.s4 1966171168
    %v1506 = vunpack.c.0.s8 %v1505
    %v1507 = vlaneseq
    %v1508 = vshrl.u32 %v1507, 7
    %v1509 = vsub.s32 %v1506, %v1508
    %v1510 = vrot.slane %v1496, %v1509
    %v1511 = vcombine.high %v1503, %v1503
    %v1512 = vcombine.high %v1510, %v1510
    %v1513 = vsel %vm1485, 1, 0
    %v1514 = vsel %vm1486, 1, 0
    %vm1515 = vcmp.eq.s32.totalorder %v1513, 1
    %vm1516 = vcmp.eq.s32.totalorder %v1514, 1
    %v1517 = vlaneseq
    %v1518 = vshrl.u32 %v1517, 7
    %v1519 = vsub.s32 0, %v1518
    %v1520 = vrot.slane %v1511, %v1519
    %v1521 = vlaneseq
    %v1522 = vshrl.u32 %v1521, 7
    %v1523 = vsub.s32 0, %v1522
    %v1524 = vrot.slane %v1512, %v1523
    %v1527 = vsel %vm1515, %v1520, 0.0
    %v1528 = vsel %vm1516, %v1520, 0.0
    %v1529 = vsel %vm1515, %v1524, 0.0
    %v1530 = vsel %vm1516, %v1524, 0.0
    %1535 = vrot.lane.b32.xlu0 %v1527, 32
    %v1536 = vpop.permute.xlu0 %1535
    %1537 = vrot.lane.b32.xlu0 %v1528, 32
    %v1538 = vpop.permute.xlu0 %1537
    %1539 = vrot.lane.b32.xlu0 %v1529, 32
    %v1540 = vpop.permute.xlu0 %1539
    %1541 = vrot.lane.b32.xlu0 %v1530, 32
    %v1542 = vpop.permute.xlu0 %1541
    %v1547 = vadd.f32 %v1464, %v1536
    %v1548 = vadd.f32 %v1469, %v1538
    %v1549 = vadd.f32 %v1474, %v1540
    %v1550 = vadd.f32 %v1479, %v1542
    %v1551 = vtanh.pop %v1547
    %v1552 = vtanh.pop %v1548
    %v1553 = vtanh.pop %v1549
    %v1554 = vtanh.pop %v1550
    %v1555 = vld [vmem:[%s9] sm:$0x1]
    %v1557 = vlaneseq
    %v1558 = vshrl.u32 %v1557, 7
    %v1559 = vsub.s32 0, %v1558
    %v1560 = vrot.slane %v1555, %v1559
    %v1562 = vmul.f32 %v1551, %v1560
    %v1563 = vmul.f32 %v1552, %v1560
    %v1564 = vmul.f32 %v1553, %v1560
    %v1565 = vmul.f32 %v1554, %v1560
    %v1566 = vsel %vm473, %v1562, 0.0
    %1567 = vadd.xlane.f32.xlu0 %v1566
    %v1568 = vpop.xlane.xlu0 %1567
    %v1569 = vsel %vm473, %v1563, 0.0
    %1570 = vadd.xlane.f32.xlu0 %v1569
    %v1571 = vpop.xlane.xlu0 %1570
    %v1572 = vsel %vm473, %v1564, 0.0
    %1573 = vadd.xlane.f32.xlu0 %v1572
    %v1574 = vpop.xlane.xlu0 %1573
    %v1575 = vsel %vm473, %v1565, 0.0
    %1576 = vadd.xlane.f32.xlu0 %v1575
    %v1577 = vpop.xlane.xlu0 %1576
    %v1578 = vld [vmem:[#allocation2] sm:$0x1]
    %v1580 = vlaneseq
    %v1581 = vshrl.u32 %v1580, 7
    %v1582 = vsub.s32 0, %v1581
    %v1583 = vrot.slane %v1578, %v1582
    %1584 = vset.pattern.permute.xlu0 0
    %1585 = vperm.xlu0 %1584, %v1583
    %v1586 = vpop.permute.xlu0 %1585
    %v1588 = vadd.f32 %v1568, %v1586
    %v1589 = vadd.f32 %v1571, %v1586
    %v1590 = vadd.f32 %v1574, %v1586
    %v1591 = vadd.f32 %v1577, %v1586
    %v1596 = vlaneseq
    %v1597 = vshrl.u32 %v1596, 7
    %v1598 = vsub.s32 %v320, %v1597
    %v1599 = vrot.slane %v1588, %v1598
    %v1600 = vadd.s32 %v320, 4294967288
    %v1601 = vlaneseq
    %v1602 = vshrl.u32 %v1601, 7
    %v1603 = vsub.s32 %v1600, %v1602
    %v1604 = vrot.slane %v1589, %v1603
    %vm1605 = vcmask 130112
    %v1606 = vsel %vm1605, %v1604, %v1599
    %v1607 = vlaneseq
    %v1608 = vshrl.u32 %v1607, 7
    %v1609 = vsub.s32 %v320, %v1608
    %v1610 = vrot.slane %v1590, %v1609
    %v1611 = vlaneseq
    %v1612 = vshrl.u32 %v1611, 7
    %v1613 = vsub.s32 %v1600, %v1612
    %v1614 = vrot.slane %v1591, %v1613
    %v1615 = vsel %vm1605, %v1614, %v1610
    %vm1616 = vcmask 1041409
    %v1617 = vsel %vm1616, %v1615, %v1606
    %vm1619 = vcmask 123904
    %v1620 = vsel %vm1619, %v1617, -inf
    %1621 = vmax.xlane.f32.xlu0 %v1620
    %v1622 = vpop.xlane.xlu0 %1621
    %v1624 = vlaneseq
    %v1625 = vshrl.u32 %v1624, 7
    %v1626 = vsub.s32 0, %v1625
    %v1627 = vrot.slane %v1622, %v1626
    %v1628 = vlaneseq
    %v1629 = vshrl.u32 %v1628, 7
    %v1630 = vsub.s32 1, %v1629
    %v1631 = vrot.slane %v1622, %v1630
    %v1634 = vsub.f32 %v1588, %v1627
    %v1635 = vsub.f32 %v1589, %v1627
    %v1636 = vsub.f32 %v1590, %v1631
    %v1637 = vsub.f32 %v1591, %v1631
    %v1638 = vmul.f32 %v1634, 1.442695
    %v1639 = vpow.pop %v1638
    %v1640 = vmul.f32 %v1635, 1.442695
    %v1641 = vpow.pop %v1640
    %v1642 = vmul.f32 %v1636, 1.442695
    %v1643 = vpow.pop %v1642
    %v1644 = vmul.f32 %v1637, 1.442695
    %v1645 = vpow.pop %v1644
    %1650 = vset.pattern.permute.xlu0 0
    %1651 = vperm.xlu0 %1650, %v1639
    %v1652 = vpop.permute.xlu0 %1651
    %1653 = vset.pattern.permute.xlu0 0
    %1654 = vperm.xlu0 %1653, %v1641
    %v1655 = vpop.permute.xlu0 %1654
    %1656 = vset.pattern.permute.xlu0 0
    %1657 = vperm.xlu0 %1656, %v1643
    %v1658 = vpop.permute.xlu0 %1657
    %1659 = vset.pattern.permute.xlu0 0
    %1660 = vperm.xlu0 %1659, %v1645
    %v1661 = vpop.permute.xlu0 %1660
    %v1662 = vlaneseq
    %v1663 = vshrl.u32 %v1662, 7
    %v1664 = vsub.s32 %v320, %v1663
    %v1665 = vrot.slane %v1652, %v1664
    %v1666 = vlaneseq
    %v1667 = vshrl.u32 %v1666, 7
    %v1668 = vsub.s32 %v1600, %v1667
    %v1669 = vrot.slane %v1655, %v1668
    %v1670 = vsel %vm1605, %v1669, %v1665
    %v1671 = vlaneseq
    %v1672 = vshrl.u32 %v1671, 7
    %v1673 = vsub.s32 %v320, %v1672
    %v1674 = vrot.slane %v1658, %v1673
    %v1675 = vlaneseq
    %v1676 = vshrl.u32 %v1675, 7
    %v1677 = vsub.s32 %v1600, %v1676
    %v1678 = vrot.slane %v1661, %v1677
    %v1679 = vsel %vm1605, %v1678, %v1674
    %v1680 = vsel %vm1616, %v1679, %v1670
    %v1682 = vsel %vm1619, %v1680, 0.0
    %1683 = vadd.xlane.f32.xlu0 %v1682
    %v1684 = vpop.xlane.xlu0 %1683
    %v1685 = vrcp.pop %v1684
    %v1687 = vlaneseq
    %v1688 = vshrl.u32 %v1687, 7
    %v1689 = vsub.s32 0, %v1688
    %v1690 = vrot.slane %v1685, %v1689
    %v1691 = vlaneseq
    %v1692 = vshrl.u32 %v1691, 7
    %v1693 = vsub.s32 1, %v1692
    %v1694 = vrot.slane %v1685, %v1693
    %v1697 = vmul.f32 %v1639, %v1690
    %v1698 = vmul.f32 %v1641, %v1690
    %v1699 = vmul.f32 %v1643, %v1694
    %v1700 = vmul.f32 %v1645, %v1694
    %1702 = vset.pattern.permute.xlu0 0
    %1703 = vperm.xlu0 %1702, %v1697
    %v1704 = vpop.permute.xlu0 %1703
    %1707 = vset.pattern.permute.xlu0 0
    %1708 = vperm.xlu0 %1707, %v1698
    %v1709 = vpop.permute.xlu0 %1708
    %1712 = vset.pattern.permute.xlu0 0
    %1713 = vperm.xlu0 %1712, %v1699
    %v1714 = vpop.permute.xlu0 %1713
    %1717 = vset.pattern.permute.xlu0 0
    %1718 = vperm.xlu0 %1717, %v1700
    %v1719 = vpop.permute.xlu0 %1718
    %v1721 = vmul.f32 %v1547, %v1704
    %v1722 = vmul.f32 %v1548, %v1709
    %v1723 = vmul.f32 %v1549, %v1714
    %v1724 = vmul.f32 %v1550, %v1719
    %v1725 = vsel %vm473, %v1721, 0.0
    %v1726 = vsel %vm473, %v1722, 0.0
    %v1727 = vadd.f32 %v1725, %v1726
    %v1728 = vrot.slane %v1727, 4
    %v1729 = vadd.f32 %v1727, %v1728
    %v1730 = vrot.slane %v1729, 2
    %v1731 = vadd.f32 %v1729, %v1730
    %v1732 = vrot.slane %v1731, 1
    %v1733 = vadd.f32 %v1731, %v1732
    %v1734 = vsel %vm473, %v1723, 0.0
    %v1735 = vsel %vm473, %v1724, 0.0
    %v1736 = vadd.f32 %v1734, %v1735
    %v1737 = vrot.slane %v1736, 4
    %v1738 = vadd.f32 %v1736, %v1737
    %v1739 = vrot.slane %v1738, 2
    %v1740 = vadd.f32 %v1738, %v1739
    %v1741 = vrot.slane %v1740, 1
    %v1742 = vadd.f32 %v1740, %v1741
    %v1743 = vmax.f32 %v1733, 0.0
    %v1744 = vmax.f32 %v1742, 0.0
    %v1745 = vlaneseq
    %v1746 = vshrl.u32 %v1745, 7
    %v1747 = vsub.s32 %v320, %v1746
    %v1748 = vrot.slane %v1704, %v1747
    %v1749 = vlaneseq
    %v1750 = vshrl.u32 %v1749, 7
    %v1751 = vsub.s32 %v1600, %v1750
    %v1752 = vrot.slane %v1709, %v1751
    %v1753 = vsel %vm1605, %v1752, %v1748
    %v1754 = vlaneseq
    %v1755 = vshrl.u32 %v1754, 7
    %v1756 = vsub.s32 %v320, %v1755
    %v1757 = vrot.slane %v1714, %v1756
    %v1758 = vlaneseq
    %v1759 = vshrl.u32 %v1758, 7
    %v1760 = vsub.s32 %v1600, %v1759
    %v1761 = vrot.slane %v1719, %v1760
    %v1762 = vsel %vm1605, %v1761, %v1757
    %v1763 = vsel %vm1616, %v1762, %v1753
    %1765 = vst.msk [vmem:[#allocation5] sm:$0x3] %vm1619, %v1763
    %v1766 = vpack.c.bf16 %v1743, %v1743
    %v1767 = vpack.c.bf16 %v1744, %v1744
    %v1768 = vld [vmem:[%s11] sm:$0xff]
    %v1769 = vld [vmem:[%s11 + $0x8] sm:$0xff]
    %v1770 = vld [vmem:[%s11 + $0x10] sm:$0xff]
    %v1771 = vld [vmem:[%s11 + $0x18] sm:$0xff]
    %v1772 = vld [vmem:[%s13] sm:$0x3]
    %v1774 = vlaneseq
    %v1775 = vshrl.u32 %v1774, 7
    %v1776 = vsub.s32 0, %v1775
    %v1777 = vrot.slane %v1772, %v1776
    %v1778 = vlaneseq
    %v1779 = vshrl.u32 %v1778, 7
    %v1780 = vsub.s32 1, %v1779
    %v1781 = vrot.slane %v1772, %v1780
    %v1786 = vunpack.c.l.b16 %v1766
    %v1787 = vunpack.c.l.b16 %v1767
    %v1788 = vsel %vm1616, %v1787, %v1786
    %v1789 = vpack.c.b16 %v1788, %v1788
    %v1794 = vunpack.c.l.b16 %v1768
    %v1795 = vunpack.c.h.b16 %v1768
    %v1796 = vunpack.c.l.b16 %v1769
    %v1797 = vunpack.c.h.b16 %v1769
    %v1798 = vunpack.c.l.b16 %v1770
    %v1799 = vunpack.c.h.b16 %v1770
    %v1800 = vunpack.c.l.b16 %v1771
    %v1801 = vunpack.c.h.b16 %v1771
    %v1802 = vpack.c.b16 %v1796, %v1794
    %v1803 = vpack.c.b16 %v1797, %v1795
    %v1804 = vpack.c.b16 %v1800, %v1798
    %v1805 = vpack.c.b16 %v1801, %v1799
    %v1811 = vsel %vm473, %v1789, 0
    %1813 = vmatprep.subr.bf16.mxu0 %v1803
    %1814 = vmatpush1.bf16.msra.mxu0 %v1802
    %1815 = vmatprep.subr.bf16.mxu0 %v1805
    %1816 = vmatpush1.bf16.msra.mxu0 %v1804
    %1817 = vmatprep.subr.bf16.mxu0 0
    %1818 = vmatpush1.bf16.msra.mxu0 0
    %1819 = vmatprep.subr.bf16.mxu0 0
    %1820 = vmatpush1.bf16.msra.mxu0 0
    %1821 = vmatprep.subr.bf16.mxu0 0
    %1822 = vmatpush1.bf16.msra.mxu0 0
    %1823 = vmatprep.subr.bf16.mxu0 0
    %1824 = vmatpush1.bf16.msra.mxu0 0
    %1825 = vmatprep.subr.bf16.mxu0 0
    %1826 = vmatpush1.bf16.msra.mxu0 0
    %1827 = vmatprep.subr.bf16.mxu0 0
    %1828 = vmatpush1.bf16.msra.mxu0 0
    %1829 = vmatprep.subr.bf16.mxu0 0
    %1830 = vmatpush1.bf16.msra.mxu0 0
    %1831 = vmatprep.subr.bf16.mxu0 0
    %1832 = vmatpush1.bf16.msra.mxu0 0
    %1833 = vmatprep.subr.bf16.mxu0 0
    %1834 = vmatpush1.bf16.msra.mxu0 0
    %1835 = vmatprep.subr.bf16.mxu0 0
    %1836 = vmatpush1.bf16.msra.mxu0 0
    %1837 = vmatprep.subr.bf16.mxu0 0
    %1838 = vmatpush1.bf16.msra.mxu0 0
    %1839 = vmatprep.subr.bf16.mxu0 0
    %1840 = vmatpush1.bf16.msra.mxu0 0
    %1841 = vmatprep.subr.bf16.mxu0 0
    %1842 = vmatpush1.bf16.msra.mxu0 0
    %1843 = vmatprep.subr.bf16.mxu0 0
    %1844 = vmatpush1.bf16.msra.mxu0 0
    %1845 = vmatprep.mubr.bf16.mxu0 0
    %1846 = vmatmul.mubr.bf16.gmra.mrb[0].mxu0 %v1811
    %v1847 = vpop.f32.mrb[0].mxu0
    %v1848 = vadd.f32 %v1777, %v1847
    %v1849 = vpop.f32.mrb[0].mxu0
    %v1850 = vadd.f32 %v1781, %v1849
    %v1851 = vpop.f32.mrb[0].mxu0
    %v1852 = vpop.f32.mrb[0].mxu0
    %1853 = vdwg.mxu0
    %v1862 = vunpack.c.l.b16 %v311
    %v1863 = vunpack.c.h.b16 %v311
    %v1864 = vunpack.c.l.b16 %v312
    %v1865 = vunpack.c.h.b16 %v312
    %v1866 = vunpack.c.l.b16 %v313
    %v1867 = vunpack.c.h.b16 %v313
    %v1868 = vunpack.c.l.b16 %v314
    %v1869 = vunpack.c.h.b16 %v314
    %v1870 = vunpack.c.l.b16 %v315
    %v1871 = vunpack.c.h.b16 %v315
    %v1872 = vunpack.c.l.b16 %v316
    %v1873 = vunpack.c.h.b16 %v316
    %v1874 = vunpack.c.l.b16 %v317
    %v1875 = vunpack.c.h.b16 %v317
    %v1876 = vunpack.c.l.b16 %v318
    %v1877 = vunpack.c.h.b16 %v318
    %v1878 = vpack.c.b16 %v1864, %v1862
    %v1879 = vpack.c.b16 %v1865, %v1863
    %v1880 = vpack.c.b16 %v1868, %v1866
    %v1881 = vpack.c.b16 %v1869, %v1867
    %v1882 = vpack.c.b16 %v1872, %v1870
    %v1883 = vpack.c.b16 %v1873, %v1871
    %v1884 = vpack.c.b16 %v1876, %v1874
    %v1885 = vpack.c.b16 %v1877, %v1875
    %v1895 = vsel %vm377, 0, 0
    %1897 = vmatprep.subr.bf16.mxu0 %v1879
    %1898 = vmatpush1.bf16.msra.mxu0 %v1878
    %1899 = vmatprep.subr.bf16.mxu0 %v1881
    %1900 = vmatpush1.bf16.msra.mxu0 %v1880
    %1901 = vmatprep.subr.bf16.mxu0 %v1883
    %1902 = vmatpush1.bf16.msra.mxu0 %v1882
    %1903 = vmatprep.subr.bf16.mxu0 %v1885
    %1904 = vmatpush1.bf16.msra.mxu0 %v1884
    %1905 = vmatprep.subr.bf16.mxu0 0
    %1906 = vmatpush1.bf16.msra.mxu0 0
    %1907 = vmatprep.subr.bf16.mxu0 0
    %1908 = vmatpush1.bf16.msra.mxu0 0
    %1909 = vmatprep.subr.bf16.mxu0 0
    %1910 = vmatpush1.bf16.msra.mxu0 0
    %1911 = vmatprep.subr.bf16.mxu0 0
    %1912 = vmatpush1.bf16.msra.mxu0 0
    %1913 = vmatprep.subr.bf16.mxu0 0
    %1914 = vmatpush1.bf16.msra.mxu0 0
    %1915 = vmatprep.subr.bf16.mxu0 0
    %1916 = vmatpush1.bf16.msra.mxu0 0
    %1917 = vmatprep.subr.bf16.mxu0 0
    %1918 = vmatpush1.bf16.msra.mxu0 0
    %1919 = vmatprep.subr.bf16.mxu0 0
    %1920 = vmatpush1.bf16.msra.mxu0 0
    %1921 = vmatprep.subr.bf16.mxu0 0
    %1922 = vmatpush1.bf16.msra.mxu0 0
    %1923 = vmatprep.subr.bf16.mxu0 0
    %1924 = vmatpush1.bf16.msra.mxu0 0
    %1925 = vmatprep.subr.bf16.mxu0 0
    %1926 = vmatpush1.bf16.msra.mxu0 0
    %1927 = vmatprep.subr.bf16.mxu0 0
    %1928 = vmatpush1.bf16.msra.mxu0 0
    %1929 = vmatprep.mubr.bf16.mxu0 0
    %1930 = vmatmul.mubr.bf16.gmra.mrb[0].mxu0 %v1895
    %v1931 = vpop.f32.mrb[0].mxu0
    %v1932 = vadd.f32 0.0, %v1931
    %v1933 = vpop.f32.mrb[0].mxu0
    %v1934 = vadd.f32 0.0, %v1933
    %v1935 = vpop.f32.mrb[0].mxu0
    %v1936 = vpop.f32.mrb[0].mxu0
    %1937 = vdwg.mxu0
    %v1938 = vadd.f32 %v1848, %v1932
    %v1939 = vadd.f32 %v1850, %v1934
    %v1940 = vtanh.pop %v1938
    %v1941 = vtanh.pop %v1939
    %v1942 = vmul.f32 %v1940, 0.5
    %v1943 = vmul.f32 %v1941, 0.5
    %v1944 = vadd.f32 %v1942, 0.5
    %v1945 = vadd.f32 %v1943, 0.5
    %v1946 = vsel %vm329, %v1940, %v1944
    %v1947 = vsel %vm330, %v1941, %v1945
    %v1948 = vmul.f32 %v1946, 0.0
    %v1949 = vmul.f32 %v1946, %v1947
    %1951 = vrot.lane.b32.xlu0 %v1949, 64
    %v1952 = vpop.permute.xlu0 %1951
    %v1954 = vadd.f32 %v1948, %v1952
    %v1955 = vtanh.pop %v1954
    %v1956 = vmul.f32 %v1947, %v1955
    %v1957 = vpack.c.bf16 %v1956, %v1956
    %1959 = vrot.lane.b32.xlu0 %v1957, 64
    %v1960 = vpop.permute.xlu0 %1959
    %v1962 = vsel %vm377, %v1960, 0
    %1964 = vmatprep.subr.bf16.mxu0 %v1879
    %1965 = vmatpush1.bf16.msra.mxu0 %v1878
    %1966 = vmatprep.subr.bf16.mxu0 %v1881
    %1967 = vmatpush1.bf16.msra.mxu0 %v1880
    %1968 = vmatprep.subr.bf16.mxu0 %v1883
    %1969 = vmatpush1.bf16.msra.mxu0 %v1882
    %1970 = vmatprep.subr.bf16.mxu0 %v1885
    %1971 = vmatpush1.bf16.msra.mxu0 %v1884
    %1972 = vmatprep.subr.bf16.mxu0 0
    %1973 = vmatpush1.bf16.msra.mxu0 0
    %1974 = vmatprep.subr.bf16.mxu0 0
    %1975 = vmatpush1.bf16.msra.mxu0 0
    %1976 = vmatprep.subr.bf16.mxu0 0
    %1977 = vmatpush1.bf16.msra.mxu0 0
    %1978 = vmatprep.subr.bf16.mxu0 0
    %1979 = vmatpush1.bf16.msra.mxu0 0
    %1980 = vmatprep.subr.bf16.mxu0 0
    %1981 = vmatpush1.bf16.msra.mxu0 0
    %1982 = vmatprep.subr.bf16.mxu0 0
    %1983 = vmatpush1.bf16.msra.mxu0 0
    %1984 = vmatprep.subr.bf16.mxu0 0
    %1985 = vmatpush1.bf16.msra.mxu0 0
    %1986 = vmatprep.subr.bf16.mxu0 0
    %1987 = vmatpush1.bf16.msra.mxu0 0
    %1988 = vmatprep.subr.bf16.mxu0 0
    %1989 = vmatpush1.bf16.msra.mxu0 0
    %1990 = vmatprep.subr.bf16.mxu0 0
    %1991 = vmatpush1.bf16.msra.mxu0 0
    %1992 = vmatprep.subr.bf16.mxu0 0
    %1993 = vmatpush1.bf16.msra.mxu0 0
    %1994 = vmatprep.subr.bf16.mxu0 0
    %1995 = vmatpush1.bf16.msra.mxu0 0
    %1996 = vmatprep.mubr.bf16.mxu0 0
    %1997 = vmatmul.mubr.bf16.gmra.mrb[0].mxu0 %v1962
    %v1998 = vpop.f32.mrb[0].mxu0
    %v1999 = vadd.f32 0.0, %v1998
    %v2000 = vpop.f32.mrb[0].mxu0
    %v2001 = vadd.f32 0.0, %v2000
    %v2002 = vpop.f32.mrb[0].mxu0
    %v2003 = vpop.f32.mrb[0].mxu0
    %2004 = vdwg.mxu0
    %v2005 = vadd.f32 %v1848, %v1999
    %v2006 = vadd.f32 %v1850, %v2001
    %v2007 = vtanh.pop %v2005
    %v2008 = vtanh.pop %v2006
    %v2009 = vmul.f32 %v2007, 0.5
    %v2010 = vmul.f32 %v2008, 0.5
    %v2011 = vadd.f32 %v2009, 0.5
    %v2012 = vadd.f32 %v2010, 0.5
    %v2013 = vsel %vm329, %v2007, %v2011
    %v2014 = vsel %vm330, %v2008, %v2012
    %v2015 = vmul.f32 %v2013, %v1954
    %v2016 = vmul.f32 %v2013, %v2014
    %2018 = vrot.lane.b32.xlu0 %v2016, 64
    %v2019 = vpop.permute.xlu0 %2018
    %v2021 = vadd.f32 %v2015, %v2019
    %v2022 = vtanh.pop %v2021
    %v2023 = vmul.f32 %v2014, %v2022
    %v2024 = vpack.c.bf16 %v2023, %v2023
    %2026 = vrot.lane.b32.xlu0 %v2024, 64
    %v2027 = vpop.permute.xlu0 %2026
    %v2029 = vsel %vm377, %v2027, 0
    %2031 = vmatprep.subr.bf16.mxu0 %v1879
    %2032 = vmatpush1.bf16.msra.mxu0 %v1878
    %2033 = vmatprep.subr.bf16.mxu0 %v1881
    %2034 = vmatpush1.bf16.msra.mxu0 %v1880
    %2035 = vmatprep.subr.bf16.mxu0 %v1883
    %2036 = vmatpush1.bf16.msra.mxu0 %v1882
    %2037 = vmatprep.subr.bf16.mxu0 %v1885
    %2038 = vmatpush1.bf16.msra.mxu0 %v1884
    %2039 = vmatprep.subr.bf16.mxu0 0
    %2040 = vmatpush1.bf16.msra.mxu0 0
    %2041 = vmatprep.subr.bf16.mxu0 0
    %2042 = vmatpush1.bf16.msra.mxu0 0
    %2043 = vmatprep.subr.bf16.mxu0 0
    %2044 = vmatpush1.bf16.msra.mxu0 0
    %2045 = vmatprep.subr.bf16.mxu0 0
    %2046 = vmatpush1.bf16.msra.mxu0 0
    %2047 = vmatprep.subr.bf16.mxu0 0
    %2048 = vmatpush1.bf16.msra.mxu0 0
    %2049 = vmatprep.subr.bf16.mxu0 0
    %2050 = vmatpush1.bf16.msra.mxu0 0
    %2051 = vmatprep.subr.bf16.mxu0 0
    %2052 = vmatpush1.bf16.msra.mxu0 0
    %2053 = vmatprep.subr.bf16.mxu0 0
    %2054 = vmatpush1.bf16.msra.mxu0 0
    %2055 = vmatprep.subr.bf16.mxu0 0
    %2056 = vmatpush1.bf16.msra.mxu0 0
    %2057 = vmatprep.subr.bf16.mxu0 0
    %2058 = vmatpush1.bf16.msra.mxu0 0
    %2059 = vmatprep.subr.bf16.mxu0 0
    %2060 = vmatpush1.bf16.msra.mxu0 0
    %2061 = vmatprep.subr.bf16.mxu0 0
    %2062 = vmatpush1.bf16.msra.mxu0 0
    %2063 = vmatprep.mubr.bf16.mxu0 0
    %2064 = vmatmul.mubr.bf16.gmra.mrb[0].mxu0 %v2029
    %v2065 = vpop.f32.mrb[0].mxu0
    %v2066 = vadd.f32 0.0, %v2065
    %v2067 = vpop.f32.mrb[0].mxu0
    %v2068 = vadd.f32 0.0, %v2067
    %v2069 = vpop.f32.mrb[0].mxu0
    %v2070 = vpop.f32.mrb[0].mxu0
    %2071 = vdwg.mxu0
    %v2072 = vadd.f32 %v1848, %v2066
    %v2073 = vadd.f32 %v1850, %v2068
    %v2074 = vtanh.pop %v2072
    %v2075 = vtanh.pop %v2073
    %v2076 = vmul.f32 %v2074, 0.5
    %v2077 = vmul.f32 %v2075, 0.5
    %v2078 = vadd.f32 %v2076, 0.5
    %v2079 = vadd.f32 %v2077, 0.5
    %v2080 = vsel %vm329, %v2074, %v2078
    %v2081 = vsel %vm330, %v2075, %v2079
    %v2082 = vmul.f32 %v2080, %v2021
    %v2083 = vmul.f32 %v2080, %v2081
    %2085 = vrot.lane.b32.xlu0 %v2083, 64
    %v2086 = vpop.permute.xlu0 %2085
    %v2088 = vadd.f32 %v2082, %v2086
    %v2089 = vtanh.pop %v2088
    %v2090 = vmul.f32 %v2081, %v2089
    %v2091 = vpack.c.bf16 %v2090, %v2090
    %2093 = vrot.lane.b32.xlu0 %v2091, 64
    %v2094 = vpop.permute.xlu0 %2093
    %v2096 = vsel %vm377, %v2094, 0
    %2098 = vmatprep.subr.bf16.mxu0 %v1879
    %2099 = vmatpush1.bf16.msra.mxu0 %v1878
    %2100 = vmatprep.subr.bf16.mxu0 %v1881
    %2101 = vmatpush1.bf16.msra.mxu0 %v1880
    %2102 = vmatprep.subr.bf16.mxu0 %v1883
    %2103 = vmatpush1.bf16.msra.mxu0 %v1882
    %2104 = vmatprep.subr.bf16.mxu0 %v1885
    %2105 = vmatpush1.bf16.msra.mxu0 %v1884
    %2106 = vmatprep.subr.bf16.mxu0 0
    %2107 = vmatpush1.bf16.msra.mxu0 0
    %2108 = vmatprep.subr.bf16.mxu0 0
    %2109 = vmatpush1.bf16.msra.mxu0 0
    %2110 = vmatprep.subr.bf16.mxu0 0
    %2111 = vmatpush1.bf16.msra.mxu0 0
    %2112 = vmatprep.subr.bf16.mxu0 0
    %2113 = vmatpush1.bf16.msra.mxu0 0
    %2114 = vmatprep.subr.bf16.mxu0 0
    %2115 = vmatpush1.bf16.msra.mxu0 0
    %2116 = vmatprep.subr.bf16.mxu0 0
    %2117 = vmatpush1.bf16.msra.mxu0 0
    %2118 = vmatprep.subr.bf16.mxu0 0
    %2119 = vmatpush1.bf16.msra.mxu0 0
    %2120 = vmatprep.subr.bf16.mxu0 0
    %2121 = vmatpush1.bf16.msra.mxu0 0
    %2122 = vmatprep.subr.bf16.mxu0 0
    %2123 = vmatpush1.bf16.msra.mxu0 0
    %2124 = vmatprep.subr.bf16.mxu0 0
    %2125 = vmatpush1.bf16.msra.mxu0 0
    %2126 = vmatprep.subr.bf16.mxu0 0
    %2127 = vmatpush1.bf16.msra.mxu0 0
    %2128 = vmatprep.subr.bf16.mxu0 0
    %2129 = vmatpush1.bf16.msra.mxu0 0
    %2130 = vmatprep.mubr.bf16.mxu0 0
    %2131 = vmatmul.mubr.bf16.gmra.mrb[0].mxu0 %v2096
    %v2132 = vpop.f32.mrb[0].mxu0
    %v2133 = vadd.f32 0.0, %v2132
    %v2134 = vpop.f32.mrb[0].mxu0
    %v2135 = vadd.f32 0.0, %v2134
    %v2136 = vpop.f32.mrb[0].mxu0
    %v2137 = vpop.f32.mrb[0].mxu0
    %2138 = vdwg.mxu0
    %v2139 = vadd.f32 %v1848, %v2133
    %v2140 = vadd.f32 %v1850, %v2135
    %v2141 = vtanh.pop %v2139
    %v2142 = vtanh.pop %v2140
    %v2143 = vmul.f32 %v2141, 0.5
    %v2144 = vmul.f32 %v2142, 0.5
    %v2145 = vadd.f32 %v2143, 0.5
    %v2146 = vadd.f32 %v2144, 0.5
    %v2147 = vsel %vm329, %v2141, %v2145
    %v2148 = vsel %vm330, %v2142, %v2146
    %v2149 = vmul.f32 %v2147, %v2088
    %v2150 = vmul.f32 %v2147, %v2148
    %2152 = vrot.lane.b32.xlu0 %v2150, 64
    %v2153 = vpop.permute.xlu0 %2152
    %v2155 = vadd.f32 %v2149, %v2153
    %v2156 = vtanh.pop %v2155
    %v2157 = vmul.f32 %v2148, %v2156
    %v2158 = vpack.c.bf16 %v2157, %v2157
    %2160 = vrot.lane.b32.xlu0 %v2158, 64
    %v2161 = vpop.permute.xlu0 %2160
    %v2163 = vsel %vm377, %v2161, 0
    %2165 = vmatprep.subr.bf16.mxu0 %v1879
    %2166 = vmatpush1.bf16.msra.mxu0 %v1878
    %2167 = vmatprep.subr.bf16.mxu0 %v1881
    %2168 = vmatpush1.bf16.msra.mxu0 %v1880
    %2169 = vmatprep.subr.bf16.mxu0 %v1883
    %2170 = vmatpush1.bf16.msra.mxu0 %v1882
    %2171 = vmatprep.subr.bf16.mxu0 %v1885
    %2172 = vmatpush1.bf16.msra.mxu0 %v1884
    %2173 = vmatprep.subr.bf16.mxu0 0
    %2174 = vmatpush1.bf16.msra.mxu0 0
    %2175 = vmatprep.subr.bf16.mxu0 0
    %2176 = vmatpush1.bf16.msra.mxu0 0
    %2177 = vmatprep.subr.bf16.mxu0 0
    %2178 = vmatpush1.bf16.msra.mxu0 0
    %2179 = vmatprep.subr.bf16.mxu0 0
    %2180 = vmatpush1.bf16.msra.mxu0 0
    %2181 = vmatprep.subr.bf16.mxu0 0
    %2182 = vmatpush1.bf16.msra.mxu0 0
    %2183 = vmatprep.subr.bf16.mxu0 0
    %2184 = vmatpush1.bf16.msra.mxu0 0
    %2185 = vmatprep.subr.bf16.mxu0 0
    %2186 = vmatpush1.bf16.msra.mxu0 0
    %2187 = vmatprep.subr.bf16.mxu0 0
    %2188 = vmatpush1.bf16.msra.mxu0 0
    %2189 = vmatprep.subr.bf16.mxu0 0
    %2190 = vmatpush1.bf16.msra.mxu0 0
    %2191 = vmatprep.subr.bf16.mxu0 0
    %2192 = vmatpush1.bf16.msra.mxu0 0
    %2193 = vmatprep.subr.bf16.mxu0 0
    %2194 = vmatpush1.bf16.msra.mxu0 0
    %2195 = vmatprep.subr.bf16.mxu0 0
    %2196 = vmatpush1.bf16.msra.mxu0 0
    %2197 = vmatprep.mubr.bf16.mxu0 0
    %2198 = vmatmul.mubr.bf16.gmra.mrb[0].mxu0 %v2163
    %v2199 = vpop.f32.mrb[0].mxu0
    %v2200 = vadd.f32 0.0, %v2199
    %v2201 = vpop.f32.mrb[0].mxu0
    %v2202 = vadd.f32 0.0, %v2201
    %v2203 = vpop.f32.mrb[0].mxu0
    %v2204 = vpop.f32.mrb[0].mxu0
    %2205 = vdwg.mxu0
    %v2206 = vadd.f32 %v1848, %v2200
    %v2207 = vadd.f32 %v1850, %v2202
    %v2208 = vtanh.pop %v2206
    %v2209 = vtanh.pop %v2207
    %v2210 = vmul.f32 %v2208, 0.5
    %v2211 = vmul.f32 %v2209, 0.5
    %v2212 = vadd.f32 %v2210, 0.5
    %v2213 = vadd.f32 %v2211, 0.5
    %v2214 = vsel %vm329, %v2208, %v2212
    %v2215 = vsel %vm330, %v2209, %v2213
    %v2216 = vmul.f32 %v2214, %v2155
    %v2217 = vmul.f32 %v2214, %v2215
    %2219 = vrot.lane.b32.xlu0 %v2217, 64
    %v2220 = vpop.permute.xlu0 %2219
    %v2222 = vadd.f32 %v2216, %v2220
    %v2223 = vtanh.pop %v2222
    %v2224 = vmul.f32 %v2215, %v2223
    %v2226 = vrot.slane %v2023, 6
    %v2229 = vrot.slane %v2090, 4
    %v2232 = vrot.slane %v2157, 2
    %v2234 = vsel %vm334, %v1956, %v2226
    %vm2235 = vcmask 1043456
    %v2236 = vsel %vm2235, %v2234, %v2229
    %vm2237 = vcmask 1045504
    %v2238 = vsel %vm2237, %v2236, %v2232
    %v2239 = vld [vmem:[%s14] sm:$0xff]
    %v2240 = vld [vmem:[%s14 + $0x8] sm:$0xff]
    %v2241 = vld [vmem:[%s14 + $0x10] sm:$0xff]
    %v2242 = vld [vmem:[%s14 + $0x18] sm:$0xff]
    %v2243 = vld [vmem:[%s14 + $0x20] sm:$0xff]
    %v2244 = vld [vmem:[%s14 + $0x28] sm:$0xff]
    %v2245 = vld [vmem:[%s14 + $0x30] sm:$0xff]
    %v2246 = vld [vmem:[%s14 + $0x38] sm:$0xff]
    %2249 = vrot.lane.b32.xlu0 %v2238, 64
    %v2250 = vpop.permute.xlu0 %2249
    %2251 = vrot.lane.b32.xlu0 %v2224, 64
    %v2252 = vpop.permute.xlu0 %2251
    %v2253 = vsel %vm377, %v2250, 0
    %v2255 = vsel %vm377, %v2252, 0
    %2257 = vmatprep.subr.mxu0 0.0
    %2258 = vmatpush1.msra.mxu0 %v2239
    %2259 = vmatprep.subr.mxu0 0.0
    %2260 = vmatpush1.msra.mxu0 %v2240
    %2261 = vmatprep.subr.mxu0 0.0
    %2262 = vmatpush1.msra.mxu0 %v2241
    %2263 = vmatprep.subr.mxu0 0.0
    %2264 = vmatpush1.msra.mxu0 %v2242
    %2265 = vmatprep.subr.mxu0 0.0
    %2266 = vmatpush1.msra.mxu0 %v2243
    %2267 = vmatprep.subr.mxu0 0.0
    %2268 = vmatpush1.msra.mxu0 %v2244
    %2269 = vmatprep.subr.mxu0 0.0
    %2270 = vmatpush1.msra.mxu0 %v2245
    %2271 = vmatprep.subr.mxu0 0.0
    %2272 = vmatpush1.msra.mxu0 %v2246
    %2273 = vmatprep.subr.mxu0 0.0
    %2274 = vmatpush1.msra.mxu0 0.0
    %2275 = vmatprep.subr.mxu0 0.0
    %2276 = vmatpush1.msra.mxu0 0.0
    %2277 = vmatprep.subr.mxu0 0.0
    %2278 = vmatpush1.msra.mxu0 0.0
    %2279 = vmatprep.subr.mxu0 0.0
    %2280 = vmatpush1.msra.mxu0 0.0
    %2281 = vmatprep.subr.mxu0 0.0
    %2282 = vmatpush1.msra.mxu0 0.0
    %2283 = vmatprep.subr.mxu0 0.0
    %2284 = vmatpush1.msra.mxu0 0.0
    %2285 = vmatprep.subr.mxu0 0.0
    %2286 = vmatpush1.msra.mxu0 0.0
    %2287 = vmatprep.subr.mxu0 0.0
    %2288 = vmatpush1.msra.mxu0 0.0
    %2289 = vmatprep.subr.mxu0 0.0
    %2290 = vmatpush1.msra.mxu0 0.0
    %2291 = vmatprep.subr.mxu0 0.0
    %2292 = vmatpush1.msra.mxu0 0.0
    %2293 = vmatprep.subr.mxu0 0.0
    %2294 = vmatpush1.msra.mxu0 0.0
    %2295 = vmatprep.subr.mxu0 0.0
    %2296 = vmatpush1.msra.mxu0 0.0
    %2297 = vmatprep.subr.mxu0 0.0
    %2298 = vmatpush1.msra.mxu0 0.0
    %2299 = vmatprep.subr.mxu0 0.0
    %2300 = vmatpush1.msra.mxu0 0.0
    %2301 = vmatprep.subr.mxu0 0.0
    %2302 = vmatpush1.msra.mxu0 0.0
    %2303 = vmatprep.subr.mxu0 0.0
    %2304 = vmatpush1.msra.mxu0 0.0
    %2305 = vmatprep.subr.mxu0 0.0
    %2306 = vmatpush1.msra.mxu0 0.0
    %2307 = vmatprep.subr.mxu0 0.0
    %2308 = vmatpush1.msra.mxu0 0.0
    %2309 = vmatprep.subr.mxu0 0.0
    %2310 = vmatpush1.msra.mxu0 0.0
    %2311 = vmatprep.subr.mxu0 0.0
    %2312 = vmatpush1.msra.mxu0 0.0
    %2313 = vmatprep.subr.mxu0 0.0
    %2314 = vmatpush1.msra.mxu0 0.0
    %2315 = vmatprep.subr.mxu0 0.0
    %2316 = vmatpush1.msra.mxu0 0.0
    %2317 = vmatprep.subr.mxu0 0.0
    %2318 = vmatpush1.msra.mxu0 0.0
    %2319 = vmatprep.subr.mxu0 0.0
    %2320 = vmatpush1.msra.mxu0 0.0
    %2321 = vmatprep.mubr.f32.mxu0 0.0
    %2322 = vmatmul.mubr.f32.gmra.mrb[0].mxu0 %v2253
    %v2323 = vpop.f32.mrb[0].mxu0
    %v2324 = vadd.f32 0.0, %v2323
    %v2325 = vpop.f32.mrb[0].mxu0
    %2326 = vmatprep.mubr.f32.mxu0 0.0
    %2327 = vmatmul.mubr.f32.gmra.mrb[0].mxu0 %v2255
    %v2328 = vpop.f32.mrb[0].mxu0
    %v2329 = vadd.f32 0.0, %v2328
    %v2330 = vpop.f32.mrb[0].mxu0
    %2331 = vdwg.mxu0
    %v2334 = vcombine.high %v2324, %v2324
    %v2336 = vunpack.c.l.s4 1983009808
    %v2337 = vunpack.c.0.s8 %v2336
    %v2338 = vlaneseq
    %v2339 = vshrl.u32 %v2338, 7
    %v2340 = vsub.s32 %v2337, %v2339
    %v2341 = vrot.slane %v2324, %v2340
    %v2343 = vunpack.c.l.s4 1983009808
    %v2344 = vunpack.c.0.s8 %v2343
    %v2345 = vlaneseq
    %v2346 = vshrl.u32 %v2345, 7
    %v2347 = vsub.s32 %v2344, %v2346
    %v2348 = vrot.slane %v2334, %v2347
    %v2349 = vcombine.high %v2341, %v2341
    %v2350 = vcombine.high %v2348, %v2348
    %v2352 = vunpack.c.l.s4 1983009808
    %v2353 = vunpack.c.0.s8 %v2352
    %v2354 = vlaneseq
    %v2355 = vshrl.u32 %v2354, 7
    %v2356 = vsub.s32 %v2353, %v2355
    %v2357 = vrot.slane %v2329, %v2356
    %v2363 = vld [vmem:[%s15] sm:$0x1]
    %v2365 = vlaneseq
    %v2366 = vshrl.u32 %v2365, 7
    %v2367 = vsub.s32 0, %v2366
    %v2368 = vrot.slane %v2363, %v2367
    %v2370 = vadd.f32 %v2341, %v2368
    %v2371 = vadd.f32 %v2349, %v2368
    %v2372 = vadd.f32 %v2348, %v2368
    %v2373 = vadd.f32 %v2350, %v2368
    %v2374 = vadd.f32 %v2357, %v2368
    %vm2375 = vcmp.lt.s32.totalorder %v320, 2
    %vm2376 = vcmp.lt.s32.totalorder %v320, 4
    %v2377 = vmul.f32 %v2370, 1.442695
    %v2378 = vpow.pop %v2377
    %v2379 = vmul.f32 %v2371, 1.442695
    %v2380 = vpow.pop %v2379
    %v2381 = vmul.f32 %v2372, 1.442695
    %v2382 = vpow.pop %v2381
    %v2383 = vmul.f32 %v2373, 1.442695
    %v2384 = vpow.pop %v2383
    %v2385 = vmul.f32 %v2374, 1.442695
    %v2386 = vpow.pop %v2385
    %v2387 = vtanh.pop %v2370
    %v2388 = vtanh.pop %v2371
    %v2389 = vtanh.pop %v2372
    %v2390 = vtanh.pop %v2373
    %v2391 = vtanh.pop %v2374
    %v2392 = vsel %vm2376, %v2378, %v2387
    %v2393 = vsel %vm2376, %v2380, %v2388
    %v2394 = vsel %vm2376, %v2382, %v2389
    %v2395 = vsel %vm2376, %v2384, %v2390
    %v2396 = vsel %vm2376, %v2386, %v2391
    %v2397 = vsel %vm2375, %v2370, %v2392
    %v2398 = vsel %vm2375, %v2371, %v2393
    %v2399 = vsel %vm2375, %v2372, %v2394
    %v2400 = vsel %vm2375, %v2373, %v2395
    %v2401 = vsel %vm2375, %v2374, %v2396
    %vm2402 = vcmask 33792
    %2403 = vst.msk [vmem:[#allocation3] sm:$0x3] %vm2402, %v2397
    %2404 = vst.msk [vmem:[#allocation3 + $0x2] sm:$0x3] %vm2402, %v2398
    %2405 = vst.msk [vmem:[#allocation3 + $0x4] sm:$0x3] %vm2402, %v2399
    %2406 = vst.msk [vmem:[#allocation3 + $0x6] sm:$0x3] %vm2402, %v2400
    %2407 = vst.msk [vmem:[#allocation3 + $0x8] sm:$0x3] %vm2402, %v2401
    // Predicated region
    $region66: #{highway_net_forward.1} parent=1 // pred_check
      _
    $region67: #{highway_net_forward.1} parent=1 // pred_check_branch
      %2409 = sbr.rel (0) target = $region69
    $region68: #{highway_net_forward.1} parent=1 // pred_region
      %s2411 = ssub.s32 160, 160
      %2412 = vsyncadd [#allocation4], %s2411
      %s2413 = sshll.u32 [#allocation3], 4
      %s2414 = int_to_ptr.vmem [resolvable:$true] %s2413
      %2419 = dma.vmem_to_hbm [thread:$0]  %s2414, 160, %s16, [#allocation4], 32, 32, 2
    $region69: #{highway_net_forward.1} parent=1 // pred_fallthru
      _
    // Predicated region
    $region70: #{highway_net_forward.1} parent=1 // pred_check
      _
    $region71: #{highway_net_forward.1} parent=1 // pred_check_branch
      %2421 = sbr.rel (0) target = $region73
    $region72: #{highway_net_forward.1} parent=1 // pred_region
      %s2423 = ssub.s32 32, 32
      %2424 = vsyncadd [#allocation6], %s2423
      %s2426 = sshll.u32 [#allocation5], 4
      %s2427 = int_to_ptr.vmem [resolvable:$true] %s2426
      %2429 = dma.vmem_to_hbm [thread:$0]  %s2427, 32, %s17, [#allocation6]
    $region73: #{highway_net_forward.1} parent=1 // pred_fallthru
      _
    // Predicated region
    $region74: #{highway_net_forward.1} parent=1 // pred_check
      _
    $region75: #{highway_net_forward.1} parent=1 // pred_check_branch
      %2431 = sbr.rel (0) target = $region77
    $region76: #{highway_net_forward.1} parent=1 // pred_region
      %2432 = dma.done [#allocation4], 160
    $region77: #{highway_net_forward.1} parent=1 // pred_fallthru
      _
    // Predicated region
    $region78: #{highway_net_forward.1} parent=1 // pred_check
      _
    $region79: #{highway_net_forward.1} parent=1 // pred_check_branch
      %2434 = sbr.rel (0) target = $region81
    $region80: #{highway_net_forward.1} parent=1 // pred_region
      %2435 = dma.done [#allocation6], 32
    $region81: #{highway_net_forward.1} parent=1 // pred_fallthru
      _
    %2436 = vsyncpa [#allocation4], 1
    %2437 = vsyncpa [#allocation6], 1

</llo_original>
